<compile_context>
chip_gen: v7x
topology: tpu7x:2x2x1
jax: 0.10.0
libtpu: 0.0.40
codegen_flags: <defaults>
</compile_context>

<pallas_src>
import functools

import jax
import jax.numpy as jnp
from jax import lax
from jax.experimental import pallas as pl
from jax.experimental.pallas import tpu as pltpu

_NEG_INF = -1e30


def _layer_norm(x, gamma, beta, eps=1e-5):
    # f32 math (PyTorch LayerNorm semantics, eps=1e-5)
    mu = jnp.mean(x, axis=-1, keepdims=True)
    var = jnp.mean((x - mu) ** 2, axis=-1, keepdims=True)
    return (x - mu) * lax.rsqrt(var + eps) * gamma + beta


def _session_encoder_kernel(
    keypad_ref,                               # (NG, 1, S) f32 per-key padding bias
    x_ref,                                    # (TB, L, D) bf16 embedded sequences
    pos_ref,                                  # (L, D)     bf16 reverse-pos embedding
    same_ref,                                 # (S, S)     f32 block-diag same-seq bias
    same_q0_ref,                              # (G, S)     f32 same-seq bias (pos-0 queries)
    wqkv_ref, bqkv_ref,                       # (NL, D, 3D) bf16, (NL, 1, 3D) f32
    wo_ref, bo_ref,                           # (NL, D, D)  bf16, (NL, 1, D)  f32
    w1_ref, b1_ref,                           # (NL, D, F)  bf16, (NL, 1, F)  f32
    w2_ref, b2_ref,                           # (NL, F, D)  bf16, (NL, 1, D)  f32
    g1_ref, be1_ref, g2_ref, be2_ref,         # (NL, 1, D)  f32 each
    out_ref,                                  # (TB, 1, D)  f32 (position-0 rows only)
    *, num_layers, tile_b, seq_len, d_model, n_groups,
):
    TB, L, D, NG = tile_b, seq_len, d_model, n_groups
    G = TB // NG                 # sequences per attention group
    S = G * L                    # rows per attention group
    N = TB * L                   # rows per batch tile
    f32, bf16 = jnp.float32, jnp.bfloat16

    # residual stream in f32; inputs arrive in bf16 (half the input HBM traffic)
    h = (x_ref[...].astype(f32) + pos_ref[...].astype(f32)).reshape(N, D)

    # additive attention biases, precomputed outside the kernel
    keypad = keypad_ref[...]                          # (NG, 1, S)
    bias_full = same_ref[...][None] + keypad          # (NG, S, S)
    bias_q0 = same_q0_ref[...][None] + keypad         # (NG, G, S)

    def full_layer(l, h):
        """One post-LN transformer encoder layer over all TB*L rows."""
        h_bf = h.astype(bf16)
        qkv = jnp.dot(h_bf, wqkv_ref[l],
                      preferred_element_type=f32) + bqkv_ref[l]          # (N, 3D)
        # NOTE: for D not a multiple of 128 these lane slices relayout (small).
        q = qkv[:, :D].astype(bf16).reshape(NG, S, D)
        k = qkv[:, D:2 * D].astype(bf16).reshape(NG, S, D)
        v = qkv[:, 2 * D:].astype(bf16).reshape(NG, S, D)

        # grouped scores: full-width MXU passes even for tiny L
        s = jnp.einsum('gqd,gkd->gqk', q, k, preferred_element_type=f32)
        s = s + bias_full                               # 1/sqrt(D) folded into wq
        m = jnp.max(s, axis=-1, keepdims=True)
        p = jnp.exp(s - m)
        denom = jnp.sum(p, axis=-1, keepdims=True)
        ctx = jnp.einsum('gqk,gkd->gqd', p.astype(bf16), v,
                         preferred_element_type=f32)
        ctx = ctx * pl.reciprocal(denom, approx=True)   # normalize after P@V

        attn = jnp.dot(ctx.reshape(N, D).astype(bf16), wo_ref[l],
                       preferred_element_type=f32) + bo_ref[l]
        h = _layer_norm(h + attn, g1_ref[l], be1_ref[l])   # post-LN (PyTorch)

        ff = jnp.dot(h.astype(bf16), w1_ref[l],
                     preferred_element_type=f32) + b1_ref[l]
        ff = jnp.maximum(ff, 0.0).astype(bf16)             # relu
        ff = jnp.dot(ff, w2_ref[l], preferred_element_type=f32) + b2_ref[l]
        h = _layer_norm(h + ff, g2_ref[l], be2_ref[l])
        return h

    def last_layer(l, h):
        """Final layer: only the position-0 query of each sequence is consumed."""
        h_bf = h.astype(bf16)
        h0 = h.reshape(TB, L, D)[:, 0, :]                               # (TB, D)

        w_qkv = wqkv_ref[l]
        b_qkv = bqkv_ref[l]
        # Q only for the TB position-0 rows; K/V for all rows (they are keys).
        q0 = (jnp.dot(h0.astype(bf16), w_qkv[:, :D],
                      preferred_element_type=f32) + b_qkv[:, :D])
        q0 = q0.astype(bf16).reshape(NG, G, D)
        kv = jnp.dot(h_bf, w_qkv[:, D:],
                     preferred_element_type=f32) + b_qkv[:, D:]         # (N, 2D)
        k = kv[:, :D].astype(bf16).reshape(NG, S, D)
        v = kv[:, D:].astype(bf16).reshape(NG, S, D)

        s = jnp.einsum('gqd,gkd->gqk', q0, k, preferred_element_type=f32)
        s = s + bias_q0                                                  # (NG, G, S)
        m = jnp.max(s, axis=-1, keepdims=True)
        p = jnp.exp(s - m)
        denom = jnp.sum(p, axis=-1, keepdims=True)
        ctx = jnp.einsum('gqk,gkd->gqd', p.astype(bf16), v,
                         preferred_element_type=f32)
        ctx = (ctx * pl.reciprocal(denom, approx=True)).reshape(TB, D)

        attn = jnp.dot(ctx.astype(bf16), wo_ref[l],
                       preferred_element_type=f32) + bo_ref[l]
        y = _layer_norm(h0 + attn, g1_ref[l], be1_ref[l])

        ff = jnp.dot(y.astype(bf16), w1_ref[l],
                     preferred_element_type=f32) + b1_ref[l]
        ff = jnp.maximum(ff, 0.0).astype(bf16)
        ff = jnp.dot(ff, w2_ref[l], preferred_element_type=f32) + b2_ref[l]
        y = _layer_norm(y + ff, g2_ref[l], be2_ref[l])
        return y                                                         # (TB, D)

    n_full = num_layers - 1
    if n_full <= 4:
        # small stacks: full unroll, static weight indices, full scheduler view
        for l in range(n_full):
            h = full_layer(l, h)
    else:
        # deep stacks: bounded loop body avoids vreg-spilling code bloat
        h = lax.fori_loop(0, n_full, full_layer, h)

    y = last_layer(num_layers - 1, h)
    out_ref[...] = y[:, None, :].astype(out_ref.dtype)


def session_encoder_forward(params, embedding, rev_padded_seqs, lens):
    """Pallas implementation of SessionEncoder.forward (eval mode)."""
    B, L = rev_padded_seqs.shape
    D = embedding.shape[1]
    NL = params["wqkv"].shape[0]

    # --- tiling --------------------------------------------------------------
    # G sequences per attention group (~256 score rows keeps the MXU full with
    # bounded cross-sequence FLOP waste); NG groups per batch tile so the
    # projection / FFN matmuls run on up to ~1024-row slabs.  NG shrinks for
    # small batches so the grid keeps >= 2 steps when possible (v7x megacore).
    G = max(1, 256 // L)
    S = G * L
    groups_needed = -(-B // G)
    NG = max(1, min(4, groups_needed // 2))
    TB = G * NG
    n_tiles = -(-B // TB)
    B_pad = n_tiles * TB

    # --- plain-JAX glue ------------------------------------------------------
    emb_seqs = jnp.take(embedding, rev_padded_seqs, axis=0).astype(jnp.bfloat16)
    lens_i = lens.astype(jnp.int32)
    if B_pad != B:
        emb_seqs = jnp.pad(emb_seqs, ((0, B_pad - B), (0, 0), (0, 0)))
        lens_i = jnp.pad(lens_i, (0, B_pad - B), constant_values=1)
    pos_b = params["pos"][:L].astype(jnp.bfloat16)

    # additive attention biases, built once here (no in-kernel index math):
    #  keypad: 0 for valid keys / -1e30 for padded keys, grouped (groups, 1, S)
    #  same / same_q0: block-diagonal same-sequence terms (tile-invariant)
    key_pos = jnp.arange(L, dtype=jnp.int32)[None, :]
    keypad = jnp.where(key_pos < lens_i[:, None], 0.0, _NEG_INF).astype(jnp.float32)
    keypad = keypad.reshape(n_tiles * NG, 1, S)
    seq_of_row = jnp.repeat(jnp.arange(G, dtype=jnp.int32), L)              # (S,)
    same = jnp.where(seq_of_row[:, None] == seq_of_row[None, :],
                     0.0, _NEG_INF).astype(jnp.float32)                     # (S, S)
    same_q0 = jnp.where(
        jnp.arange(G, dtype=jnp.int32)[:, None] == seq_of_row[None, :],
        0.0, _NEG_INF).astype(jnp.float32)                                  # (G, S)

    weights = (params["wqkv"], params["bqkv"], params["wo"], params["bo"],
               params["w1"], params["b1"], params["w2"], params["b2"],
               params["g1"], params["be1"], params["g2"], params["be2"])

    # constant-index full blocks: fetched once, VMEM-resident across the grid
    wfull = lambda a: pl.BlockSpec(a.shape, lambda b: (0,) * a.ndim)

    grid_spec = pltpu.PrefetchScalarGridSpec(
        num_scalar_prefetch=0,
        grid=(n_tiles,),
        in_specs=[
            pl.BlockSpec((NG, 1, S), lambda b: (b, 0, 0)),    # keypad bias tile
            pl.BlockSpec((TB, L, D), lambda b: (b, 0, 0)),    # emb tile (bf16)
            wfull(pos_b), wfull(same), wfull(same_q0),
        ] + [wfull(w) for w in weights],
        out_specs=pl.BlockSpec((TB, 1, D), lambda b: (b, 0, 0)),
    )

    # explicit VMEM budget: resident weights/masks (double-buffered worst case)
    # + activation slabs; >= 32 MiB (v5e default scoped limit is 16 MiB),
    # <= 64 MiB so the request stays valid on v7x.
    resident = sum(int(a.size) * a.dtype.itemsize
                   for a in weights + (pos_b, same, same_q0))
    act = (2 * TB * L * D * 2          # double-buffered bf16 input tiles
           + 8 * TB * L * D * 4        # f32 residual / qkv / ffn slabs
           + 4 * NG * S * S * 4)       # scores / probs / biases
    vmem_limit = int(min(64 * 2 ** 20, max(32 * 2 ** 20, 2 * resident + act)))

    kernel = functools.partial(
        _session_encoder_kernel,
        num_layers=NL, tile_b=TB, seq_len=L, d_model=D, n_groups=NG,
    )

    out = pl.pallas_call(
        kernel,
        grid_spec=grid_spec,
        out_shape=jax.ShapeDtypeStruct((B_pad, 1, D), jnp.float32),
        compiler_params=pltpu.CompilerParams(
            dimension_semantics=("parallel",),
            vmem_limit_bytes=vmem_limit),
    )(keypad, emb_seqs, pos_b, same, same_q0, *weights)

    # sess_emb = transformer_out[arange(B), 0]   (lens.new_zeros(batch) == zeros)
    return out[:B, 0, :]


def init_params(key, num_layers, item_feats, max_len):
    D, F, NL = item_feats, 2 * item_feats, num_layers
    keys = jax.random.split(key, 8)
    n = lambda k, shape, s=0.02: (s * jax.random.normal(k, shape)).astype(jnp.float32)

    # fused QKV projection (PyTorch MHA in_proj), pre-transposed for x @ W,
    # with the 1/sqrt(D) attention scale folded into the Q third (free at runtime)
    scale = 1.0 / (D ** 0.5)
    wqkv = n(keys[1], (NL, D, 3 * D))
    bqkv = n(keys[2], (NL, 1, 3 * D))
    wqkv = wqkv.at[:, :, :D].multiply(scale)
    bqkv = bqkv.at[:, :, :D].multiply(scale)

    params = {
        "pos":  n(keys[0], (max_len, D)).astype(jnp.bfloat16),
        "wqkv": wqkv.astype(jnp.bfloat16),
        "bqkv": bqkv,
        "wo":   n(keys[3], (NL, D, D)).astype(jnp.bfloat16),
        "bo":   n(keys[4], (NL, 1, D)),
        "w1":   n(keys[5], (NL, D, F)).astype(jnp.bfloat16),
        "b1":   n(keys[6], (NL, 1, F)),
        "w2":   n(keys[7], (NL, F, D)).astype(jnp.bfloat16),
        "b2":   jnp.zeros((NL, 1, D), jnp.float32),
        # LayerNorm affine params (PyTorch default init: gamma=1, beta=0)
        "g1":   jnp.ones((NL, 1, D), jnp.float32),
        "be1":  jnp.zeros((NL, 1, D), jnp.float32),
        "g2":   jnp.ones((NL, 1, D), jnp.float32),
        "be2":  jnp.zeros((NL, 1, D), jnp.float32),
    }
    return params


if __name__ == "__main__":
    # small, module-consistent shapes
    B, L, D, NL, VOCAB = 2, 8, 32, 2, 20

    key = jax.random.PRNGKey(0)
    k_emb, k_seq, k_par = jax.random.split(key, 3)

    embedding = (0.1 * jax.random.normal(k_emb, (VOCAB, D))).astype(jnp.float32)
    rev_padded_seqs = jax.random.randint(k_seq, (B, L), 0, VOCAB, dtype=jnp.int32)
    lens = jnp.array([5, 8], dtype=jnp.int32)

    params = init_params(k_par, num_layers=NL, item_feats=D, max_len=L)

    sess_emb = session_encoder_forward(params, embedding, rev_padded_seqs, lens)
    sess_emb = jax.block_until_ready(sess_emb)

    assert sess_emb.shape == (B, D), sess_emb.shape
    assert bool(jnp.all(jnp.isfinite(sess_emb)))
    print("KERNEL_OK")
</pallas_src>

<mosaic_0001>
module attributes {stable_mosaic.version = 11 : i64} {
  func.func @_session_encoder_kernel(%arg0: i32, %arg1: memref<1x1x256xf32, #tpu.memory_space<vmem>>, %arg2: memref<32x8x32xbf16, #tpu.memory_space<vmem>>, %arg3: memref<8x32xbf16, #tpu.memory_space<vmem>>, %arg4: memref<256x256xf32, #tpu.memory_space<vmem>>, %arg5: memref<32x256xf32, #tpu.memory_space<vmem>>, %arg6: memref<2x32x96xbf16, #tpu.memory_space<vmem>>, %arg7: memref<2x1x96xf32, #tpu.memory_space<vmem>>, %arg8: memref<2x32x32xbf16, #tpu.memory_space<vmem>>, %arg9: memref<2x1x32xf32, #tpu.memory_space<vmem>>, %arg10: memref<2x32x64xbf16, #tpu.memory_space<vmem>>, %arg11: memref<2x1x64xf32, #tpu.memory_space<vmem>>, %arg12: memref<2x64x32xbf16, #tpu.memory_space<vmem>>, %arg13: memref<2x1x32xf32, #tpu.memory_space<vmem>>, %arg14: memref<2x1x32xf32, #tpu.memory_space<vmem>>, %arg15: memref<2x1x32xf32, #tpu.memory_space<vmem>>, %arg16: memref<2x1x32xf32, #tpu.memory_space<vmem>>, %arg17: memref<2x1x32xf32, #tpu.memory_space<vmem>>, %arg18: memref<32x1x32xf32, #tpu.memory_space<vmem>>) attributes {dimension_semantics = [#tpu.dimension_semantics<parallel>], iteration_bounds = array<i64: 1>, scalar_prefetch = 0 : i64, scratch_operands = 0 : i64, tpu.core_type = #tpu.core_type<tc>, window_params = [{transform_indices = @transform_0, window_bounds = array<i64: 1, 1, 256>}, {transform_indices = @transform_1, window_bounds = array<i64: 32, 8, 32>}, {pipeline_mode = #tpu.pipeline_mode<synchronous>, transform_indices = @transform_2, window_bounds = array<i64: 8, 32>}, {pipeline_mode = #tpu.pipeline_mode<synchronous>, transform_indices = @transform_3, window_bounds = array<i64: 256, 256>}, {pipeline_mode = #tpu.pipeline_mode<synchronous>, transform_indices = @transform_4, window_bounds = array<i64: 32, 256>}, {pipeline_mode = #tpu.pipeline_mode<synchronous>, transform_indices = @transform_5, window_bounds = array<i64: 2, 32, 96>}, {pipeline_mode = #tpu.pipeline_mode<synchronous>, transform_indices = @transform_6, window_bounds = array<i64: 2, 1, 96>}, {pipeline_mode = #tpu.pipeline_mode<synchronous>, transform_indices = @transform_7, window_bounds = array<i64: 2, 32, 32>}, {pipeline_mode = #tpu.pipeline_mode<synchronous>, transform_indices = @transform_8, window_bounds = array<i64: 2, 1, 32>}, {pipeline_mode = #tpu.pipeline_mode<synchronous>, transform_indices = @transform_9, window_bounds = array<i64: 2, 32, 64>}, {pipeline_mode = #tpu.pipeline_mode<synchronous>, transform_indices = @transform_10, window_bounds = array<i64: 2, 1, 64>}, {pipeline_mode = #tpu.pipeline_mode<synchronous>, transform_indices = @transform_11, window_bounds = array<i64: 2, 64, 32>}, {pipeline_mode = #tpu.pipeline_mode<synchronous>, transform_indices = @transform_12, window_bounds = array<i64: 2, 1, 32>}, {pipeline_mode = #tpu.pipeline_mode<synchronous>, transform_indices = @transform_13, window_bounds = array<i64: 2, 1, 32>}, {pipeline_mode = #tpu.pipeline_mode<synchronous>, transform_indices = @transform_14, window_bounds = array<i64: 2, 1, 32>}, {pipeline_mode = #tpu.pipeline_mode<synchronous>, transform_indices = @transform_15, window_bounds = array<i64: 2, 1, 32>}, {pipeline_mode = #tpu.pipeline_mode<synchronous>, transform_indices = @transform_16, window_bounds = array<i64: 2, 1, 32>}, {transform_indices = @transform_17, window_bounds = array<i64: 32, 1, 32>}]} {
    %c0 = arith.constant 0 : index
    %c0_0 = arith.constant 0 : index
    %c0_1 = arith.constant 0 : index
    %0 = vector.load %arg2[%c0, %c0_0, %c0_1] : memref<32x8x32xbf16, #tpu.memory_space<vmem>>, vector<32x8x32xbf16>
    %1 = arith.extf %0 : vector<32x8x32xbf16> to vector<32x8x32xf32>
    %c0_2 = arith.constant 0 : index
    %c0_3 = arith.constant 0 : index
    %2 = vector.load %arg3[%c0_2, %c0_3] : memref<8x32xbf16, #tpu.memory_space<vmem>>, vector<8x32xbf16>
    %3 = arith.extf %2 : vector<8x32xbf16> to vector<8x32xf32>
    %4 = vector.shape_cast %3 : vector<8x32xf32> to vector<1x8x32xf32>
    %5 = vector.broadcast %4 : vector<1x8x32xf32> to vector<32x8x32xf32>
    %6 = arith.addf %1, %5 : vector<32x8x32xf32>
    %7 = vector.shape_cast %6 : vector<32x8x32xf32> to vector<256x32xf32>
    %c0_4 = arith.constant 0 : index
    %c0_5 = arith.constant 0 : index
    %c0_6 = arith.constant 0 : index
    %8 = vector.load %arg1[%c0_4, %c0_5, %c0_6] : memref<1x1x256xf32, #tpu.memory_space<vmem>>, vector<1x1x256xf32>
    %c0_7 = arith.constant 0 : index
    %c0_8 = arith.constant 0 : index
    %9 = vector.load %arg4[%c0_7, %c0_8] : memref<256x256xf32, #tpu.memory_space<vmem>>, vector<256x256xf32>
    %10 = vector.shape_cast %9 : vector<256x256xf32> to vector<1x256x256xf32>
    %11 = vector.broadcast %8 : vector<1x1x256xf32> to vector<1x256x256xf32>
    %12 = arith.addf %10, %11 : vector<1x256x256xf32>
    %c0_9 = arith.constant 0 : index
    %c0_10 = arith.constant 0 : index
    %13 = vector.load %arg5[%c0_9, %c0_10] : memref<32x256xf32, #tpu.memory_space<vmem>>, vector<32x256xf32>
    %14 = vector.shape_cast %13 : vector<32x256xf32> to vector<1x32x256xf32>
    %15 = vector.broadcast %8 : vector<1x1x256xf32> to vector<1x32x256xf32>
    %16 = arith.addf %14, %15 : vector<1x32x256xf32>
    %17 = arith.truncf %7 : vector<256x32xf32> to vector<256x32xbf16>
    %c0_11 = arith.constant 0 : index
    %c0_12 = arith.constant 0 : index
    %c0_13 = arith.constant 0 : index
    %18 = vector.load %arg6[%c0_11, %c0_12, %c0_13] : memref<2x32x96xbf16, #tpu.memory_space<vmem>>, vector<1x32x96xbf16>
    %19 = vector.shape_cast %18 : vector<1x32x96xbf16> to vector<32x96xbf16>
    %cst = arith.constant dense<0.000000e+00> : vector<256x96xf32>
    %20 = tpu.matmul %17, %19, %cst {dimension_numbers = #tpu.dot_dimension_numbers<[1], [0], [0], [1], [0, 0, 1, 1], [], []>} : vector<256x32xbf16>, vector<32x96xbf16>, vector<256x96xf32> -> vector<256x96xf32>
    %c0_14 = arith.constant 0 : index
    %c0_15 = arith.constant 0 : index
    %c0_16 = arith.constant 0 : index
    %21 = vector.load %arg7[%c0_14, %c0_15, %c0_16] : memref<2x1x96xf32, #tpu.memory_space<vmem>>, vector<1x1x96xf32>
    %22 = vector.shape_cast %21 : vector<1x1x96xf32> to vector<1x96xf32>
    %23 = vector.broadcast %22 : vector<1x96xf32> to vector<256x96xf32>
    %24 = arith.addf %20, %23 : vector<256x96xf32>
    %25 = vector.extract_strided_slice %24 {offsets = [0, 0], sizes = [256, 32], strides = [1, 1]} : vector<256x96xf32> to vector<256x32xf32>
    %26 = arith.truncf %25 : vector<256x32xf32> to vector<256x32xbf16>
    %27 = vector.shape_cast %26 : vector<256x32xbf16> to vector<1x256x32xbf16>
    %28 = vector.extract_strided_slice %24 {offsets = [0, 32], sizes = [256, 32], strides = [1, 1]} : vector<256x96xf32> to vector<256x32xf32>
    %29 = arith.truncf %28 : vector<256x32xf32> to vector<256x32xbf16>
    %30 = vector.shape_cast %29 : vector<256x32xbf16> to vector<1x256x32xbf16>
    %31 = vector.extract_strided_slice %24 {offsets = [0, 64], sizes = [256, 32], strides = [1, 1]} : vector<256x96xf32> to vector<256x32xf32>
    %32 = arith.truncf %31 : vector<256x32xf32> to vector<256x32xbf16>
    %33 = vector.shape_cast %32 : vector<256x32xbf16> to vector<1x256x32xbf16>
    "tpu.trace_start"() <{level = 10 : i32, message = "gqd,gkd->gqk"}> : () -> ()
    %cst_17 = arith.constant dense<0.000000e+00> : vector<1x256x256xf32>
    %34 = tpu.matmul %27, %30, %cst_17 {dimension_numbers = #tpu.dot_dimension_numbers<[2], [2], [1], [1], [0, 0, 0, 1, 1, 1], [0], [0]>} : vector<1x256x32xbf16>, vector<1x256x32xbf16>, vector<1x256x256xf32> -> vector<1x256x256xf32>
    "tpu.trace_stop"() : () -> ()
    %35 = arith.addf %34, %12 : vector<1x256x256xf32>
    %cst_18 = arith.constant dense<0xFF800000> : vector<1x256xf32>
    %36 = vector.multi_reduction <maximumf>, %35, %cst_18 [2] : vector<1x256x256xf32> to vector<1x256xf32>
    %37 = vector.shape_cast %36 : vector<1x256xf32> to vector<1x256x1xf32>
    %38 = vector.broadcast %37 : vector<1x256x1xf32> to vector<1x256x256xf32>
    %39 = arith.subf %35, %38 : vector<1x256x256xf32>
    %40 = math.exp %39 : vector<1x256x256xf32>
    %cst_19 = arith.constant dense<0.000000e+00> : vector<1x256xf32>
    %41 = vector.multi_reduction <add>, %40, %cst_19 [2] : vector<1x256x256xf32> to vector<1x256xf32>
    %42 = vector.shape_cast %41 : vector<1x256xf32> to vector<1x256x1xf32>
    %43 = arith.truncf %40 : vector<1x256x256xf32> to vector<1x256x256xbf16>
    "tpu.trace_start"() <{level = 10 : i32, message = "gqk,gkd->gqd"}> : () -> ()
    %cst_20 = arith.constant dense<0.000000e+00> : vector<1x256x32xf32>
    %44 = tpu.matmul %43, %33, %cst_20 {dimension_numbers = #tpu.dot_dimension_numbers<[2], [1], [1], [2], [0, 0, 0, 1, 1, 2], [0], [0]>} : vector<1x256x256xbf16>, vector<1x256x32xbf16>, vector<1x256x32xf32> -> vector<1x256x32xf32>
    "tpu.trace_stop"() : () -> ()
    %45 = tpu.reciprocal %42 {approx = true} : vector<1x256x1xf32> -> vector<1x256x1xf32>
    %46 = vector.broadcast %45 : vector<1x256x1xf32> to vector<1x256x32xf32>
    %47 = arith.mulf %44, %46 : vector<1x256x32xf32>
    %48 = vector.shape_cast %47 : vector<1x256x32xf32> to vector<256x32xf32>
    %49 = arith.truncf %48 : vector<256x32xf32> to vector<256x32xbf16>
    %c0_21 = arith.constant 0 : index
    %c0_22 = arith.constant 0 : index
    %c0_23 = arith.constant 0 : index
    %50 = vector.load %arg8[%c0_21, %c0_22, %c0_23] : memref<2x32x32xbf16, #tpu.memory_space<vmem>>, vector<1x32x32xbf16>
    %51 = vector.shape_cast %50 : vector<1x32x32xbf16> to vector<32x32xbf16>
    %cst_24 = arith.constant dense<0.000000e+00> : vector<256x32xf32>
    %52 = tpu.matmul %49, %51, %cst_24 {dimension_numbers = #tpu.dot_dimension_numbers<[1], [0], [0], [1], [0, 0, 1, 1], [], []>} : vector<256x32xbf16>, vector<32x32xbf16>, vector<256x32xf32> -> vector<256x32xf32>
    %c0_25 = arith.constant 0 : index
    %c0_26 = arith.constant 0 : index
    %c0_27 = arith.constant 0 : index
    %53 = vector.load %arg9[%c0_25, %c0_26, %c0_27] : memref<2x1x32xf32, #tpu.memory_space<vmem>>, vector<1x1x32xf32>
    %54 = vector.shape_cast %53 : vector<1x1x32xf32> to vector<1x32xf32>
    %55 = vector.broadcast %54 : vector<1x32xf32> to vector<256x32xf32>
    %56 = arith.addf %52, %55 : vector<256x32xf32>
    %57 = arith.addf %7, %56 : vector<256x32xf32>
    %c0_28 = arith.constant 0 : index
    %c0_29 = arith.constant 0 : index
    %c0_30 = arith.constant 0 : index
    %58 = vector.load %arg14[%c0_28, %c0_29, %c0_30] : memref<2x1x32xf32, #tpu.memory_space<vmem>>, vector<1x1x32xf32>
    %59 = vector.shape_cast %58 : vector<1x1x32xf32> to vector<1x32xf32>
    %c0_31 = arith.constant 0 : index
    %c0_32 = arith.constant 0 : index
    %c0_33 = arith.constant 0 : index
    %60 = vector.load %arg15[%c0_31, %c0_32, %c0_33] : memref<2x1x32xf32, #tpu.memory_space<vmem>>, vector<1x1x32xf32>
    %61 = vector.shape_cast %60 : vector<1x1x32xf32> to vector<1x32xf32>
    %cst_34 = arith.constant dense<0.000000e+00> : vector<256xf32>
    %62 = vector.multi_reduction <add>, %57, %cst_34 [1] : vector<256x32xf32> to vector<256xf32>
    %63 = vector.shape_cast %62 : vector<256xf32> to vector<256x1xf32>
    %cst_35 = arith.constant 3.200000e+01 : f32
    %64 = vector.broadcast %cst_35 : f32 to vector<256x1xf32>
    %65 = arith.divf %63, %64 : vector<256x1xf32>
    %66 = vector.broadcast %65 : vector<256x1xf32> to vector<256x32xf32>
    %67 = arith.subf %57, %66 : vector<256x32xf32>
    %68 = arith.mulf %67, %67 : vector<256x32xf32>
    %cst_36 = arith.constant dense<0.000000e+00> : vector<256xf32>
    %69 = vector.multi_reduction <add>, %68, %cst_36 [1] : vector<256x32xf32> to vector<256xf32>
    %70 = vector.shape_cast %69 : vector<256xf32> to vector<256x1xf32>
    %cst_37 = arith.constant 3.200000e+01 : f32
    %71 = vector.broadcast %cst_37 : f32 to vector<256x1xf32>
    %72 = arith.divf %70, %71 : vector<256x1xf32>
    %73 = vector.broadcast %65 : vector<256x1xf32> to vector<256x32xf32>
    %74 = arith.subf %57, %73 : vector<256x32xf32>
    %cst_38 = arith.constant 9.99999974E-6 : f32
    %75 = vector.broadcast %cst_38 : f32 to vector<256x1xf32>
    %76 = arith.addf %72, %75 : vector<256x1xf32>
    %77 = math.rsqrt %76 : vector<256x1xf32>
    %78 = vector.broadcast %77 : vector<256x1xf32> to vector<256x32xf32>
    %79 = arith.mulf %74, %78 : vector<256x32xf32>
    %80 = vector.broadcast %59 : vector<1x32xf32> to vector<256x32xf32>
    %81 = arith.mulf %79, %80 : vector<256x32xf32>
    %82 = vector.broadcast %61 : vector<1x32xf32> to vector<256x32xf32>
    %83 = arith.addf %81, %82 : vector<256x32xf32>
    %84 = arith.truncf %83 : vector<256x32xf32> to vector<256x32xbf16>
    %c0_39 = arith.constant 0 : index
    %c0_40 = arith.constant 0 : index
    %c0_41 = arith.constant 0 : index
    %85 = vector.load %arg10[%c0_39, %c0_40, %c0_41] : memref<2x32x64xbf16, #tpu.memory_space<vmem>>, vector<1x32x64xbf16>
    %86 = vector.shape_cast %85 : vector<1x32x64xbf16> to vector<32x64xbf16>
    %cst_42 = arith.constant dense<0.000000e+00> : vector<256x64xf32>
    %87 = tpu.matmul %84, %86, %cst_42 {dimension_numbers = #tpu.dot_dimension_numbers<[1], [0], [0], [1], [0, 0, 1, 1], [], []>} : vector<256x32xbf16>, vector<32x64xbf16>, vector<256x64xf32> -> vector<256x64xf32>
    %c0_43 = arith.constant 0 : index
    %c0_44 = arith.constant 0 : index
    %c0_45 = arith.constant 0 : index
    %88 = vector.load %arg11[%c0_43, %c0_44, %c0_45] : memref<2x1x64xf32, #tpu.memory_space<vmem>>, vector<1x1x64xf32>
    %89 = vector.shape_cast %88 : vector<1x1x64xf32> to vector<1x64xf32>
    %90 = vector.broadcast %89 : vector<1x64xf32> to vector<256x64xf32>
    %91 = arith.addf %87, %90 : vector<256x64xf32>
    %cst_46 = arith.constant 0.000000e+00 : f32
    %92 = vector.broadcast %cst_46 : f32 to vector<256x64xf32>
    %93 = arith.maximumf %91, %92 : vector<256x64xf32>
    %94 = arith.truncf %93 : vector<256x64xf32> to vector<256x64xbf16>
    %c0_47 = arith.constant 0 : index
    %c0_48 = arith.constant 0 : index
    %c0_49 = arith.constant 0 : index
    %95 = vector.load %arg12[%c0_47, %c0_48, %c0_49] : memref<2x64x32xbf16, #tpu.memory_space<vmem>>, vector<1x64x32xbf16>
    %96 = vector.shape_cast %95 : vector<1x64x32xbf16> to vector<64x32xbf16>
    %cst_50 = arith.constant dense<0.000000e+00> : vector<256x32xf32>
    %97 = tpu.matmul %94, %96, %cst_50 {dimension_numbers = #tpu.dot_dimension_numbers<[1], [0], [0], [1], [0, 0, 1, 1], [], []>} : vector<256x64xbf16>, vector<64x32xbf16>, vector<256x32xf32> -> vector<256x32xf32>
    %c0_51 = arith.constant 0 : index
    %c0_52 = arith.constant 0 : index
    %c0_53 = arith.constant 0 : index
    %98 = vector.load %arg13[%c0_51, %c0_52, %c0_53] : memref<2x1x32xf32, #tpu.memory_space<vmem>>, vector<1x1x32xf32>
    %99 = vector.shape_cast %98 : vector<1x1x32xf32> to vector<1x32xf32>
    %100 = vector.broadcast %99 : vector<1x32xf32> to vector<256x32xf32>
    %101 = arith.addf %97, %100 : vector<256x32xf32>
    %102 = arith.addf %83, %101 : vector<256x32xf32>
    %c0_54 = arith.constant 0 : index
    %c0_55 = arith.constant 0 : index
    %c0_56 = arith.constant 0 : index
    %103 = vector.load %arg16[%c0_54, %c0_55, %c0_56] : memref<2x1x32xf32, #tpu.memory_space<vmem>>, vector<1x1x32xf32>
    %104 = vector.shape_cast %103 : vector<1x1x32xf32> to vector<1x32xf32>
    %c0_57 = arith.constant 0 : index
    %c0_58 = arith.constant 0 : index
    %c0_59 = arith.constant 0 : index
    %105 = vector.load %arg17[%c0_57, %c0_58, %c0_59] : memref<2x1x32xf32, #tpu.memory_space<vmem>>, vector<1x1x32xf32>
    %106 = vector.shape_cast %105 : vector<1x1x32xf32> to vector<1x32xf32>
    %cst_60 = arith.constant dense<0.000000e+00> : vector<256xf32>
    %107 = vector.multi_reduction <add>, %102, %cst_60 [1] : vector<256x32xf32> to vector<256xf32>
    %108 = vector.shape_cast %107 : vector<256xf32> to vector<256x1xf32>
    %cst_61 = arith.constant 3.200000e+01 : f32
    %109 = vector.broadcast %cst_61 : f32 to vector<256x1xf32>
    %110 = arith.divf %108, %109 : vector<256x1xf32>
    %111 = vector.broadcast %110 : vector<256x1xf32> to vector<256x32xf32>
    %112 = arith.subf %102, %111 : vector<256x32xf32>
    %113 = arith.mulf %112, %112 : vector<256x32xf32>
    %cst_62 = arith.constant dense<0.000000e+00> : vector<256xf32>
    %114 = vector.multi_reduction <add>, %113, %cst_62 [1] : vector<256x32xf32> to vector<256xf32>
    %115 = vector.shape_cast %114 : vector<256xf32> to vector<256x1xf32>
    %cst_63 = arith.constant 3.200000e+01 : f32
    %116 = vector.broadcast %cst_63 : f32 to vector<256x1xf32>
    %117 = arith.divf %115, %116 : vector<256x1xf32>
    %118 = vector.broadcast %110 : vector<256x1xf32> to vector<256x32xf32>
    %119 = arith.subf %102, %118 : vector<256x32xf32>
    %cst_64 = arith.constant 9.99999974E-6 : f32
    %120 = vector.broadcast %cst_64 : f32 to vector<256x1xf32>
    %121 = arith.addf %117, %120 : vector<256x1xf32>
    %122 = math.rsqrt %121 : vector<256x1xf32>
    %123 = vector.broadcast %122 : vector<256x1xf32> to vector<256x32xf32>
    %124 = arith.mulf %119, %123 : vector<256x32xf32>
    %125 = vector.broadcast %104 : vector<1x32xf32> to vector<256x32xf32>
    %126 = arith.mulf %124, %125 : vector<256x32xf32>
    %127 = vector.broadcast %106 : vector<1x32xf32> to vector<256x32xf32>
    %128 = arith.addf %126, %127 : vector<256x32xf32>
    %129 = arith.truncf %128 : vector<256x32xf32> to vector<256x32xbf16>
    %130 = vector.shape_cast %128 : vector<256x32xf32> to vector<32x8x32xf32>
    %131 = vector.extract_strided_slice %130 {offsets = [0, 0, 0], sizes = [32, 1, 32], strides = [1, 1, 1]} : vector<32x8x32xf32> to vector<32x1x32xf32>
    %132 = vector.shape_cast %131 : vector<32x1x32xf32> to vector<32x32xf32>
    %c1 = arith.constant 1 : index
    %c0_65 = arith.constant 0 : index
    %c0_66 = arith.constant 0 : index
    %133 = vector.load %arg6[%c1, %c0_65, %c0_66] : memref<2x32x96xbf16, #tpu.memory_space<vmem>>, vector<1x32x96xbf16>
    %134 = vector.shape_cast %133 : vector<1x32x96xbf16> to vector<32x96xbf16>
    %c1_67 = arith.constant 1 : index
    %c0_68 = arith.constant 0 : index
    %c0_69 = arith.constant 0 : index
    %135 = vector.load %arg7[%c1_67, %c0_68, %c0_69] : memref<2x1x96xf32, #tpu.memory_space<vmem>>, vector<1x1x96xf32>
    %136 = vector.shape_cast %135 : vector<1x1x96xf32> to vector<1x96xf32>
    %137 = arith.truncf %132 : vector<32x32xf32> to vector<32x32xbf16>
    %138 = vector.extract_strided_slice %134 {offsets = [0, 0], sizes = [32, 32], strides = [1, 1]} : vector<32x96xbf16> to vector<32x32xbf16>
    %cst_70 = arith.constant dense<0.000000e+00> : vector<32x32xf32>
    %139 = tpu.matmul %137, %138, %cst_70 {dimension_numbers = #tpu.dot_dimension_numbers<[1], [0], [0], [1], [0, 0, 1, 1], [], []>} : vector<32x32xbf16>, vector<32x32xbf16>, vector<32x32xf32> -> vector<32x32xf32>
    %140 = vector.extract_strided_slice %136 {offsets = [0, 0], sizes = [1, 32], strides = [1, 1]} : vector<1x96xf32> to vector<1x32xf32>
    %141 = vector.broadcast %140 : vector<1x32xf32> to vector<32x32xf32>
    %142 = arith.addf %139, %141 : vector<32x32xf32>
    %143 = arith.truncf %142 : vector<32x32xf32> to vector<32x32xbf16>
    %144 = vector.shape_cast %143 : vector<32x32xbf16> to vector<1x32x32xbf16>
    %145 = vector.extract_strided_slice %134 {offsets = [0, 32], sizes = [32, 64], strides = [1, 1]} : vector<32x96xbf16> to vector<32x64xbf16>
    %cst_71 = arith.constant dense<0.000000e+00> : vector<256x64xf32>
    %146 = tpu.matmul %129, %145, %cst_71 {dimension_numbers = #tpu.dot_dimension_numbers<[1], [0], [0], [1], [0, 0, 1, 1], [], []>} : vector<256x32xbf16>, vector<32x64xbf16>, vector<256x64xf32> -> vector<256x64xf32>
    %147 = vector.extract_strided_slice %136 {offsets = [0, 32], sizes = [1, 64], strides = [1, 1]} : vector<1x96xf32> to vector<1x64xf32>
    %148 = vector.broadcast %147 : vector<1x64xf32> to vector<256x64xf32>
    %149 = arith.addf %146, %148 : vector<256x64xf32>
    %150 = vector.extract_strided_slice %149 {offsets = [0, 0], sizes = [256, 32], strides = [1, 1]} : vector<256x64xf32> to vector<256x32xf32>
    %151 = arith.truncf %150 : vector<256x32xf32> to vector<256x32xbf16>
    %152 = vector.shape_cast %151 : vector<256x32xbf16> to vector<1x256x32xbf16>
    %153 = vector.extract_strided_slice %149 {offsets = [0, 32], sizes = [256, 32], strides = [1, 1]} : vector<256x64xf32> to vector<256x32xf32>
    %154 = arith.truncf %153 : vector<256x32xf32> to vector<256x32xbf16>
    %155 = vector.shape_cast %154 : vector<256x32xbf16> to vector<1x256x32xbf16>
    "tpu.trace_start"() <{level = 10 : i32, message = "gqd,gkd->gqk"}> : () -> ()
    %cst_72 = arith.constant dense<0.000000e+00> : vector<1x32x256xf32>
    %156 = tpu.matmul %144, %152, %cst_72 {dimension_numbers = #tpu.dot_dimension_numbers<[2], [2], [1], [1], [0, 0, 0, 1, 1, 1], [0], [0]>} : vector<1x32x32xbf16>, vector<1x256x32xbf16>, vector<1x32x256xf32> -> vector<1x32x256xf32>
    "tpu.trace_stop"() : () -> ()
    %157 = arith.addf %156, %16 : vector<1x32x256xf32>
    %cst_73 = arith.constant dense<0xFF800000> : vector<1x32xf32>
    %158 = vector.multi_reduction <maximumf>, %157, %cst_73 [2] : vector<1x32x256xf32> to vector<1x32xf32>
    %159 = vector.shape_cast %158 : vector<1x32xf32> to vector<1x32x1xf32>
    %160 = vector.broadcast %159 : vector<1x32x1xf32> to vector<1x32x256xf32>
    %161 = arith.subf %157, %160 : vector<1x32x256xf32>
    %162 = math.exp %161 : vector<1x32x256xf32>
    %cst_74 = arith.constant dense<0.000000e+00> : vector<1x32xf32>
    %163 = vector.multi_reduction <add>, %162, %cst_74 [2] : vector<1x32x256xf32> to vector<1x32xf32>
    %164 = vector.shape_cast %163 : vector<1x32xf32> to vector<1x32x1xf32>
    %165 = arith.truncf %162 : vector<1x32x256xf32> to vector<1x32x256xbf16>
    "tpu.trace_start"() <{level = 10 : i32, message = "gqk,gkd->gqd"}> : () -> ()
    %cst_75 = arith.constant dense<0.000000e+00> : vector<1x32x32xf32>
    %166 = tpu.matmul %165, %155, %cst_75 {dimension_numbers = #tpu.dot_dimension_numbers<[2], [1], [1], [2], [0, 0, 0, 1, 1, 2], [0], [0]>} : vector<1x32x256xbf16>, vector<1x256x32xbf16>, vector<1x32x32xf32> -> vector<1x32x32xf32>
    "tpu.trace_stop"() : () -> ()
    %167 = tpu.reciprocal %164 {approx = true} : vector<1x32x1xf32> -> vector<1x32x1xf32>
    %168 = vector.broadcast %167 : vector<1x32x1xf32> to vector<1x32x32xf32>
    %169 = arith.mulf %166, %168 : vector<1x32x32xf32>
    %170 = vector.shape_cast %169 : vector<1x32x32xf32> to vector<32x32xf32>
    %171 = arith.truncf %170 : vector<32x32xf32> to vector<32x32xbf16>
    %c1_76 = arith.constant 1 : index
    %c0_77 = arith.constant 0 : index
    %c0_78 = arith.constant 0 : index
    %172 = vector.load %arg8[%c1_76, %c0_77, %c0_78] : memref<2x32x32xbf16, #tpu.memory_space<vmem>>, vector<1x32x32xbf16>
    %173 = vector.shape_cast %172 : vector<1x32x32xbf16> to vector<32x32xbf16>
    %cst_79 = arith.constant dense<0.000000e+00> : vector<32x32xf32>
    %174 = tpu.matmul %171, %173, %cst_79 {dimension_numbers = #tpu.dot_dimension_numbers<[1], [0], [0], [1], [0, 0, 1, 1], [], []>} : vector<32x32xbf16>, vector<32x32xbf16>, vector<32x32xf32> -> vector<32x32xf32>
    %c1_80 = arith.constant 1 : index
    %c0_81 = arith.constant 0 : index
    %c0_82 = arith.constant 0 : index
    %175 = vector.load %arg9[%c1_80, %c0_81, %c0_82] : memref<2x1x32xf32, #tpu.memory_space<vmem>>, vector<1x1x32xf32>
    %176 = vector.shape_cast %175 : vector<1x1x32xf32> to vector<1x32xf32>
    %177 = vector.broadcast %176 : vector<1x32xf32> to vector<32x32xf32>
    %178 = arith.addf %174, %177 : vector<32x32xf32>
    %179 = arith.addf %132, %178 : vector<32x32xf32>
    %c1_83 = arith.constant 1 : index
    %c0_84 = arith.constant 0 : index
    %c0_85 = arith.constant 0 : index
    %180 = vector.load %arg14[%c1_83, %c0_84, %c0_85] : memref<2x1x32xf32, #tpu.memory_space<vmem>>, vector<1x1x32xf32>
    %181 = vector.shape_cast %180 : vector<1x1x32xf32> to vector<1x32xf32>
    %c1_86 = arith.constant 1 : index
    %c0_87 = arith.constant 0 : index
    %c0_88 = arith.constant 0 : index
    %182 = vector.load %arg15[%c1_86, %c0_87, %c0_88] : memref<2x1x32xf32, #tpu.memory_space<vmem>>, vector<1x1x32xf32>
    %183 = vector.shape_cast %182 : vector<1x1x32xf32> to vector<1x32xf32>
    %cst_89 = arith.constant dense<0.000000e+00> : vector<32xf32>
    %184 = vector.multi_reduction <add>, %179, %cst_89 [1] : vector<32x32xf32> to vector<32xf32>
    %185 = vector.shape_cast %184 : vector<32xf32> to vector<32x1xf32>
    %cst_90 = arith.constant 3.200000e+01 : f32
    %186 = vector.broadcast %cst_90 : f32 to vector<32x1xf32>
    %187 = arith.divf %185, %186 : vector<32x1xf32>
    %188 = vector.broadcast %187 : vector<32x1xf32> to vector<32x32xf32>
    %189 = arith.subf %179, %188 : vector<32x32xf32>
    %190 = arith.mulf %189, %189 : vector<32x32xf32>
    %cst_91 = arith.constant dense<0.000000e+00> : vector<32xf32>
    %191 = vector.multi_reduction <add>, %190, %cst_91 [1] : vector<32x32xf32> to vector<32xf32>
    %192 = vector.shape_cast %191 : vector<32xf32> to vector<32x1xf32>
    %cst_92 = arith.constant 3.200000e+01 : f32
    %193 = vector.broadcast %cst_92 : f32 to vector<32x1xf32>
    %194 = arith.divf %192, %193 : vector<32x1xf32>
    %195 = vector.broadcast %187 : vector<32x1xf32> to vector<32x32xf32>
    %196 = arith.subf %179, %195 : vector<32x32xf32>
    %cst_93 = arith.constant 9.99999974E-6 : f32
    %197 = vector.broadcast %cst_93 : f32 to vector<32x1xf32>
    %198 = arith.addf %194, %197 : vector<32x1xf32>
    %199 = math.rsqrt %198 : vector<32x1xf32>
    %200 = vector.broadcast %199 : vector<32x1xf32> to vector<32x32xf32>
    %201 = arith.mulf %196, %200 : vector<32x32xf32>
    %202 = vector.broadcast %181 : vector<1x32xf32> to vector<32x32xf32>
    %203 = arith.mulf %201, %202 : vector<32x32xf32>
    %204 = vector.broadcast %183 : vector<1x32xf32> to vector<32x32xf32>
    %205 = arith.addf %203, %204 : vector<32x32xf32>
    %206 = arith.truncf %205 : vector<32x32xf32> to vector<32x32xbf16>
    %c1_94 = arith.constant 1 : index
    %c0_95 = arith.constant 0 : index
    %c0_96 = arith.constant 0 : index
    %207 = vector.load %arg10[%c1_94, %c0_95, %c0_96] : memref<2x32x64xbf16, #tpu.memory_space<vmem>>, vector<1x32x64xbf16>
    %208 = vector.shape_cast %207 : vector<1x32x64xbf16> to vector<32x64xbf16>
    %cst_97 = arith.constant dense<0.000000e+00> : vector<32x64xf32>
    %209 = tpu.matmul %206, %208, %cst_97 {dimension_numbers = #tpu.dot_dimension_numbers<[1], [0], [0], [1], [0, 0, 1, 1], [], []>} : vector<32x32xbf16>, vector<32x64xbf16>, vector<32x64xf32> -> vector<32x64xf32>
    %c1_98 = arith.constant 1 : index
    %c0_99 = arith.constant 0 : index
    %c0_100 = arith.constant 0 : index
    %210 = vector.load %arg11[%c1_98, %c0_99, %c0_100] : memref<2x1x64xf32, #tpu.memory_space<vmem>>, vector<1x1x64xf32>
    %211 = vector.shape_cast %210 : vector<1x1x64xf32> to vector<1x64xf32>
    %212 = vector.broadcast %211 : vector<1x64xf32> to vector<32x64xf32>
    %213 = arith.addf %209, %212 : vector<32x64xf32>
    %cst_101 = arith.constant 0.000000e+00 : f32
    %214 = vector.broadcast %cst_101 : f32 to vector<32x64xf32>
    %215 = arith.maximumf %213, %214 : vector<32x64xf32>
    %216 = arith.truncf %215 : vector<32x64xf32> to vector<32x64xbf16>
    %c1_102 = arith.constant 1 : index
    %c0_103 = arith.constant 0 : index
    %c0_104 = arith.constant 0 : index
    %217 = vector.load %arg12[%c1_102, %c0_103, %c0_104] : memref<2x64x32xbf16, #tpu.memory_space<vmem>>, vector<1x64x32xbf16>
    %218 = vector.shape_cast %217 : vector<1x64x32xbf16> to vector<64x32xbf16>
    %cst_105 = arith.constant dense<0.000000e+00> : vector<32x32xf32>
    %219 = tpu.matmul %216, %218, %cst_105 {dimension_numbers = #tpu.dot_dimension_numbers<[1], [0], [0], [1], [0, 0, 1, 1], [], []>} : vector<32x64xbf16>, vector<64x32xbf16>, vector<32x32xf32> -> vector<32x32xf32>
    %c1_106 = arith.constant 1 : index
    %c0_107 = arith.constant 0 : index
    %c0_108 = arith.constant 0 : index
    %220 = vector.load %arg13[%c1_106, %c0_107, %c0_108] : memref<2x1x32xf32, #tpu.memory_space<vmem>>, vector<1x1x32xf32>
    %221 = vector.shape_cast %220 : vector<1x1x32xf32> to vector<1x32xf32>
    %222 = vector.broadcast %221 : vector<1x32xf32> to vector<32x32xf32>
    %223 = arith.addf %219, %222 : vector<32x32xf32>
    %224 = arith.addf %205, %223 : vector<32x32xf32>
    %c1_109 = arith.constant 1 : index
    %c0_110 = arith.constant 0 : index
    %c0_111 = arith.constant 0 : index
    %225 = vector.load %arg16[%c1_109, %c0_110, %c0_111] : memref<2x1x32xf32, #tpu.memory_space<vmem>>, vector<1x1x32xf32>
    %226 = vector.shape_cast %225 : vector<1x1x32xf32> to vector<1x32xf32>
    %c1_112 = arith.constant 1 : index
    %c0_113 = arith.constant 0 : index
    %c0_114 = arith.constant 0 : index
    %227 = vector.load %arg17[%c1_112, %c0_113, %c0_114] : memref<2x1x32xf32, #tpu.memory_space<vmem>>, vector<1x1x32xf32>
    %228 = vector.shape_cast %227 : vector<1x1x32xf32> to vector<1x32xf32>
    %cst_115 = arith.constant dense<0.000000e+00> : vector<32xf32>
    %229 = vector.multi_reduction <add>, %224, %cst_115 [1] : vector<32x32xf32> to vector<32xf32>
    %230 = vector.shape_cast %229 : vector<32xf32> to vector<32x1xf32>
    %cst_116 = arith.constant 3.200000e+01 : f32
    %231 = vector.broadcast %cst_116 : f32 to vector<32x1xf32>
    %232 = arith.divf %230, %231 : vector<32x1xf32>
    %233 = vector.broadcast %232 : vector<32x1xf32> to vector<32x32xf32>
    %234 = arith.subf %224, %233 : vector<32x32xf32>
    %235 = arith.mulf %234, %234 : vector<32x32xf32>
    %cst_117 = arith.constant dense<0.000000e+00> : vector<32xf32>
    %236 = vector.multi_reduction <add>, %235, %cst_117 [1] : vector<32x32xf32> to vector<32xf32>
    %237 = vector.shape_cast %236 : vector<32xf32> to vector<32x1xf32>
    %cst_118 = arith.constant 3.200000e+01 : f32
    %238 = vector.broadcast %cst_118 : f32 to vector<32x1xf32>
    %239 = arith.divf %237, %238 : vector<32x1xf32>
    %240 = vector.broadcast %232 : vector<32x1xf32> to vector<32x32xf32>
    %241 = arith.subf %224, %240 : vector<32x32xf32>
    %cst_119 = arith.constant 9.99999974E-6 : f32
    %242 = vector.broadcast %cst_119 : f32 to vector<32x1xf32>
    %243 = arith.addf %239, %242 : vector<32x1xf32>
    %244 = math.rsqrt %243 : vector<32x1xf32>
    %245 = vector.broadcast %244 : vector<32x1xf32> to vector<32x32xf32>
    %246 = arith.mulf %241, %245 : vector<32x32xf32>
    %247 = vector.broadcast %226 : vector<1x32xf32> to vector<32x32xf32>
    %248 = arith.mulf %246, %247 : vector<32x32xf32>
    %249 = vector.broadcast %228 : vector<1x32xf32> to vector<32x32xf32>
    %250 = arith.addf %248, %249 : vector<32x32xf32>
    %251 = vector.shape_cast %250 : vector<32x32xf32> to vector<32x1x32xf32>
    %c0_120 = arith.constant 0 : index
    %c0_121 = arith.constant 0 : index
    %c0_122 = arith.constant 0 : index
    %252 = vector.load %arg18[%c0_120, %c0_121, %c0_122] : memref<32x1x32xf32, #tpu.memory_space<vmem>>, vector<32x1x32xf32>
    tpu.vector_store %arg18[%c0_120, %c0_121, %c0_122], %251 {strides = array<i32>} : memref<32x1x32xf32, #tpu.memory_space<vmem>>, vector<32x1x32xf32>,
    return
  }
  func.func @transform_0(%arg0: i32) -> (i32, i32, i32) {
    %c0_i32 = arith.constant 0 : i32
    %c0_i32_0 = arith.constant 0 : i32
    %c0_i32_1 = arith.constant 0 : i32
    return %arg0, %c0_i32, %c0_i32_0 : i32, i32, i32
  }
  func.func @transform_1(%arg0: i32) -> (i32, i32, i32) {
    %c0_i32 = arith.constant 0 : i32
    %c0_i32_0 = arith.constant 0 : i32
    %c0_i32_1 = arith.constant 0 : i32
    return %arg0, %c0_i32, %c0_i32_0 : i32, i32, i32
  }
  func.func @transform_2(%arg0: i32) -> (i32, i32) {
    %c0_i32 = arith.constant 0 : i32
    %c0_i32_0 = arith.constant 0 : i32
    %c0_i32_1 = arith.constant 0 : i32
    return %c0_i32, %c0_i32_0 : i32, i32
  }
  func.func @transform_3(%arg0: i32) -> (i32, i32) {
    %c0_i32 = arith.constant 0 : i32
    %c0_i32_0 = arith.constant 0 : i32
    %c0_i32_1 = arith.constant 0 : i32
    return %c0_i32, %c0_i32_0 : i32, i32
  }
  func.func @transform_4(%arg0: i32) -> (i32, i32) {
    %c0_i32 = arith.constant 0 : i32
    %c0_i32_0 = arith.constant 0 : i32
    %c0_i32_1 = arith.constant 0 : i32
    return %c0_i32, %c0_i32_0 : i32, i32
  }
  func.func @transform_5(%arg0: i32) -> (i32, i32, i32) {
    %c0_i32 = arith.constant 0 : i32
    %c0_i32_0 = arith.constant 0 : i32
    %c0_i32_1 = arith.constant 0 : i32
    %c0_i32_2 = arith.constant 0 : i32
    return %c0_i32, %c0_i32_0, %c0_i32_1 : i32, i32, i32
  }
  func.func @transform_6(%arg0: i32) -> (i32, i32, i32) {
    %c0_i32 = arith.constant 0 : i32
    %c0_i32_0 = arith.constant 0 : i32
    %c0_i32_1 = arith.constant 0 : i32
    %c0_i32_2 = arith.constant 0 : i32
    return %c0_i32, %c0_i32_0, %c0_i32_1 : i32, i32, i32
  }
  func.func @transform_7(%arg0: i32) -> (i32, i32, i32) {
    %c0_i32 = arith.constant 0 : i32
    %c0_i32_0 = arith.constant 0 : i32
    %c0_i32_1 = arith.constant 0 : i32
    %c0_i32_2 = arith.constant 0 : i32
    return %c0_i32, %c0_i32_0, %c0_i32_1 : i32, i32, i32
  }
  func.func @transform_8(%arg0: i32) -> (i32, i32, i32) {
    %c0_i32 = arith.constant 0 : i32
    %c0_i32_0 = arith.constant 0 : i32
    %c0_i32_1 = arith.constant 0 : i32
    %c0_i32_2 = arith.constant 0 : i32
    return %c0_i32, %c0_i32_0, %c0_i32_1 : i32, i32, i32
  }
  func.func @transform_9(%arg0: i32) -> (i32, i32, i32) {
    %c0_i32 = arith.constant 0 : i32
    %c0_i32_0 = arith.constant 0 : i32
    %c0_i32_1 = arith.constant 0 : i32
    %c0_i32_2 = arith.constant 0 : i32
    return %c0_i32, %c0_i32_0, %c0_i32_1 : i32, i32, i32
  }
  func.func @transform_10(%arg0: i32) -> (i32, i32, i32) {
    %c0_i32 = arith.constant 0 : i32
    %c0_i32_0 = arith.constant 0 : i32
    %c0_i32_1 = arith.constant 0 : i32
    %c0_i32_2 = arith.constant 0 : i32
    return %c0_i32, %c0_i32_0, %c0_i32_1 : i32, i32, i32
  }
  func.func @transform_11(%arg0: i32) -> (i32, i32, i32) {
    %c0_i32 = arith.constant 0 : i32
    %c0_i32_0 = arith.constant 0 : i32
    %c0_i32_1 = arith.constant 0 : i32
    %c0_i32_2 = arith.constant 0 : i32
    return %c0_i32, %c0_i32_0, %c0_i32_1 : i32, i32, i32
  }
  func.func @transform_12(%arg0: i32) -> (i32, i32, i32) {
    %c0_i32 = arith.constant 0 : i32
    %c0_i32_0 = arith.constant 0 : i32
    %c0_i32_1 = arith.constant 0 : i32
    %c0_i32_2 = arith.constant 0 : i32
    return %c0_i32, %c0_i32_0, %c0_i32_1 : i32, i32, i32
  }
  func.func @transform_13(%arg0: i32) -> (i32, i32, i32) {
    %c0_i32 = arith.constant 0 : i32
    %c0_i32_0 = arith.constant 0 : i32
    %c0_i32_1 = arith.constant 0 : i32
    %c0_i32_2 = arith.constant 0 : i32
    return %c0_i32, %c0_i32_0, %c0_i32_1 : i32, i32, i32
  }
  func.func @transform_14(%arg0: i32) -> (i32, i32, i32) {
    %c0_i32 = arith.constant 0 : i32
    %c0_i32_0 = arith.constant 0 : i32
    %c0_i32_1 = arith.constant 0 : i32
    %c0_i32_2 = arith.constant 0 : i32
    return %c0_i32, %c0_i32_0, %c0_i32_1 : i32, i32, i32
  }
  func.func @transform_15(%arg0: i32) -> (i32, i32, i32) {
    %c0_i32 = arith.constant 0 : i32
    %c0_i32_0 = arith.constant 0 : i32
    %c0_i32_1 = arith.constant 0 : i32
    %c0_i32_2 = arith.constant 0 : i32
    return %c0_i32, %c0_i32_0, %c0_i32_1 : i32, i32, i32
  }
  func.func @transform_16(%arg0: i32) -> (i32, i32, i32) {
    %c0_i32 = arith.constant 0 : i32
    %c0_i32_0 = arith.constant 0 : i32
    %c0_i32_1 = arith.constant 0 : i32
    %c0_i32_2 = arith.constant 0 : i32
    return %c0_i32, %c0_i32_0, %c0_i32_1 : i32, i32, i32
  }
  func.func @transform_17(%arg0: i32) -> (i32, i32, i32) {
    %c0_i32 = arith.constant 0 : i32
    %c0_i32_0 = arith.constant 0 : i32
    %c0_i32_1 = arith.constant 0 : i32
    return %arg0, %c0_i32, %c0_i32_0 : i32, i32, i32
  }
}

</mosaic_0001>

<llo_original>
// kernel: tpu_custom_call.1
$region0: #{tpu_custom_call.1}
  #allocation0 [shape = 'u32[]', space=smem, size = 0x4, offset = 0x4, fixed_abs, tag = 'smem constant byte address 0x4 - core index']
  #allocation1 [shape = 'u32[144,128]{1,0:T(1,128)}', space=vmem, size = 0x12000, scoped, tag = 'internal scratch']
  %s0 = inlined_call_operand.vmem [shape: f32[1,1,256], index: 0, kind: input, shape index: {}]
  %s1 = inlined_call_operand.hbm [shape: bf16[32,8,32], index: 1, kind: input, shape index: {}]
  %s2 = inlined_call_operand.vmem [shape: bf16[8,32], index: 2, kind: input, shape index: {}]
  %s3 = inlined_call_operand.hbm [shape: f32[256,256], index: 3, kind: input, shape index: {}]
  %s4 = inlined_call_operand.vmem [shape: f32[32,256], index: 4, kind: input, shape index: {}]
  %s5 = inlined_call_operand.vmem [shape: bf16[2,32,96], index: 5, kind: input, shape index: {}]
  %s6 = inlined_call_operand.vmem [shape: f32[2,1,96], index: 6, kind: input, shape index: {}]
  %s7 = inlined_call_operand.hbm [shape: bf16[2,32,32], index: 7, kind: input, shape index: {}]
  %s8 = inlined_call_operand.hbm [shape: f32[2,1,32], index: 8, kind: input, shape index: {}]
  %s9 = inlined_call_operand.hbm [shape: bf16[2,32,64], index: 9, kind: input, shape index: {}]
  %s10 = inlined_call_operand.hbm [shape: f32[2,1,64], index: 10, kind: input, shape index: {}]
  %s11 = inlined_call_operand.vmem [shape: bf16[2,64,32], index: 11, kind: input, shape index: {}]
  %s12 = inlined_call_operand.vmem [shape: f32[2,1,32], index: 12, kind: input, shape index: {}]
  %s13 = inlined_call_operand.vmem [shape: f32[2,1,32], index: 13, kind: input, shape index: {}]
  %s14 = inlined_call_operand.vmem [shape: f32[2,1,32], index: 14, kind: input, shape index: {}]
  %s15 = inlined_call_operand.vmem [shape: f32[2,1,32], index: 15, kind: input, shape index: {}]
  %s16 = inlined_call_operand.vmem [shape: f32[2,1,32], index: 16, kind: input, shape index: {}]
  %s17 = inlined_call_operand.hbm [shape: f32[32,1,32], index: 17, kind: output, shape index: {}]
  %s18 = sld [smem:[#allocation0]]
  $region102: #{tpu_custom_call.1} parent=0
    _
  %s20 = ssub.s32 1, %s18
  %s21 = scalar_select 0, %s20, %s18
  $region1: #{tpu_custom_call.1} parent=0
    #allocation2 [shape = 'u8[65536]{0}', space=vmem, size = 0x10000, scoped, tag = 'input window, operand 1, single buffered']
    #allocation3 [shape = 's32[1]{0}', space=sflag, size = 0x4, scoped, tag = 'scoped memory for tpu_custom_call.1']
    #allocation4 [shape = 's32[1]{0}', space=sflag, size = 0x4, scoped, tag = 'scoped memory for tpu_custom_call.1']
    #allocation5 [shape = 'u8[262144]{0}', space=vmem, size = 0x40000, scoped, tag = 'input window, operand 3, single buffered']
    #allocation6 [shape = 's32[1]{0}', space=sflag, size = 0x4, scoped, tag = 'scoped memory for tpu_custom_call.1']
    #allocation7 [shape = 'u8[16384]{0}', space=vmem, size = 0x4000, scoped, tag = 'input window, operand 7, single buffered']
    #allocation8 [shape = 'u8[1024]{0}', space=vmem, size = 0x400, scoped, tag = 'input window, operand 8, single buffered']
    #allocation9 [shape = 's32[1]{0}', space=sflag, size = 0x4, scoped, tag = 'scoped memory for tpu_custom_call.1']
    #allocation10 [shape = 'u8[16384]{0}', space=vmem, size = 0x4000, scoped, tag = 'input window, operand 9, single buffered']
    #allocation11 [shape = 'u8[1024]{0}', space=vmem, size = 0x400, scoped, tag = 'input window, operand 10, single buffered']
    #allocation12 [shape = 's32[1]{0}', space=sflag, size = 0x4, scoped, tag = 'scoped memory for tpu_custom_call.1']
    #allocation13 [shape = 'u8[16384]{0}', space=vmem, size = 0x4000, scoped, tag = 'output window, operand 0, single buffered']
    %22 = vsyncpa [#allocation3], 0
    %23 = vsyncpa [#allocation6], 0
    %24 = vsyncpa [#allocation9], 0
    %25 = vsyncpa [#allocation12], 0
    %26 = vsyncpa [#allocation4], 0
    // Predicated region
    $region2: #{tpu_custom_call.1} parent=1 // pred_check
      _
    $region3: #{tpu_custom_call.1} parent=1 // pred_check_branch
      %28 = sbr.rel (0) target = $region5
    $region4: #{tpu_custom_call.1} parent=1 // pred_region
      _
    $region5: #{tpu_custom_call.1} parent=1 // pred_fallthru
      _
    // Predicated region
    $region6: #{tpu_custom_call.1} parent=1 // pred_check
      _
    $region7: #{tpu_custom_call.1} parent=1 // pred_check_branch
      %30 = sbr.rel (0) target = $region9
    $region8: #{tpu_custom_call.1} parent=1 // pred_region
      %s32 = ssub.s32 2048, 2048
      %33 = vsyncadd [#allocation3], %s32
      %s34 = sshll.u32 [#allocation2], 4
      %s35 = int_to_ptr.vmem [resolvable:$true] %s34
      %40 = dma.hbm_to_vmem [thread:$0]  %s1, 2048, %s35, [#allocation3], 64, 64, 4
    $region9: #{tpu_custom_call.1} parent=1 // pred_fallthru
      _
    // Predicated region
    $region10: #{tpu_custom_call.1} parent=1 // pred_check
      _
    $region11: #{tpu_custom_call.1} parent=1 // pred_check_branch
      %42 = sbr.rel (0) target = $region13
    $region12: #{tpu_custom_call.1} parent=1 // pred_region
      _
    $region13: #{tpu_custom_call.1} parent=1 // pred_fallthru
      _
    // Predicated region
    $region14: #{tpu_custom_call.1} parent=1 // pred_check
      _
    $region15: #{tpu_custom_call.1} parent=1 // pred_check_branch
      %44 = sbr.rel (0) target = $region17
    $region16: #{tpu_custom_call.1} parent=1 // pred_region
      %s46 = ssub.s32 8192, 8192
      %47 = vsyncadd [#allocation6], %s46
      %s48 = sshll.u32 [#allocation5], 4
      %s49 = int_to_ptr.vmem [resolvable:$true] %s48
      %54 = dma.hbm_to_vmem [thread:$0]  %s3, 8192, %s49, [#allocation6], 256, 256, 16
    $region17: #{tpu_custom_call.1} parent=1 // pred_fallthru
      _
    // Predicated region
    $region18: #{tpu_custom_call.1} parent=1 // pred_check
      _
    $region19: #{tpu_custom_call.1} parent=1 // pred_check_branch
      %56 = sbr.rel (0) target = $region21
    $region20: #{tpu_custom_call.1} parent=1 // pred_region
      _
    $region21: #{tpu_custom_call.1} parent=1 // pred_fallthru
      _
    // Predicated region
    $region22: #{tpu_custom_call.1} parent=1 // pred_check
      _
    $region23: #{tpu_custom_call.1} parent=1 // pred_check_branch
      %58 = sbr.rel (0) target = $region25
    $region24: #{tpu_custom_call.1} parent=1 // pred_region
      _
    $region25: #{tpu_custom_call.1} parent=1 // pred_fallthru
      _
    // Predicated region
    $region26: #{tpu_custom_call.1} parent=1 // pred_check
      _
    $region27: #{tpu_custom_call.1} parent=1 // pred_check_branch
      %60 = sbr.rel (0) target = $region29
    $region28: #{tpu_custom_call.1} parent=1 // pred_region
      _
    $region29: #{tpu_custom_call.1} parent=1 // pred_fallthru
      _
    // Predicated region
    $region30: #{tpu_custom_call.1} parent=1 // pred_check
      _
    $region31: #{tpu_custom_call.1} parent=1 // pred_check_branch
      %62 = sbr.rel (0) target = $region33
    $region32: #{tpu_custom_call.1} parent=1 // pred_region
      %s64 = ssub.s32 512, 512
      %65 = vsyncadd [#allocation6], %s64
      %s66 = sshll.u32 [#allocation7], 4
      %s67 = int_to_ptr.vmem [resolvable:$true] %s66
      %72 = dma.hbm_to_vmem [thread:$0]  %s7, 512, %s67, [#allocation6], 64, 64, 4
    $region33: #{tpu_custom_call.1} parent=1 // pred_fallthru
      _
    // Predicated region
    $region34: #{tpu_custom_call.1} parent=1 // pred_check
      _
    $region35: #{tpu_custom_call.1} parent=1 // pred_check_branch
      %74 = sbr.rel (0) target = $region37
    $region36: #{tpu_custom_call.1} parent=1 // pred_region
      %s76 = ssub.s32 32, 32
      %77 = vsyncadd [#allocation9], %s76
      %s78 = sshll.u32 [#allocation8], 4
      %s79 = int_to_ptr.vmem [resolvable:$true] %s78
      %84 = dma.hbm_to_vmem [thread:$0]  %s8, 32, %s79, [#allocation9], 16, 16, 1
    $region37: #{tpu_custom_call.1} parent=1 // pred_fallthru
      _
    // Predicated region
    $region38: #{tpu_custom_call.1} parent=1 // pred_check
      _
    $region39: #{tpu_custom_call.1} parent=1 // pred_check_branch
      %86 = sbr.rel (0) target = $region41
    $region40: #{tpu_custom_call.1} parent=1 // pred_region
      %s88 = ssub.s32 512, 512
      %89 = vsyncadd [#allocation9], %s88
      %s90 = sshll.u32 [#allocation10], 4
      %s91 = int_to_ptr.vmem [resolvable:$true] %s90
      %96 = dma.hbm_to_vmem [thread:$0]  %s9, 512, %s91, [#allocation9], 64, 64, 4
    $region41: #{tpu_custom_call.1} parent=1 // pred_fallthru
      _
    // Predicated region
    $region42: #{tpu_custom_call.1} parent=1 // pred_check
      _
    $region43: #{tpu_custom_call.1} parent=1 // pred_check_branch
      %98 = sbr.rel (0) target = $region45
    $region44: #{tpu_custom_call.1} parent=1 // pred_region
      %s100 = ssub.s32 32, 32
      %101 = vsyncadd [#allocation12], %s100
      %s102 = sshll.u32 [#allocation11], 4
      %s103 = int_to_ptr.vmem [resolvable:$true] %s102
      %108 = dma.hbm_to_vmem [thread:$0]  %s10, 32, %s103, [#allocation12], 16, 16, 1
    $region45: #{tpu_custom_call.1} parent=1 // pred_fallthru
      _
    // Predicated region
    $region46: #{tpu_custom_call.1} parent=1 // pred_check
      _
    $region47: #{tpu_custom_call.1} parent=1 // pred_check_branch
      %110 = sbr.rel (0) target = $region49
    $region48: #{tpu_custom_call.1} parent=1 // pred_region
      _
    $region49: #{tpu_custom_call.1} parent=1 // pred_fallthru
      _
    // Predicated region
    $region50: #{tpu_custom_call.1} parent=1 // pred_check
      _
    $region51: #{tpu_custom_call.1} parent=1 // pred_check_branch
      %112 = sbr.rel (0) target = $region53
    $region52: #{tpu_custom_call.1} parent=1 // pred_region
      _
    $region53: #{tpu_custom_call.1} parent=1 // pred_fallthru
      _
    // Predicated region
    $region54: #{tpu_custom_call.1} parent=1 // pred_check
      _
    $region55: #{tpu_custom_call.1} parent=1 // pred_check_branch
      %114 = sbr.rel (0) target = $region57
    $region56: #{tpu_custom_call.1} parent=1 // pred_region
      _
    $region57: #{tpu_custom_call.1} parent=1 // pred_fallthru
      _
    // Predicated region
    $region58: #{tpu_custom_call.1} parent=1 // pred_check
      _
    $region59: #{tpu_custom_call.1} parent=1 // pred_check_branch
      %116 = sbr.rel (0) target = $region61
    $region60: #{tpu_custom_call.1} parent=1 // pred_region
      _
    $region61: #{tpu_custom_call.1} parent=1 // pred_fallthru
      _
    // Predicated region
    $region62: #{tpu_custom_call.1} parent=1 // pred_check
      _
    $region63: #{tpu_custom_call.1} parent=1 // pred_check_branch
      %118 = sbr.rel (0) target = $region65
    $region64: #{tpu_custom_call.1} parent=1 // pred_region
      _
    $region65: #{tpu_custom_call.1} parent=1 // pred_fallthru
      _
    // Predicated region
    $region66: #{tpu_custom_call.1} parent=1 // pred_check
      _
    $region67: #{tpu_custom_call.1} parent=1 // pred_check_branch
      %120 = sbr.rel (0) target = $region69
    $region68: #{tpu_custom_call.1} parent=1 // pred_region
      _
    $region69: #{tpu_custom_call.1} parent=1 // pred_fallthru
      _
    // Predicated region
    $region70: #{tpu_custom_call.1} parent=1 // pred_check
      _
    $region71: #{tpu_custom_call.1} parent=1 // pred_check_branch
      %122 = sbr.rel (0) target = $region73
    $region72: #{tpu_custom_call.1} parent=1 // pred_region
      %123 = dma.done [#allocation3], 2048
    $region73: #{tpu_custom_call.1} parent=1 // pred_fallthru
      _
    // Predicated region
    $region74: #{tpu_custom_call.1} parent=1 // pred_check
      _
    $region75: #{tpu_custom_call.1} parent=1 // pred_check_branch
      %125 = sbr.rel (0) target = $region77
    $region76: #{tpu_custom_call.1} parent=1 // pred_region
      %126 = dma.done [#allocation6], 8192
    $region77: #{tpu_custom_call.1} parent=1 // pred_fallthru
      _
    // Predicated region
    $region78: #{tpu_custom_call.1} parent=1 // pred_check
      _
    $region79: #{tpu_custom_call.1} parent=1 // pred_check_branch
      %128 = sbr.rel (0) target = $region81
    $region80: #{tpu_custom_call.1} parent=1 // pred_region
      %129 = dma.done [#allocation6], 512
    $region81: #{tpu_custom_call.1} parent=1 // pred_fallthru
      _
    // Predicated region
    $region82: #{tpu_custom_call.1} parent=1 // pred_check
      _
    $region83: #{tpu_custom_call.1} parent=1 // pred_check_branch
      %131 = sbr.rel (0) target = $region85
    $region84: #{tpu_custom_call.1} parent=1 // pred_region
      %132 = dma.done [#allocation9], 32
    $region85: #{tpu_custom_call.1} parent=1 // pred_fallthru
      _
    // Predicated region
    $region86: #{tpu_custom_call.1} parent=1 // pred_check
      _
    $region87: #{tpu_custom_call.1} parent=1 // pred_check_branch
      %134 = sbr.rel (0) target = $region89
    $region88: #{tpu_custom_call.1} parent=1 // pred_region
      %135 = dma.done [#allocation9], 512
    $region89: #{tpu_custom_call.1} parent=1 // pred_fallthru
      _
    // Predicated region
    $region90: #{tpu_custom_call.1} parent=1 // pred_check
      _
    $region91: #{tpu_custom_call.1} parent=1 // pred_check_branch
      %137 = sbr.rel (0) target = $region93
    $region92: #{tpu_custom_call.1} parent=1 // pred_region
      %138 = dma.done [#allocation12], 32
    $region93: #{tpu_custom_call.1} parent=1 // pred_fallthru
      _
    %v140 = vld [vmem:[#allocation2] sm:$0xf]
    %v141 = vld [vmem:[#allocation2 + $0x4] sm:$0xf]
    %v142 = vld [vmem:[#allocation2 + $0x8] sm:$0xf]
    %v143 = vld [vmem:[#allocation2 + $0xc] sm:$0xf]
    %v144 = vld [vmem:[#allocation2 + $0x10] sm:$0xf]
    %v145 = vld [vmem:[#allocation2 + $0x14] sm:$0xf]
    %v146 = vld [vmem:[#allocation2 + $0x18] sm:$0xf]
    %v147 = vld [vmem:[#allocation2 + $0x1c] sm:$0xf]
    %v148 = vld [vmem:[#allocation2 + $0x20] sm:$0xf]
    %v149 = vld [vmem:[#allocation2 + $0x24] sm:$0xf]
    %v150 = vld [vmem:[#allocation2 + $0x28] sm:$0xf]
    %v151 = vld [vmem:[#allocation2 + $0x2c] sm:$0xf]
    %v152 = vld [vmem:[#allocation2 + $0x30] sm:$0xf]
    %v153 = vld [vmem:[#allocation2 + $0x34] sm:$0xf]
    %v154 = vld [vmem:[#allocation2 + $0x38] sm:$0xf]
    %v155 = vld [vmem:[#allocation2 + $0x3c] sm:$0xf]
    %v156 = vld [vmem:[#allocation2 + $0x40] sm:$0xf]
    %v157 = vld [vmem:[#allocation2 + $0x44] sm:$0xf]
    %v158 = vld [vmem:[#allocation2 + $0x48] sm:$0xf]
    %v159 = vld [vmem:[#allocation2 + $0x4c] sm:$0xf]
    %v160 = vld [vmem:[#allocation2 + $0x50] sm:$0xf]
    %v161 = vld [vmem:[#allocation2 + $0x54] sm:$0xf]
    %v162 = vld [vmem:[#allocation2 + $0x58] sm:$0xf]
    %v163 = vld [vmem:[#allocation2 + $0x5c] sm:$0xf]
    %v164 = vld [vmem:[#allocation2 + $0x60] sm:$0xf]
    %v165 = vld [vmem:[#allocation2 + $0x64] sm:$0xf]
    %v166 = vld [vmem:[#allocation2 + $0x68] sm:$0xf]
    %v167 = vld [vmem:[#allocation2 + $0x6c] sm:$0xf]
    %v168 = vld [vmem:[#allocation2 + $0x70] sm:$0xf]
    %v169 = vld [vmem:[#allocation2 + $0x74] sm:$0xf]
    %v170 = vld [vmem:[#allocation2 + $0x78] sm:$0xf]
    %v171 = vld [vmem:[#allocation2 + $0x7c] sm:$0xf]
    %v172 = vunpack.c.l.bf16 %v140
    %v173 = vunpack.c.l.bf16 %v141
    %v174 = vunpack.c.l.bf16 %v142
    %v175 = vunpack.c.l.bf16 %v143
    %v176 = vunpack.c.l.bf16 %v144
    %v177 = vunpack.c.l.bf16 %v145
    %v178 = vunpack.c.l.bf16 %v146
    %v179 = vunpack.c.l.bf16 %v147
    %v180 = vunpack.c.l.bf16 %v148
    %v181 = vunpack.c.l.bf16 %v149
    %v182 = vunpack.c.l.bf16 %v150
    %v183 = vunpack.c.l.bf16 %v151
    %v184 = vunpack.c.l.bf16 %v152
    %v185 = vunpack.c.l.bf16 %v153
    %v186 = vunpack.c.l.bf16 %v154
    %v187 = vunpack.c.l.bf16 %v155
    %v188 = vunpack.c.l.bf16 %v156
    %v189 = vunpack.c.l.bf16 %v157
    %v190 = vunpack.c.l.bf16 %v158
    %v191 = vunpack.c.l.bf16 %v159
    %v192 = vunpack.c.l.bf16 %v160
    %v193 = vunpack.c.l.bf16 %v161
    %v194 = vunpack.c.l.bf16 %v162
    %v195 = vunpack.c.l.bf16 %v163
    %v196 = vunpack.c.l.bf16 %v164
    %v197 = vunpack.c.l.bf16 %v165
    %v198 = vunpack.c.l.bf16 %v166
    %v199 = vunpack.c.l.bf16 %v167
    %v200 = vunpack.c.l.bf16 %v168
    %v201 = vunpack.c.l.bf16 %v169
    %v202 = vunpack.c.l.bf16 %v170
    %v203 = vunpack.c.l.bf16 %v171
    %v204 = vld [vmem:[%s2] sm:$0xf]
    %v205 = vunpack.c.l.bf16 %v204
    %v206 = vadd.f32 %v172, %v205
    %v207 = vadd.f32 %v173, %v205
    %v208 = vadd.f32 %v174, %v205
    %v209 = vadd.f32 %v175, %v205
    %v210 = vadd.f32 %v176, %v205
    %v211 = vadd.f32 %v177, %v205
    %v212 = vadd.f32 %v178, %v205
    %v213 = vadd.f32 %v179, %v205
    %v214 = vadd.f32 %v180, %v205
    %v215 = vadd.f32 %v181, %v205
    %v216 = vadd.f32 %v182, %v205
    %v217 = vadd.f32 %v183, %v205
    %v218 = vadd.f32 %v184, %v205
    %v219 = vadd.f32 %v185, %v205
    %v220 = vadd.f32 %v186, %v205
    %v221 = vadd.f32 %v187, %v205
    %v222 = vadd.f32 %v188, %v205
    %v223 = vadd.f32 %v189, %v205
    %v224 = vadd.f32 %v190, %v205
    %v225 = vadd.f32 %v191, %v205
    %v226 = vadd.f32 %v192, %v205
    %v227 = vadd.f32 %v193, %v205
    %v228 = vadd.f32 %v194, %v205
    %v229 = vadd.f32 %v195, %v205
    %v230 = vadd.f32 %v196, %v205
    %v231 = vadd.f32 %v197, %v205
    %v232 = vadd.f32 %v198, %v205
    %v233 = vadd.f32 %v199, %v205
    %v234 = vadd.f32 %v200, %v205
    %v235 = vadd.f32 %v201, %v205
    %v236 = vadd.f32 %v202, %v205
    %v237 = vadd.f32 %v203, %v205
    %v238 = vld [vmem:[%s0] sm:$0x3]
    %v239 = vld [vmem:[#allocation5] sm:$0xff]
    %v240 = vld [vmem:[#allocation5 + $0x8] sm:$0xff]
    %v241 = vld [vmem:[#allocation5 + $0x10] sm:$0xff]
    %v242 = vld [vmem:[#allocation5 + $0x18] sm:$0xff]
    %v243 = vld [vmem:[#allocation5 + $0x20] sm:$0xff]
    %v244 = vld [vmem:[#allocation5 + $0x28] sm:$0xff]
    %v245 = vld [vmem:[#allocation5 + $0x30] sm:$0xff]
    %v246 = vld [vmem:[#allocation5 + $0x38] sm:$0xff]
    %v247 = vld [vmem:[#allocation5 + $0x40] sm:$0xff]
    %v248 = vld [vmem:[#allocation5 + $0x48] sm:$0xff]
    %v249 = vld [vmem:[#allocation5 + $0x50] sm:$0xff]
    %v250 = vld [vmem:[#allocation5 + $0x58] sm:$0xff]
    %v251 = vld [vmem:[#allocation5 + $0x60] sm:$0xff]
    %v252 = vld [vmem:[#allocation5 + $0x68] sm:$0xff]
    %v253 = vld [vmem:[#allocation5 + $0x70] sm:$0xff]
    %v254 = vld [vmem:[#allocation5 + $0x78] sm:$0xff]
    %v255 = vld [vmem:[#allocation5 + $0x80] sm:$0xff]
    %v256 = vld [vmem:[#allocation5 + $0x88] sm:$0xff]
    %v257 = vld [vmem:[#allocation5 + $0x90] sm:$0xff]
    %v258 = vld [vmem:[#allocation5 + $0x98] sm:$0xff]
    %v259 = vld [vmem:[#allocation5 + $0xa0] sm:$0xff]
    %v260 = vld [vmem:[#allocation5 + $0xa8] sm:$0xff]
    %v261 = vld [vmem:[#allocation5 + $0xb0] sm:$0xff]
    %v262 = vld [vmem:[#allocation5 + $0xb8] sm:$0xff]
    %v263 = vld [vmem:[#allocation5 + $0xc0] sm:$0xff]
    %v264 = vld [vmem:[#allocation5 + $0xc8] sm:$0xff]
    %v265 = vld [vmem:[#allocation5 + $0xd0] sm:$0xff]
    %v266 = vld [vmem:[#allocation5 + $0xd8] sm:$0xff]
    %v267 = vld [vmem:[#allocation5 + $0xe0] sm:$0xff]
    %v268 = vld [vmem:[#allocation5 + $0xe8] sm:$0xff]
    %v269 = vld [vmem:[#allocation5 + $0xf0] sm:$0xff]
    %v270 = vld [vmem:[#allocation5 + $0xf8] sm:$0xff]
    %v271 = vld [vmem:[#allocation5 + $0x100] sm:$0xff]
    %v272 = vld [vmem:[#allocation5 + $0x108] sm:$0xff]
    %v273 = vld [vmem:[#allocation5 + $0x110] sm:$0xff]
    %v274 = vld [vmem:[#allocation5 + $0x118] sm:$0xff]
    %v275 = vld [vmem:[#allocation5 + $0x120] sm:$0xff]
    %v276 = vld [vmem:[#allocation5 + $0x128] sm:$0xff]
    %v277 = vld [vmem:[#allocation5 + $0x130] sm:$0xff]
    %v278 = vld [vmem:[#allocation5 + $0x138] sm:$0xff]
    %v279 = vld [vmem:[#allocation5 + $0x140] sm:$0xff]
    %v280 = vld [vmem:[#allocation5 + $0x148] sm:$0xff]
    %v281 = vld [vmem:[#allocation5 + $0x150] sm:$0xff]
    %v282 = vld [vmem:[#allocation5 + $0x158] sm:$0xff]
    %v283 = vld [vmem:[#allocation5 + $0x160] sm:$0xff]
    %v284 = vld [vmem:[#allocation5 + $0x168] sm:$0xff]
    %v285 = vld [vmem:[#allocation5 + $0x170] sm:$0xff]
    %v286 = vld [vmem:[#allocation5 + $0x178] sm:$0xff]
    %v287 = vld [vmem:[#allocation5 + $0x180] sm:$0xff]
    %v288 = vld [vmem:[#allocation5 + $0x188] sm:$0xff]
    %v289 = vld [vmem:[#allocation5 + $0x190] sm:$0xff]
    %v290 = vld [vmem:[#allocation5 + $0x198] sm:$0xff]
    %v291 = vld [vmem:[#allocation5 + $0x1a0] sm:$0xff]
    %v292 = vld [vmem:[#allocation5 + $0x1a8] sm:$0xff]
    %v293 = vld [vmem:[#allocation5 + $0x1b0] sm:$0xff]
    %v294 = vld [vmem:[#allocation5 + $0x1b8] sm:$0xff]
    %v295 = vld [vmem:[#allocation5 + $0x1c0] sm:$0xff]
    %v296 = vld [vmem:[#allocation5 + $0x1c8] sm:$0xff]
    %v297 = vld [vmem:[#allocation5 + $0x1d0] sm:$0xff]
    %v298 = vld [vmem:[#allocation5 + $0x1d8] sm:$0xff]
    %v299 = vld [vmem:[#allocation5 + $0x1e0] sm:$0xff]
    %v300 = vld [vmem:[#allocation5 + $0x1e8] sm:$0xff]
    %v301 = vld [vmem:[#allocation5 + $0x1f0] sm:$0xff]
    %v302 = vld [vmem:[#allocation5 + $0x1f8] sm:$0xff]
    %v304 = vlaneseq
    %v305 = vshrl.u32 %v304, 7
    %v306 = vsub.s32 0, %v305
    %v307 = vrot.slane %v238, %v306
    %v308 = vlaneseq
    %v309 = vshrl.u32 %v308, 7
    %v310 = vsub.s32 1, %v309
    %v311 = vrot.slane %v238, %v310
    %v314 = vadd.f32 %v239, %v307
    %v315 = vadd.f32 %v240, %v311
    %v316 = vadd.f32 %v241, %v307
    %v317 = vadd.f32 %v242, %v311
    %v318 = vadd.f32 %v243, %v307
    %v319 = vadd.f32 %v244, %v311
    %v320 = vadd.f32 %v245, %v307
    %v321 = vadd.f32 %v246, %v311
    %v322 = vadd.f32 %v247, %v307
    %v323 = vadd.f32 %v248, %v311
    %v324 = vadd.f32 %v249, %v307
    %v325 = vadd.f32 %v250, %v311
    %v326 = vadd.f32 %v251, %v307
    %v327 = vadd.f32 %v252, %v311
    %v328 = vadd.f32 %v253, %v307
    %v329 = vadd.f32 %v254, %v311
    %v330 = vadd.f32 %v255, %v307
    %v331 = vadd.f32 %v256, %v311
    %v332 = vadd.f32 %v257, %v307
    %v333 = vadd.f32 %v258, %v311
    %v334 = vadd.f32 %v259, %v307
    %v335 = vadd.f32 %v260, %v311
    %v336 = vadd.f32 %v261, %v307
    %v337 = vadd.f32 %v262, %v311
    %v338 = vadd.f32 %v263, %v307
    %v339 = vadd.f32 %v264, %v311
    %v340 = vadd.f32 %v265, %v307
    %v341 = vadd.f32 %v266, %v311
    %v342 = vadd.f32 %v267, %v307
    %v343 = vadd.f32 %v268, %v311
    %v344 = vadd.f32 %v269, %v307
    %v345 = vadd.f32 %v270, %v311
    %v346 = vadd.f32 %v271, %v307
    %v347 = vadd.f32 %v272, %v311
    %v348 = vadd.f32 %v273, %v307
    %v349 = vadd.f32 %v274, %v311
    %v350 = vadd.f32 %v275, %v307
    %v351 = vadd.f32 %v276, %v311
    %v352 = vadd.f32 %v277, %v307
    %v353 = vadd.f32 %v278, %v311
    %v354 = vadd.f32 %v279, %v307
    %v355 = vadd.f32 %v280, %v311
    %v356 = vadd.f32 %v281, %v307
    %v357 = vadd.f32 %v282, %v311
    %v358 = vadd.f32 %v283, %v307
    %v359 = vadd.f32 %v284, %v311
    %v360 = vadd.f32 %v285, %v307
    %v361 = vadd.f32 %v286, %v311
    %v362 = vadd.f32 %v287, %v307
    %v363 = vadd.f32 %v288, %v311
    %v364 = vadd.f32 %v289, %v307
    %v365 = vadd.f32 %v290, %v311
    %v366 = vadd.f32 %v291, %v307
    %v367 = vadd.f32 %v292, %v311
    %v368 = vadd.f32 %v293, %v307
    %v369 = vadd.f32 %v294, %v311
    %v370 = vadd.f32 %v295, %v307
    %v371 = vadd.f32 %v296, %v311
    %v372 = vadd.f32 %v297, %v307
    %v373 = vadd.f32 %v298, %v311
    %v374 = vadd.f32 %v299, %v307
    %v375 = vadd.f32 %v300, %v311
    %v376 = vadd.f32 %v301, %v307
    %v377 = vadd.f32 %v302, %v311
    %v378 = vld [vmem:[%s4] sm:$0xff]
    %v379 = vld [vmem:[%s4 + $0x8] sm:$0xff]
    %v380 = vld [vmem:[%s4 + $0x10] sm:$0xff]
    %v381 = vld [vmem:[%s4 + $0x18] sm:$0xff]
    %v382 = vld [vmem:[%s4 + $0x20] sm:$0xff]
    %v383 = vld [vmem:[%s4 + $0x28] sm:$0xff]
    %v384 = vld [vmem:[%s4 + $0x30] sm:$0xff]
    %v385 = vld [vmem:[%s4 + $0x38] sm:$0xff]
    %v386 = vadd.f32 %v378, %v307
    %v387 = vadd.f32 %v379, %v311
    %v388 = vadd.f32 %v380, %v307
    %v389 = vadd.f32 %v381, %v311
    %v390 = vadd.f32 %v382, %v307
    %v391 = vadd.f32 %v383, %v311
    %v392 = vadd.f32 %v384, %v307
    %v393 = vadd.f32 %v385, %v311
    %v394 = vpack.c.bf16 %v207, %v206
    %v395 = vpack.c.bf16 %v209, %v208
    %v396 = vpack.c.bf16 %v211, %v210
    %v397 = vpack.c.bf16 %v213, %v212
    %v398 = vpack.c.bf16 %v215, %v214
    %v399 = vpack.c.bf16 %v217, %v216
    %v400 = vpack.c.bf16 %v219, %v218
    %v401 = vpack.c.bf16 %v221, %v220
    %v402 = vpack.c.bf16 %v223, %v222
    %v403 = vpack.c.bf16 %v225, %v224
    %v404 = vpack.c.bf16 %v227, %v226
    %v405 = vpack.c.bf16 %v229, %v228
    %v406 = vpack.c.bf16 %v231, %v230
    %v407 = vpack.c.bf16 %v233, %v232
    %v408 = vpack.c.bf16 %v235, %v234
    %v409 = vpack.c.bf16 %v237, %v236
    %v410 = vld [vmem:[%s5] sm:$0xf]
    %v411 = vld [vmem:[%s5 + $0x4] sm:$0xf]
    %v412 = vld [vmem:[%s5 + $0x8] sm:$0xf]
    %v413 = vld [vmem:[%s5 + $0xc] sm:$0xf]
    %v414 = vld [vmem:[%s6] sm:$0x1]
    %v416 = vlaneseq
    %v417 = vshrl.u32 %v416, 7
    %v418 = vsub.s32 0, %v417
    %v419 = vrot.slane %v414, %v418
    %v425 = vunpack.c.l.b16 %v410
    %v426 = vunpack.c.l.b16 %v411
    %v427 = vunpack.c.l.b16 %v412
    %v428 = vunpack.c.l.b16 %v413
    %v429 = vpack.c.b16 %v426, %v425
    %v430 = vpack.c.b16 %v428, %v427
    %vm433 = vcmask 261120
    %v435 = vsel %vm433, %v394, 0
    %v438 = vsel %vm433, %v395, 0
    %v441 = vsel %vm433, %v396, 0
    %v444 = vsel %vm433, %v397, 0
    %v447 = vsel %vm433, %v398, 0
    %v450 = vsel %vm433, %v399, 0
    %v453 = vsel %vm433, %v400, 0
    %v456 = vsel %vm433, %v401, 0
    %v459 = vsel %vm433, %v402, 0
    %v462 = vsel %vm433, %v403, 0
    %v465 = vsel %vm433, %v404, 0
    %v468 = vsel %vm433, %v405, 0
    %v471 = vsel %vm433, %v406, 0
    %v474 = vsel %vm433, %v407, 0
    %v477 = vsel %vm433, %v408, 0
    %v480 = vsel %vm433, %v409, 0
    %482 = vmatprep.subr.bf16.mxu0 0
    %483 = vmatpush1.bf16.msra.mxu0 %v429
    %484 = vmatprep.subr.bf16.mxu0 0
    %485 = vmatpush1.bf16.msra.mxu0 %v430
    %486 = vmatprep.subr.bf16.mxu0 0
    %487 = vmatpush1.bf16.msra.mxu0 0
    %488 = vmatprep.subr.bf16.mxu0 0
    %489 = vmatpush1.bf16.msra.mxu0 0
    %490 = vmatprep.subr.bf16.mxu0 0
    %491 = vmatpush1.bf16.msra.mxu0 0
    %492 = vmatprep.subr.bf16.mxu0 0
    %493 = vmatpush1.bf16.msra.mxu0 0
    %494 = vmatprep.subr.bf16.mxu0 0
    %495 = vmatpush1.bf16.msra.mxu0 0
    %496 = vmatprep.subr.bf16.mxu0 0
    %497 = vmatpush1.bf16.msra.mxu0 0
    %498 = vmatprep.subr.bf16.mxu0 0
    %499 = vmatpush1.bf16.msra.mxu0 0
    %500 = vmatprep.subr.bf16.mxu0 0
    %501 = vmatpush1.bf16.msra.mxu0 0
    %502 = vmatprep.subr.bf16.mxu0 0
    %503 = vmatpush1.bf16.msra.mxu0 0
    %504 = vmatprep.subr.bf16.mxu0 0
    %505 = vmatpush1.bf16.msra.mxu0 0
    %506 = vmatprep.subr.bf16.mxu0 0
    %507 = vmatpush1.bf16.msra.mxu0 0
    %508 = vmatprep.subr.bf16.mxu0 0
    %509 = vmatpush1.bf16.msra.mxu0 0
    %510 = vmatprep.subr.bf16.mxu0 0
    %511 = vmatpush1.bf16.msra.mxu0 0
    %512 = vmatprep.subr.bf16.mxu0 0
    %513 = vmatpush1.bf16.msra.mxu0 0
    %514 = vmatprep.mubr.bf16.mxu0 0
    %515 = vmatmul.mubr.bf16.gmra.mrb[0].mxu0 %v435
    %v516 = vpop.f32.mrb[0].mxu0
    %v517 = vadd.f32 %v419, %v516
    %v518 = vpop.f32.mrb[0].mxu0
    %v519 = vpop.f32.mrb[0].mxu0
    %v520 = vadd.f32 %v419, %v519
    %v521 = vpop.f32.mrb[0].mxu0
    %522 = vmatprep.mubr.bf16.mxu0 0
    %523 = vmatmul.mubr.bf16.gmra.mrb[0].mxu0 %v438
    %v524 = vpop.f32.mrb[0].mxu0
    %v525 = vadd.f32 %v419, %v524
    %v526 = vpop.f32.mrb[0].mxu0
    %v527 = vpop.f32.mrb[0].mxu0
    %v528 = vadd.f32 %v419, %v527
    %v529 = vpop.f32.mrb[0].mxu0
    %530 = vmatprep.mubr.bf16.mxu0 0
    %531 = vmatmul.mubr.bf16.gmra.mrb[0].mxu0 %v441
    %v532 = vpop.f32.mrb[0].mxu0
    %v533 = vadd.f32 %v419, %v532
    %v534 = vpop.f32.mrb[0].mxu0
    %v535 = vpop.f32.mrb[0].mxu0
    %v536 = vadd.f32 %v419, %v535
    %v537 = vpop.f32.mrb[0].mxu0
    %538 = vmatprep.mubr.bf16.mxu0 0
    %539 = vmatmul.mubr.bf16.gmra.mrb[0].mxu0 %v444
    %v540 = vpop.f32.mrb[0].mxu0
    %v541 = vadd.f32 %v419, %v540
    %v542 = vpop.f32.mrb[0].mxu0
    %v543 = vpop.f32.mrb[0].mxu0
    %v544 = vadd.f32 %v419, %v543
    %v545 = vpop.f32.mrb[0].mxu0
    %546 = vmatprep.mubr.bf16.mxu0 0
    %547 = vmatmul.mubr.bf16.gmra.mrb[0].mxu0 %v447
    %v548 = vpop.f32.mrb[0].mxu0
    %v549 = vadd.f32 %v419, %v548
    %v550 = vpop.f32.mrb[0].mxu0
    %v551 = vpop.f32.mrb[0].mxu0
    %v552 = vadd.f32 %v419, %v551
    %v553 = vpop.f32.mrb[0].mxu0
    %554 = vmatprep.mubr.bf16.mxu0 0
    %555 = vmatmul.mubr.bf16.gmra.mrb[0].mxu0 %v450
    %v556 = vpop.f32.mrb[0].mxu0
    %v557 = vadd.f32 %v419, %v556
    %v558 = vpop.f32.mrb[0].mxu0
    %v559 = vpop.f32.mrb[0].mxu0
    %v560 = vadd.f32 %v419, %v559
    %v561 = vpop.f32.mrb[0].mxu0
    %562 = vmatprep.mubr.bf16.mxu0 0
    %563 = vmatmul.mubr.bf16.gmra.mrb[0].mxu0 %v453
    %v564 = vpop.f32.mrb[0].mxu0
    %v565 = vadd.f32 %v419, %v564
    %v566 = vpop.f32.mrb[0].mxu0
    %v567 = vpop.f32.mrb[0].mxu0
    %v568 = vadd.f32 %v419, %v567
    %v569 = vpop.f32.mrb[0].mxu0
    %570 = vmatprep.mubr.bf16.mxu0 0
    %571 = vmatmul.mubr.bf16.gmra.mrb[0].mxu0 %v456
    %v572 = vpop.f32.mrb[0].mxu0
    %v573 = vadd.f32 %v419, %v572
    %v574 = vpop.f32.mrb[0].mxu0
    %v575 = vpop.f32.mrb[0].mxu0
    %v576 = vadd.f32 %v419, %v575
    %v577 = vpop.f32.mrb[0].mxu0
    %578 = vmatprep.mubr.bf16.mxu0 0
    %579 = vmatmul.mubr.bf16.gmra.mrb[0].mxu0 %v459
    %v580 = vpop.f32.mrb[0].mxu0
    %v581 = vadd.f32 %v419, %v580
    %v582 = vpop.f32.mrb[0].mxu0
    %v583 = vpop.f32.mrb[0].mxu0
    %v584 = vadd.f32 %v419, %v583
    %v585 = vpop.f32.mrb[0].mxu0
    %586 = vmatprep.mubr.bf16.mxu0 0
    %587 = vmatmul.mubr.bf16.gmra.mrb[0].mxu0 %v462
    %v588 = vpop.f32.mrb[0].mxu0
    %v589 = vadd.f32 %v419, %v588
    %v590 = vpop.f32.mrb[0].mxu0
    %v591 = vpop.f32.mrb[0].mxu0
    %v592 = vadd.f32 %v419, %v591
    %v593 = vpop.f32.mrb[0].mxu0
    %594 = vmatprep.mubr.bf16.mxu0 0
    %595 = vmatmul.mubr.bf16.gmra.mrb[0].mxu0 %v465
    %v596 = vpop.f32.mrb[0].mxu0
    %v597 = vadd.f32 %v419, %v596
    %v598 = vpop.f32.mrb[0].mxu0
    %v599 = vpop.f32.mrb[0].mxu0
    %v600 = vadd.f32 %v419, %v599
    %v601 = vpop.f32.mrb[0].mxu0
    %602 = vmatprep.mubr.bf16.mxu0 0
    %603 = vmatmul.mubr.bf16.gmra.mrb[0].mxu0 %v468
    %v604 = vpop.f32.mrb[0].mxu0
    %v605 = vadd.f32 %v419, %v604
    %v606 = vpop.f32.mrb[0].mxu0
    %v607 = vpop.f32.mrb[0].mxu0
    %v608 = vadd.f32 %v419, %v607
    %v609 = vpop.f32.mrb[0].mxu0
    %610 = vmatprep.mubr.bf16.mxu0 0
    %611 = vmatmul.mubr.bf16.gmra.mrb[0].mxu0 %v471
    %v612 = vpop.f32.mrb[0].mxu0
    %v613 = vadd.f32 %v419, %v612
    %v614 = vpop.f32.mrb[0].mxu0
    %v615 = vpop.f32.mrb[0].mxu0
    %v616 = vadd.f32 %v419, %v615
    %v617 = vpop.f32.mrb[0].mxu0
    %618 = vmatprep.mubr.bf16.mxu0 0
    %619 = vmatmul.mubr.bf16.gmra.mrb[0].mxu0 %v474
    %v620 = vpop.f32.mrb[0].mxu0
    %v621 = vadd.f32 %v419, %v620
    %v622 = vpop.f32.mrb[0].mxu0
    %v623 = vpop.f32.mrb[0].mxu0
    %v624 = vadd.f32 %v419, %v623
    %v625 = vpop.f32.mrb[0].mxu0
    %626 = vmatprep.mubr.bf16.mxu0 0
    %627 = vmatmul.mubr.bf16.gmra.mrb[0].mxu0 %v477
    %v628 = vpop.f32.mrb[0].mxu0
    %v629 = vadd.f32 %v419, %v628
    %v630 = vpop.f32.mrb[0].mxu0
    %v631 = vpop.f32.mrb[0].mxu0
    %v632 = vadd.f32 %v419, %v631
    %v633 = vpop.f32.mrb[0].mxu0
    %634 = vmatprep.mubr.bf16.mxu0 0
    %635 = vmatmul.mubr.bf16.gmra.mrb[0].mxu0 %v480
    %v636 = vpop.f32.mrb[0].mxu0
    %v637 = vadd.f32 %v419, %v636
    %v638 = vpop.f32.mrb[0].mxu0
    %v639 = vpop.f32.mrb[0].mxu0
    %v640 = vadd.f32 %v419, %v639
    %v641 = vpop.f32.mrb[0].mxu0
    %642 = vdwg.mxu0
    %v643 = vpack.c.bf16 %v520, %v517
    %v644 = vpack.c.bf16 %v528, %v525
    %v645 = vpack.c.bf16 %v536, %v533
    %v646 = vpack.c.bf16 %v544, %v541
    %v647 = vpack.c.bf16 %v552, %v549
    %v648 = vpack.c.bf16 %v560, %v557
    %v649 = vpack.c.bf16 %v568, %v565
    %v650 = vpack.c.bf16 %v576, %v573
    %v651 = vpack.c.bf16 %v584, %v581
    %v652 = vpack.c.bf16 %v592, %v589
    %v653 = vpack.c.bf16 %v600, %v597
    %v654 = vpack.c.bf16 %v608, %v605
    %v655 = vpack.c.bf16 %v616, %v613
    %v656 = vpack.c.bf16 %v624, %v621
    %v657 = vpack.c.bf16 %v632, %v629
    %v658 = vpack.c.bf16 %v640, %v637
    %675 = vrot.lane.b32.xlu0 %v643, 96
    %v676 = vpop.permute.xlu0 %675
    %677 = vrot.lane.b32.xlu0 %v644, 96
    %v678 = vpop.permute.xlu0 %677
    %679 = vrot.lane.b32.xlu0 %v645, 96
    %v680 = vpop.permute.xlu0 %679
    %681 = vrot.lane.b32.xlu0 %v646, 96
    %v682 = vpop.permute.xlu0 %681
    %683 = vrot.lane.b32.xlu0 %v647, 96
    %v684 = vpop.permute.xlu0 %683
    %685 = vrot.lane.b32.xlu0 %v648, 96
    %v686 = vpop.permute.xlu0 %685
    %687 = vrot.lane.b32.xlu0 %v649, 96
    %v688 = vpop.permute.xlu0 %687
    %689 = vrot.lane.b32.xlu0 %v650, 96
    %v690 = vpop.permute.xlu0 %689
    %691 = vrot.lane.b32.xlu0 %v651, 96
    %v692 = vpop.permute.xlu0 %691
    %693 = vrot.lane.b32.xlu0 %v652, 96
    %v694 = vpop.permute.xlu0 %693
    %695 = vrot.lane.b32.xlu0 %v653, 96
    %v696 = vpop.permute.xlu0 %695
    %697 = vrot.lane.b32.xlu0 %v654, 96
    %v698 = vpop.permute.xlu0 %697
    %699 = vrot.lane.b32.xlu0 %v655, 96
    %v700 = vpop.permute.xlu0 %699
    %701 = vrot.lane.b32.xlu0 %v656, 96
    %v702 = vpop.permute.xlu0 %701
    %703 = vrot.lane.b32.xlu0 %v657, 96
    %v704 = vpop.permute.xlu0 %703
    %705 = vrot.lane.b32.xlu0 %v658, 96
    %v706 = vpop.permute.xlu0 %705
    %v708 = vsel %vm433, %v643, 0
    %v711 = vsel %vm433, %v644, 0
    %v714 = vsel %vm433, %v645, 0
    %v717 = vsel %vm433, %v646, 0
    %v720 = vsel %vm433, %v647, 0
    %v723 = vsel %vm433, %v648, 0
    %v726 = vsel %vm433, %v649, 0
    %v729 = vsel %vm433, %v650, 0
    %v732 = vsel %vm433, %v651, 0
    %v735 = vsel %vm433, %v652, 0
    %v738 = vsel %vm433, %v653, 0
    %v741 = vsel %vm433, %v654, 0
    %v744 = vsel %vm433, %v655, 0
    %v747 = vsel %vm433, %v656, 0
    %v750 = vsel %vm433, %v657, 0
    %v753 = vsel %vm433, %v658, 0
    %v756 = vsel %vm433, %v676, 0
    %v759 = vsel %vm433, %v678, 0
    %v762 = vsel %vm433, %v680, 0
    %v765 = vsel %vm433, %v682, 0
    %v768 = vsel %vm433, %v684, 0
    %v771 = vsel %vm433, %v686, 0
    %v774 = vsel %vm433, %v688, 0
    %v777 = vsel %vm433, %v690, 0
    %v780 = vsel %vm433, %v692, 0
    %v783 = vsel %vm433, %v694, 0
    %v786 = vsel %vm433, %v696, 0
    %v789 = vsel %vm433, %v698, 0
    %v792 = vsel %vm433, %v700, 0
    %v795 = vsel %vm433, %v702, 0
    %v798 = vsel %vm433, %v704, 0
    %v801 = vsel %vm433, %v706, 0
    %803 = vmatprep.subr.bf16.mxu0 0
    %804 = vmatpush1.bf16.xpose.msra.mxu0 %v756
    %805 = vmatprep.subr.bf16.mxu0 0
    %806 = vmatpush1.bf16.xpose.msra.mxu0 %v759
    %807 = vmatprep.subr.bf16.mxu0 0
    %808 = vmatpush1.bf16.xpose.msra.mxu0 %v762
    %809 = vmatprep.subr.bf16.mxu0 0
    %810 = vmatpush1.bf16.xpose.msra.mxu0 %v765
    %811 = vmatprep.subr.bf16.mxu0 0
    %812 = vmatpush1.bf16.xpose.msra.mxu0 %v768
    %813 = vmatprep.subr.bf16.mxu0 0
    %814 = vmatpush1.bf16.xpose.msra.mxu0 %v771
    %815 = vmatprep.subr.bf16.mxu0 0
    %816 = vmatpush1.bf16.xpose.msra.mxu0 %v774
    %817 = vmatprep.subr.bf16.mxu0 0
    %818 = vmatpush1.bf16.xpose.msra.mxu0 %v777
    %819 = vmatprep.subr.bf16.mxu0 0
    %820 = vmatpush1.bf16.xpose.msra.mxu0 %v780
    %821 = vmatprep.subr.bf16.mxu0 0
    %822 = vmatpush1.bf16.xpose.msra.mxu0 %v783
    %823 = vmatprep.subr.bf16.mxu0 0
    %824 = vmatpush1.bf16.xpose.msra.mxu0 %v786
    %825 = vmatprep.subr.bf16.mxu0 0
    %826 = vmatpush1.bf16.xpose.msra.mxu0 %v789
    %827 = vmatprep.subr.bf16.mxu0 0
    %828 = vmatpush1.bf16.xpose.msra.mxu0 %v792
    %829 = vmatprep.subr.bf16.mxu0 0
    %830 = vmatpush1.bf16.xpose.msra.mxu0 %v795
    %831 = vmatprep.subr.bf16.mxu0 0
    %832 = vmatpush1.bf16.xpose.msra.mxu0 %v798
    %833 = vmatprep.subr.bf16.mxu0 0
    %834 = vmatpush1.bf16.xpose.msra.mxu0 %v801
    %835 = vmatprep.mubr.bf16.mxu0 0
    %836 = vmatmul.mubr.bf16.gmra.mrb[0].mxu0 %v708
    %v837 = vpop.f32.mrb[0].mxu0
    %v838 = vadd.f32 %v314, %v837
    %v839 = vpop.f32.mrb[0].mxu0
    %v840 = vadd.f32 %v315, %v839
    %v841 = vpop.f32.mrb[0].mxu0
    %v842 = vadd.f32 %v316, %v841
    %v843 = vpop.f32.mrb[0].mxu0
    %v844 = vadd.f32 %v317, %v843
    %845 = vmatprep.mubr.bf16.mxu0 0
    %846 = vmatmul.mubr.bf16.gmra.mrb[0].mxu0 %v711
    %v847 = vpop.f32.mrb[0].mxu0
    %v848 = vadd.f32 %v318, %v847
    %v849 = vpop.f32.mrb[0].mxu0
    %v850 = vadd.f32 %v319, %v849
    %v851 = vpop.f32.mrb[0].mxu0
    %v852 = vadd.f32 %v320, %v851
    %v853 = vpop.f32.mrb[0].mxu0
    %v854 = vadd.f32 %v321, %v853
    %855 = vmatprep.mubr.bf16.mxu0 0
    %856 = vmatmul.mubr.bf16.gmra.mrb[0].mxu0 %v714
    %v857 = vpop.f32.mrb[0].mxu0
    %v858 = vadd.f32 %v322, %v857
    %v859 = vpop.f32.mrb[0].mxu0
    %v860 = vadd.f32 %v323, %v859
    %v861 = vpop.f32.mrb[0].mxu0
    %v862 = vadd.f32 %v324, %v861
    %v863 = vpop.f32.mrb[0].mxu0
    %v864 = vadd.f32 %v325, %v863
    %865 = vmatprep.mubr.bf16.mxu0 0
    %866 = vmatmul.mubr.bf16.gmra.mrb[0].mxu0 %v717
    %v867 = vpop.f32.mrb[0].mxu0
    %v868 = vadd.f32 %v326, %v867
    %v869 = vpop.f32.mrb[0].mxu0
    %v870 = vadd.f32 %v327, %v869
    %v871 = vpop.f32.mrb[0].mxu0
    %v872 = vadd.f32 %v328, %v871
    %v873 = vpop.f32.mrb[0].mxu0
    %v874 = vadd.f32 %v329, %v873
    %875 = vmatprep.mubr.bf16.mxu0 0
    %876 = vmatmul.mubr.bf16.gmra.mrb[0].mxu0 %v720
    %v877 = vpop.f32.mrb[0].mxu0
    %v878 = vadd.f32 %v330, %v877
    %v879 = vpop.f32.mrb[0].mxu0
    %v880 = vadd.f32 %v331, %v879
    %v881 = vpop.f32.mrb[0].mxu0
    %v882 = vadd.f32 %v332, %v881
    %v883 = vpop.f32.mrb[0].mxu0
    %v884 = vadd.f32 %v333, %v883
    %885 = vmatprep.mubr.bf16.mxu0 0
    %886 = vmatmul.mubr.bf16.gmra.mrb[0].mxu0 %v723
    %v887 = vpop.f32.mrb[0].mxu0
    %v888 = vadd.f32 %v334, %v887
    %v889 = vpop.f32.mrb[0].mxu0
    %v890 = vadd.f32 %v335, %v889
    %v891 = vpop.f32.mrb[0].mxu0
    %v892 = vadd.f32 %v336, %v891
    %v893 = vpop.f32.mrb[0].mxu0
    %v894 = vadd.f32 %v337, %v893
    %895 = vmatprep.mubr.bf16.mxu0 0
    %896 = vmatmul.mubr.bf16.gmra.mrb[0].mxu0 %v726
    %v897 = vpop.f32.mrb[0].mxu0
    %v898 = vadd.f32 %v338, %v897
    %v899 = vpop.f32.mrb[0].mxu0
    %v900 = vadd.f32 %v339, %v899
    %v901 = vpop.f32.mrb[0].mxu0
    %v902 = vadd.f32 %v340, %v901
    %v903 = vpop.f32.mrb[0].mxu0
    %v904 = vadd.f32 %v341, %v903
    %905 = vmatprep.mubr.bf16.mxu0 0
    %906 = vmatmul.mubr.bf16.gmra.mrb[0].mxu0 %v729
    %v907 = vpop.f32.mrb[0].mxu0
    %v908 = vadd.f32 %v342, %v907
    %v909 = vpop.f32.mrb[0].mxu0
    %v910 = vadd.f32 %v343, %v909
    %v911 = vpop.f32.mrb[0].mxu0
    %v912 = vadd.f32 %v344, %v911
    %v913 = vpop.f32.mrb[0].mxu0
    %v914 = vadd.f32 %v345, %v913
    %915 = vmatprep.mubr.bf16.mxu0 0
    %916 = vmatmul.mubr.bf16.gmra.mrb[0].mxu0 %v732
    %v917 = vpop.f32.mrb[0].mxu0
    %v918 = vadd.f32 %v346, %v917
    %v919 = vpop.f32.mrb[0].mxu0
    %v920 = vadd.f32 %v347, %v919
    %v921 = vpop.f32.mrb[0].mxu0
    %v922 = vadd.f32 %v348, %v921
    %v923 = vpop.f32.mrb[0].mxu0
    %v924 = vadd.f32 %v349, %v923
    %925 = vmatprep.mubr.bf16.mxu0 0
    %926 = vmatmul.mubr.bf16.gmra.mrb[0].mxu0 %v735
    %v927 = vpop.f32.mrb[0].mxu0
    %v928 = vadd.f32 %v350, %v927
    %v929 = vpop.f32.mrb[0].mxu0
    %v930 = vadd.f32 %v351, %v929
    %v931 = vpop.f32.mrb[0].mxu0
    %v932 = vadd.f32 %v352, %v931
    %v933 = vpop.f32.mrb[0].mxu0
    %v934 = vadd.f32 %v353, %v933
    %935 = vmatprep.mubr.bf16.mxu0 0
    %936 = vmatmul.mubr.bf16.gmra.mrb[0].mxu0 %v738
    %v937 = vpop.f32.mrb[0].mxu0
    %v938 = vadd.f32 %v354, %v937
    %v939 = vpop.f32.mrb[0].mxu0
    %v940 = vadd.f32 %v355, %v939
    %v941 = vpop.f32.mrb[0].mxu0
    %v942 = vadd.f32 %v356, %v941
    %v943 = vpop.f32.mrb[0].mxu0
    %v944 = vadd.f32 %v357, %v943
    %945 = vmatprep.mubr.bf16.mxu0 0
    %946 = vmatmul.mubr.bf16.gmra.mrb[0].mxu0 %v741
    %v947 = vpop.f32.mrb[0].mxu0
    %v948 = vadd.f32 %v358, %v947
    %v949 = vpop.f32.mrb[0].mxu0
    %v950 = vadd.f32 %v359, %v949
    %v951 = vpop.f32.mrb[0].mxu0
    %v952 = vadd.f32 %v360, %v951
    %v953 = vpop.f32.mrb[0].mxu0
    %v954 = vadd.f32 %v361, %v953
    %955 = vmatprep.mubr.bf16.mxu0 0
    %956 = vmatmul.mubr.bf16.gmra.mrb[0].mxu0 %v744
    %v957 = vpop.f32.mrb[0].mxu0
    %v958 = vadd.f32 %v362, %v957
    %v959 = vpop.f32.mrb[0].mxu0
    %v960 = vadd.f32 %v363, %v959
    %v961 = vpop.f32.mrb[0].mxu0
    %v962 = vadd.f32 %v364, %v961
    %v963 = vpop.f32.mrb[0].mxu0
    %v964 = vadd.f32 %v365, %v963
    %965 = vmatprep.mubr.bf16.mxu0 0
    %966 = vmatmul.mubr.bf16.gmra.mrb[0].mxu0 %v747
    %v967 = vpop.f32.mrb[0].mxu0
    %v968 = vadd.f32 %v366, %v967
    %v969 = vpop.f32.mrb[0].mxu0
    %v970 = vadd.f32 %v367, %v969
    %v971 = vpop.f32.mrb[0].mxu0
    %v972 = vadd.f32 %v368, %v971
    %v973 = vpop.f32.mrb[0].mxu0
    %v974 = vadd.f32 %v369, %v973
    %975 = vmatprep.mubr.bf16.mxu0 0
    %976 = vmatmul.mubr.bf16.gmra.mrb[0].mxu0 %v750
    %v977 = vpop.f32.mrb[0].mxu0
    %v978 = vadd.f32 %v370, %v977
    %v979 = vpop.f32.mrb[0].mxu0
    %v980 = vadd.f32 %v371, %v979
    %v981 = vpop.f32.mrb[0].mxu0
    %v982 = vadd.f32 %v372, %v981
    %v983 = vpop.f32.mrb[0].mxu0
    %v984 = vadd.f32 %v373, %v983
    %985 = vmatprep.mubr.bf16.mxu0 0
    %986 = vmatmul.mubr.bf16.gmra.mrb[0].mxu0 %v753
    %v987 = vpop.f32.mrb[0].mxu0
    %v988 = vadd.f32 %v374, %v987
    %v989 = vpop.f32.mrb[0].mxu0
    %v990 = vadd.f32 %v375, %v989
    %v991 = vpop.f32.mrb[0].mxu0
    %v992 = vadd.f32 %v376, %v991
    %v993 = vpop.f32.mrb[0].mxu0
    %v994 = vadd.f32 %v377, %v993
    %995 = vdwg.mxu0
    %v996 = vmax.f32 %v838, %v840
    %997 = vmax.xlane.f32.xlu0 %v996
    %v998 = vpop.xlane.xlu0 %997
    %v999 = vmax.f32 %v842, %v844
    %1000 = vmax.xlane.f32.xlu0 %v999
    %v1001 = vpop.xlane.xlu0 %1000
    %v1002 = vmax.f32 %v848, %v850
    %1003 = vmax.xlane.f32.xlu0 %v1002
    %v1004 = vpop.xlane.xlu0 %1003
    %v1005 = vmax.f32 %v852, %v854
    %1006 = vmax.xlane.f32.xlu0 %v1005
    %v1007 = vpop.xlane.xlu0 %1006
    %v1008 = vmax.f32 %v858, %v860
    %1009 = vmax.xlane.f32.xlu0 %v1008
    %v1010 = vpop.xlane.xlu0 %1009
    %v1011 = vmax.f32 %v862, %v864
    %1012 = vmax.xlane.f32.xlu0 %v1011
    %v1013 = vpop.xlane.xlu0 %1012
    %v1014 = vmax.f32 %v868, %v870
    %1015 = vmax.xlane.f32.xlu0 %v1014
    %v1016 = vpop.xlane.xlu0 %1015
    %v1017 = vmax.f32 %v872, %v874
    %1018 = vmax.xlane.f32.xlu0 %v1017
    %v1019 = vpop.xlane.xlu0 %1018
    %v1020 = vmax.f32 %v878, %v880
    %1021 = vmax.xlane.f32.xlu0 %v1020
    %v1022 = vpop.xlane.xlu0 %1021
    %v1023 = vmax.f32 %v882, %v884
    %1024 = vmax.xlane.f32.xlu0 %v1023
    %v1025 = vpop.xlane.xlu0 %1024
    %v1026 = vmax.f32 %v888, %v890
    %1027 = vmax.xlane.f32.xlu0 %v1026
    %v1028 = vpop.xlane.xlu0 %1027
    %v1029 = vmax.f32 %v892, %v894
    %1030 = vmax.xlane.f32.xlu0 %v1029
    %v1031 = vpop.xlane.xlu0 %1030
    %v1032 = vmax.f32 %v898, %v900
    %1033 = vmax.xlane.f32.xlu0 %v1032
    %v1034 = vpop.xlane.xlu0 %1033
    %v1035 = vmax.f32 %v902, %v904
    %1036 = vmax.xlane.f32.xlu0 %v1035
    %v1037 = vpop.xlane.xlu0 %1036
    %v1038 = vmax.f32 %v908, %v910
    %1039 = vmax.xlane.f32.xlu0 %v1038
    %v1040 = vpop.xlane.xlu0 %1039
    %v1041 = vmax.f32 %v912, %v914
    %1042 = vmax.xlane.f32.xlu0 %v1041
    %v1043 = vpop.xlane.xlu0 %1042
    %v1044 = vmax.f32 %v918, %v920
    %1045 = vmax.xlane.f32.xlu0 %v1044
    %v1046 = vpop.xlane.xlu0 %1045
    %v1047 = vmax.f32 %v922, %v924
    %1048 = vmax.xlane.f32.xlu0 %v1047
    %v1049 = vpop.xlane.xlu0 %1048
    %v1050 = vmax.f32 %v928, %v930
    %1051 = vmax.xlane.f32.xlu0 %v1050
    %v1052 = vpop.xlane.xlu0 %1051
    %v1053 = vmax.f32 %v932, %v934
    %1054 = vmax.xlane.f32.xlu0 %v1053
    %v1055 = vpop.xlane.xlu0 %1054
    %v1056 = vmax.f32 %v938, %v940
    %1057 = vmax.xlane.f32.xlu0 %v1056
    %v1058 = vpop.xlane.xlu0 %1057
    %v1059 = vmax.f32 %v942, %v944
    %1060 = vmax.xlane.f32.xlu0 %v1059
    %v1061 = vpop.xlane.xlu0 %1060
    %v1062 = vmax.f32 %v948, %v950
    %1063 = vmax.xlane.f32.xlu0 %v1062
    %v1064 = vpop.xlane.xlu0 %1063
    %v1065 = vmax.f32 %v952, %v954
    %1066 = vmax.xlane.f32.xlu0 %v1065
    %v1067 = vpop.xlane.xlu0 %1066
    %v1068 = vmax.f32 %v958, %v960
    %1069 = vmax.xlane.f32.xlu0 %v1068
    %v1070 = vpop.xlane.xlu0 %1069
    %v1071 = vmax.f32 %v962, %v964
    %1072 = vmax.xlane.f32.xlu0 %v1071
    %v1073 = vpop.xlane.xlu0 %1072
    %v1074 = vmax.f32 %v968, %v970
    %1075 = vmax.xlane.f32.xlu0 %v1074
    %v1076 = vpop.xlane.xlu0 %1075
    %v1077 = vmax.f32 %v972, %v974
    %1078 = vmax.xlane.f32.xlu0 %v1077
    %v1079 = vpop.xlane.xlu0 %1078
    %v1080 = vmax.f32 %v978, %v980
    %1081 = vmax.xlane.f32.xlu0 %v1080
    %v1082 = vpop.xlane.xlu0 %1081
    %v1083 = vmax.f32 %v982, %v984
    %1084 = vmax.xlane.f32.xlu0 %v1083
    %v1085 = vpop.xlane.xlu0 %1084
    %v1086 = vmax.f32 %v988, %v990
    %1087 = vmax.xlane.f32.xlu0 %v1086
    %v1088 = vpop.xlane.xlu0 %1087
    %v1089 = vmax.f32 %v992, %v994
    %1090 = vmax.xlane.f32.xlu0 %v1089
    %v1091 = vpop.xlane.xlu0 %1090
    %v1092 = vsub.f32 %v838, %v998
    %v1093 = vsub.f32 %v840, %v998
    %v1094 = vsub.f32 %v842, %v1001
    %v1095 = vsub.f32 %v844, %v1001
    %v1096 = vsub.f32 %v848, %v1004
    %v1097 = vsub.f32 %v850, %v1004
    %v1098 = vsub.f32 %v852, %v1007
    %v1099 = vsub.f32 %v854, %v1007
    %v1100 = vsub.f32 %v858, %v1010
    %v1101 = vsub.f32 %v860, %v1010
    %v1102 = vsub.f32 %v862, %v1013
    %v1103 = vsub.f32 %v864, %v1013
    %v1104 = vsub.f32 %v868, %v1016
    %v1105 = vsub.f32 %v870, %v1016
    %v1106 = vsub.f32 %v872, %v1019
    %v1107 = vsub.f32 %v874, %v1019
    %v1108 = vsub.f32 %v878, %v1022
    %v1109 = vsub.f32 %v880, %v1022
    %v1110 = vsub.f32 %v882, %v1025
    %v1111 = vsub.f32 %v884, %v1025
    %v1112 = vsub.f32 %v888, %v1028
    %v1113 = vsub.f32 %v890, %v1028
    %v1114 = vsub.f32 %v892, %v1031
    %v1115 = vsub.f32 %v894, %v1031
    %v1116 = vsub.f32 %v898, %v1034
    %v1117 = vsub.f32 %v900, %v1034
    %v1118 = vsub.f32 %v902, %v1037
    %v1119 = vsub.f32 %v904, %v1037
    %v1120 = vsub.f32 %v908, %v1040
    %v1121 = vsub.f32 %v910, %v1040
    %v1122 = vsub.f32 %v912, %v1043
    %v1123 = vsub.f32 %v914, %v1043
    %v1124 = vsub.f32 %v918, %v1046
    %v1125 = vsub.f32 %v920, %v1046
    %v1126 = vsub.f32 %v922, %v1049
    %v1127 = vsub.f32 %v924, %v1049
    %v1128 = vsub.f32 %v928, %v1052
    %v1129 = vsub.f32 %v930, %v1052
    %v1130 = vsub.f32 %v932, %v1055
    %v1131 = vsub.f32 %v934, %v1055
    %v1132 = vsub.f32 %v938, %v1058
    %v1133 = vsub.f32 %v940, %v1058
    %v1134 = vsub.f32 %v942, %v1061
    %v1135 = vsub.f32 %v944, %v1061
    %v1136 = vsub.f32 %v948, %v1064
    %v1137 = vsub.f32 %v950, %v1064
    %v1138 = vsub.f32 %v952, %v1067
    %v1139 = vsub.f32 %v954, %v1067
    %v1140 = vsub.f32 %v958, %v1070
    %v1141 = vsub.f32 %v960, %v1070
    %v1142 = vsub.f32 %v962, %v1073
    %v1143 = vsub.f32 %v964, %v1073
    %v1144 = vsub.f32 %v968, %v1076
    %v1145 = vsub.f32 %v970, %v1076
    %v1146 = vsub.f32 %v972, %v1079
    %v1147 = vsub.f32 %v974, %v1079
    %v1148 = vsub.f32 %v978, %v1082
    %v1149 = vsub.f32 %v980, %v1082
    %v1150 = vsub.f32 %v982, %v1085
    %v1151 = vsub.f32 %v984, %v1085
    %v1152 = vsub.f32 %v988, %v1088
    %v1153 = vsub.f32 %v990, %v1088
    %v1154 = vsub.f32 %v992, %v1091
    %v1155 = vsub.f32 %v994, %v1091
    %v1156 = vmul.f32 %v1092, 1.442695
    %v1157 = vpow.pop %v1156
    %v1158 = vmul.f32 %v1093, 1.442695
    %v1159 = vpow.pop %v1158
    %v1160 = vmul.f32 %v1094, 1.442695
    %v1161 = vpow.pop %v1160
    %v1162 = vmul.f32 %v1095, 1.442695
    %v1163 = vpow.pop %v1162
    %v1164 = vmul.f32 %v1096, 1.442695
    %v1165 = vpow.pop %v1164
    %v1166 = vmul.f32 %v1097, 1.442695
    %v1167 = vpow.pop %v1166
    %v1168 = vmul.f32 %v1098, 1.442695
    %v1169 = vpow.pop %v1168
    %v1170 = vmul.f32 %v1099, 1.442695
    %v1171 = vpow.pop %v1170
    %v1172 = vmul.f32 %v1100, 1.442695
    %v1173 = vpow.pop %v1172
    %v1174 = vmul.f32 %v1101, 1.442695
    %v1175 = vpow.pop %v1174
    %v1176 = vmul.f32 %v1102, 1.442695
    %v1177 = vpow.pop %v1176
    %v1178 = vmul.f32 %v1103, 1.442695
    %v1179 = vpow.pop %v1178
    %v1180 = vmul.f32 %v1104, 1.442695
    %v1181 = vpow.pop %v1180
    %v1182 = vmul.f32 %v1105, 1.442695
    %v1183 = vpow.pop %v1182
    %v1184 = vmul.f32 %v1106, 1.442695
    %v1185 = vpow.pop %v1184
    %v1186 = vmul.f32 %v1107, 1.442695
    %v1187 = vpow.pop %v1186
    %v1188 = vmul.f32 %v1108, 1.442695
    %v1189 = vpow.pop %v1188
    %v1190 = vmul.f32 %v1109, 1.442695
    %v1191 = vpow.pop %v1190
    %v1192 = vmul.f32 %v1110, 1.442695
    %v1193 = vpow.pop %v1192
    %v1194 = vmul.f32 %v1111, 1.442695
    %v1195 = vpow.pop %v1194
    %v1196 = vmul.f32 %v1112, 1.442695
    %v1197 = vpow.pop %v1196
    %v1198 = vmul.f32 %v1113, 1.442695
    %v1199 = vpow.pop %v1198
    %v1200 = vmul.f32 %v1114, 1.442695
    %v1201 = vpow.pop %v1200
    %v1202 = vmul.f32 %v1115, 1.442695
    %v1203 = vpow.pop %v1202
    %v1204 = vmul.f32 %v1116, 1.442695
    %v1205 = vpow.pop %v1204
    %v1206 = vmul.f32 %v1117, 1.442695
    %v1207 = vpow.pop %v1206
    %v1208 = vmul.f32 %v1118, 1.442695
    %v1209 = vpow.pop %v1208
    %v1210 = vmul.f32 %v1119, 1.442695
    %v1211 = vpow.pop %v1210
    %v1212 = vmul.f32 %v1120, 1.442695
    %v1213 = vpow.pop %v1212
    %v1214 = vmul.f32 %v1121, 1.442695
    %v1215 = vpow.pop %v1214
    %v1216 = vmul.f32 %v1122, 1.442695
    %v1217 = vpow.pop %v1216
    %v1218 = vmul.f32 %v1123, 1.442695
    %v1219 = vpow.pop %v1218
    %v1220 = vmul.f32 %v1124, 1.442695
    %v1221 = vpow.pop %v1220
    %v1222 = vmul.f32 %v1125, 1.442695
    %v1223 = vpow.pop %v1222
    %v1224 = vmul.f32 %v1126, 1.442695
    %v1225 = vpow.pop %v1224
    %v1226 = vmul.f32 %v1127, 1.442695
    %v1227 = vpow.pop %v1226
    %v1228 = vmul.f32 %v1128, 1.442695
    %v1229 = vpow.pop %v1228
    %v1230 = vmul.f32 %v1129, 1.442695
    %v1231 = vpow.pop %v1230
    %v1232 = vmul.f32 %v1130, 1.442695
    %v1233 = vpow.pop %v1232
    %v1234 = vmul.f32 %v1131, 1.442695
    %v1235 = vpow.pop %v1234
    %v1236 = vmul.f32 %v1132, 1.442695
    %v1237 = vpow.pop %v1236
    %v1238 = vmul.f32 %v1133, 1.442695
    %v1239 = vpow.pop %v1238
    %v1240 = vmul.f32 %v1134, 1.442695
    %v1241 = vpow.pop %v1240
    %v1242 = vmul.f32 %v1135, 1.442695
    %v1243 = vpow.pop %v1242
    %v1244 = vmul.f32 %v1136, 1.442695
    %v1245 = vpow.pop %v1244
    %v1246 = vmul.f32 %v1137, 1.442695
    %v1247 = vpow.pop %v1246
    %v1248 = vmul.f32 %v1138, 1.442695
    %v1249 = vpow.pop %v1248
    %v1250 = vmul.f32 %v1139, 1.442695
    %v1251 = vpow.pop %v1250
    %v1252 = vmul.f32 %v1140, 1.442695
    %v1253 = vpow.pop %v1252
    %v1254 = vmul.f32 %v1141, 1.442695
    %v1255 = vpow.pop %v1254
    %v1256 = vmul.f32 %v1142, 1.442695
    %v1257 = vpow.pop %v1256
    %v1258 = vmul.f32 %v1143, 1.442695
    %v1259 = vpow.pop %v1258
    %v1260 = vmul.f32 %v1144, 1.442695
    %v1261 = vpow.pop %v1260
    %v1262 = vmul.f32 %v1145, 1.442695
    %v1263 = vpow.pop %v1262
    %v1264 = vmul.f32 %v1146, 1.442695
    %v1265 = vpow.pop %v1264
    %v1266 = vmul.f32 %v1147, 1.442695
    %v1267 = vpow.pop %v1266
    %v1268 = vmul.f32 %v1148, 1.442695
    %v1269 = vpow.pop %v1268
    %v1270 = vmul.f32 %v1149, 1.442695
    %v1271 = vpow.pop %v1270
    %v1272 = vmul.f32 %v1150, 1.442695
    %v1273 = vpow.pop %v1272
    %v1274 = vmul.f32 %v1151, 1.442695
    %v1275 = vpow.pop %v1274
    %v1276 = vmul.f32 %v1152, 1.442695
    %v1277 = vpow.pop %v1276
    %v1278 = vmul.f32 %v1153, 1.442695
    %v1279 = vpow.pop %v1278
    %v1280 = vmul.f32 %v1154, 1.442695
    %v1281 = vpow.pop %v1280
    %v1282 = vmul.f32 %v1155, 1.442695
    %v1283 = vpow.pop %v1282
    %v1284 = vadd.f32 %v1157, %v1159
    %1285 = vadd.xlane.f32.xlu0 %v1284
    %v1286 = vpop.xlane.xlu0 %1285
    %v1287 = vadd.f32 %v1161, %v1163
    %1288 = vadd.xlane.f32.xlu0 %v1287
    %v1289 = vpop.xlane.xlu0 %1288
    %v1290 = vadd.f32 %v1165, %v1167
    %1291 = vadd.xlane.f32.xlu0 %v1290
    %v1292 = vpop.xlane.xlu0 %1291
    %v1293 = vadd.f32 %v1169, %v1171
    %1294 = vadd.xlane.f32.xlu0 %v1293
    %v1295 = vpop.xlane.xlu0 %1294
    %v1296 = vadd.f32 %v1173, %v1175
    %1297 = vadd.xlane.f32.xlu0 %v1296
    %v1298 = vpop.xlane.xlu0 %1297
    %v1299 = vadd.f32 %v1177, %v1179
    %1300 = vadd.xlane.f32.xlu0 %v1299
    %v1301 = vpop.xlane.xlu0 %1300
    %v1302 = vadd.f32 %v1181, %v1183
    %1303 = vadd.xlane.f32.xlu0 %v1302
    %v1304 = vpop.xlane.xlu0 %1303
    %v1305 = vadd.f32 %v1185, %v1187
    %1306 = vadd.xlane.f32.xlu0 %v1305
    %v1307 = vpop.xlane.xlu0 %1306
    %v1308 = vadd.f32 %v1189, %v1191
    %1309 = vadd.xlane.f32.xlu0 %v1308
    %v1310 = vpop.xlane.xlu0 %1309
    %v1311 = vadd.f32 %v1193, %v1195
    %1312 = vadd.xlane.f32.xlu0 %v1311
    %v1313 = vpop.xlane.xlu0 %1312
    %v1314 = vadd.f32 %v1197, %v1199
    %1315 = vadd.xlane.f32.xlu0 %v1314
    %v1316 = vpop.xlane.xlu0 %1315
    %v1317 = vadd.f32 %v1201, %v1203
    %1318 = vadd.xlane.f32.xlu0 %v1317
    %v1319 = vpop.xlane.xlu0 %1318
    %v1320 = vadd.f32 %v1205, %v1207
    %1321 = vadd.xlane.f32.xlu0 %v1320
    %v1322 = vpop.xlane.xlu0 %1321
    %v1323 = vadd.f32 %v1209, %v1211
    %1324 = vadd.xlane.f32.xlu0 %v1323
    %v1325 = vpop.xlane.xlu0 %1324
    %v1326 = vadd.f32 %v1213, %v1215
    %1327 = vadd.xlane.f32.xlu0 %v1326
    %v1328 = vpop.xlane.xlu0 %1327
    %v1329 = vadd.f32 %v1217, %v1219
    %1330 = vadd.xlane.f32.xlu0 %v1329
    %v1331 = vpop.xlane.xlu0 %1330
    %v1332 = vadd.f32 %v1221, %v1223
    %1333 = vadd.xlane.f32.xlu0 %v1332
    %v1334 = vpop.xlane.xlu0 %1333
    %v1335 = vadd.f32 %v1225, %v1227
    %1336 = vadd.xlane.f32.xlu0 %v1335
    %v1337 = vpop.xlane.xlu0 %1336
    %v1338 = vadd.f32 %v1229, %v1231
    %1339 = vadd.xlane.f32.xlu0 %v1338
    %v1340 = vpop.xlane.xlu0 %1339
    %v1341 = vadd.f32 %v1233, %v1235
    %1342 = vadd.xlane.f32.xlu0 %v1341
    %v1343 = vpop.xlane.xlu0 %1342
    %v1344 = vadd.f32 %v1237, %v1239
    %1345 = vadd.xlane.f32.xlu0 %v1344
    %v1346 = vpop.xlane.xlu0 %1345
    %v1347 = vadd.f32 %v1241, %v1243
    %1348 = vadd.xlane.f32.xlu0 %v1347
    %v1349 = vpop.xlane.xlu0 %1348
    %v1350 = vadd.f32 %v1245, %v1247
    %1351 = vadd.xlane.f32.xlu0 %v1350
    %v1352 = vpop.xlane.xlu0 %1351
    %v1353 = vadd.f32 %v1249, %v1251
    %1354 = vadd.xlane.f32.xlu0 %v1353
    %v1355 = vpop.xlane.xlu0 %1354
    %v1356 = vadd.f32 %v1253, %v1255
    %1357 = vadd.xlane.f32.xlu0 %v1356
    %v1358 = vpop.xlane.xlu0 %1357
    %v1359 = vadd.f32 %v1257, %v1259
    %1360 = vadd.xlane.f32.xlu0 %v1359
    %v1361 = vpop.xlane.xlu0 %1360
    %v1362 = vadd.f32 %v1261, %v1263
    %1363 = vadd.xlane.f32.xlu0 %v1362
    %v1364 = vpop.xlane.xlu0 %1363
    %v1365 = vadd.f32 %v1265, %v1267
    %1366 = vadd.xlane.f32.xlu0 %v1365
    %v1367 = vpop.xlane.xlu0 %1366
    %v1368 = vadd.f32 %v1269, %v1271
    %1369 = vadd.xlane.f32.xlu0 %v1368
    %v1370 = vpop.xlane.xlu0 %1369
    %v1371 = vadd.f32 %v1273, %v1275
    %1372 = vadd.xlane.f32.xlu0 %v1371
    %v1373 = vpop.xlane.xlu0 %1372
    %v1374 = vadd.f32 %v1277, %v1279
    %1375 = vadd.xlane.f32.xlu0 %v1374
    %v1376 = vpop.xlane.xlu0 %1375
    %v1377 = vadd.f32 %v1281, %v1283
    %1378 = vadd.xlane.f32.xlu0 %v1377
    %v1379 = vpop.xlane.xlu0 %1378
    %v1380 = vpack.c.bf16 %v1161, %v1157
    %v1381 = vpack.c.bf16 %v1163, %v1159
    %v1382 = vpack.c.bf16 %v1169, %v1165
    %v1383 = vpack.c.bf16 %v1171, %v1167
    %v1384 = vpack.c.bf16 %v1177, %v1173
    %v1385 = vpack.c.bf16 %v1179, %v1175
    %v1386 = vpack.c.bf16 %v1185, %v1181
    %v1387 = vpack.c.bf16 %v1187, %v1183
    %v1388 = vpack.c.bf16 %v1193, %v1189
    %v1389 = vpack.c.bf16 %v1195, %v1191
    %v1390 = vpack.c.bf16 %v1201, %v1197
    %v1391 = vpack.c.bf16 %v1203, %v1199
    %v1392 = vpack.c.bf16 %v1209, %v1205
    %v1393 = vpack.c.bf16 %v1211, %v1207
    %v1394 = vpack.c.bf16 %v1217, %v1213
    %v1395 = vpack.c.bf16 %v1219, %v1215
    %v1396 = vpack.c.bf16 %v1225, %v1221
    %v1397 = vpack.c.bf16 %v1227, %v1223
    %v1398 = vpack.c.bf16 %v1233, %v1229
    %v1399 = vpack.c.bf16 %v1235, %v1231
    %v1400 = vpack.c.bf16 %v1241, %v1237
    %v1401 = vpack.c.bf16 %v1243, %v1239
    %v1402 = vpack.c.bf16 %v1249, %v1245
    %v1403 = vpack.c.bf16 %v1251, %v1247
    %v1404 = vpack.c.bf16 %v1257, %v1253
    %v1405 = vpack.c.bf16 %v1259, %v1255
    %v1406 = vpack.c.bf16 %v1265, %v1261
    %v1407 = vpack.c.bf16 %v1267, %v1263
    %v1408 = vpack.c.bf16 %v1273, %v1269
    %v1409 = vpack.c.bf16 %v1275, %v1271
    %v1410 = vpack.c.bf16 %v1281, %v1277
    %v1411 = vpack.c.bf16 %v1283, %v1279
    %1412 = vrot.lane.b32.xlu0 %v643, 64
    %v1413 = vpop.permute.xlu0 %1412
    %1414 = vrot.lane.b32.xlu0 %v644, 64
    %v1415 = vpop.permute.xlu0 %1414
    %1416 = vrot.lane.b32.xlu0 %v645, 64
    %v1417 = vpop.permute.xlu0 %1416
    %1418 = vrot.lane.b32.xlu0 %v646, 64
    %v1419 = vpop.permute.xlu0 %1418
    %1420 = vrot.lane.b32.xlu0 %v647, 64
    %v1421 = vpop.permute.xlu0 %1420
    %1422 = vrot.lane.b32.xlu0 %v648, 64
    %v1423 = vpop.permute.xlu0 %1422
    %1424 = vrot.lane.b32.xlu0 %v649, 64
    %v1425 = vpop.permute.xlu0 %1424
    %1426 = vrot.lane.b32.xlu0 %v650, 64
    %v1427 = vpop.permute.xlu0 %1426
    %1428 = vrot.lane.b32.xlu0 %v651, 64
    %v1429 = vpop.permute.xlu0 %1428
    %1430 = vrot.lane.b32.xlu0 %v652, 64
    %v1431 = vpop.permute.xlu0 %1430
    %1432 = vrot.lane.b32.xlu0 %v653, 64
    %v1433 = vpop.permute.xlu0 %1432
    %1434 = vrot.lane.b32.xlu0 %v654, 64
    %v1435 = vpop.permute.xlu0 %1434
    %1436 = vrot.lane.b32.xlu0 %v655, 64
    %v1437 = vpop.permute.xlu0 %1436
    %1438 = vrot.lane.b32.xlu0 %v656, 64
    %v1439 = vpop.permute.xlu0 %1438
    %1440 = vrot.lane.b32.xlu0 %v657, 64
    %v1441 = vpop.permute.xlu0 %1440
    %1442 = vrot.lane.b32.xlu0 %v658, 64
    %v1443 = vpop.permute.xlu0 %1442
    %1460 = vmatprep.subr.bf16.mxu0 0
    %1461 = vmatpush1.bf16.msra.mxu0 %v1413
    %1462 = vmatprep.subr.bf16.mxu0 0
    %1463 = vmatpush1.bf16.msra.mxu0 %v1415
    %1464 = vmatprep.subr.bf16.mxu0 0
    %1465 = vmatpush1.bf16.msra.mxu0 %v1417
    %1466 = vmatprep.subr.bf16.mxu0 0
    %1467 = vmatpush1.bf16.msra.mxu0 %v1419
    %1468 = vmatprep.subr.bf16.mxu0 0
    %1469 = vmatpush1.bf16.msra.mxu0 %v1421
    %1470 = vmatprep.subr.bf16.mxu0 0
    %1471 = vmatpush1.bf16.msra.mxu0 %v1423
    %1472 = vmatprep.subr.bf16.mxu0 0
    %1473 = vmatpush1.bf16.msra.mxu0 %v1425
    %1474 = vmatprep.subr.bf16.mxu0 0
    %1475 = vmatpush1.bf16.msra.mxu0 %v1427
    %1476 = vmatprep.subr.bf16.mxu0 0
    %1477 = vmatpush1.bf16.msra.mxu0 %v1429
    %1478 = vmatprep.subr.bf16.mxu0 0
    %1479 = vmatpush1.bf16.msra.mxu0 %v1431
    %1480 = vmatprep.subr.bf16.mxu0 0
    %1481 = vmatpush1.bf16.msra.mxu0 %v1433
    %1482 = vmatprep.subr.bf16.mxu0 0
    %1483 = vmatpush1.bf16.msra.mxu0 %v1435
    %1484 = vmatprep.subr.bf16.mxu0 0
    %1485 = vmatpush1.bf16.msra.mxu0 %v1437
    %1486 = vmatprep.subr.bf16.mxu0 0
    %1487 = vmatpush1.bf16.msra.mxu0 %v1439
    %1488 = vmatprep.subr.bf16.mxu0 0
    %1489 = vmatpush1.bf16.msra.mxu0 %v1441
    %1490 = vmatprep.subr.bf16.mxu0 0
    %1491 = vmatpush1.bf16.msra.mxu0 %v1443
    %1492 = vmatprep.mubr.bf16.mxu0 %v1381
    %1493 = vmatmul.mubr.bf16.gmra.mrb[0].mxu0 %v1380
    %v1494 = vpop.f32.mrb[0].mxu0
    %v1495 = vadd.f32 0.0, %v1494
    %v1496 = vpop.f32.mrb[0].mxu0
    %v1497 = vpop.f32.mrb[0].mxu0
    %v1498 = vadd.f32 0.0, %v1497
    %v1499 = vpop.f32.mrb[0].mxu0
    %1500 = vmatprep.mubr.bf16.mxu0 %v1383
    %1501 = vmatmul.mubr.bf16.gmra.mrb[0].mxu0 %v1382
    %v1502 = vpop.f32.mrb[0].mxu0
    %v1503 = vadd.f32 0.0, %v1502
    %v1504 = vpop.f32.mrb[0].mxu0
    %v1505 = vpop.f32.mrb[0].mxu0
    %v1506 = vadd.f32 0.0, %v1505
    %v1507 = vpop.f32.mrb[0].mxu0
    %1508 = vmatprep.mubr.bf16.mxu0 %v1385
    %1509 = vmatmul.mubr.bf16.gmra.mrb[0].mxu0 %v1384
    %v1510 = vpop.f32.mrb[0].mxu0
    %v1511 = vadd.f32 0.0, %v1510
    %v1512 = vpop.f32.mrb[0].mxu0
    %v1513 = vpop.f32.mrb[0].mxu0
    %v1514 = vadd.f32 0.0, %v1513
    %v1515 = vpop.f32.mrb[0].mxu0
    %1516 = vmatprep.mubr.bf16.mxu0 %v1387
    %1517 = vmatmul.mubr.bf16.gmra.mrb[0].mxu0 %v1386
    %v1518 = vpop.f32.mrb[0].mxu0
    %v1519 = vadd.f32 0.0, %v1518
    %v1520 = vpop.f32.mrb[0].mxu0
    %v1521 = vpop.f32.mrb[0].mxu0
    %v1522 = vadd.f32 0.0, %v1521
    %v1523 = vpop.f32.mrb[0].mxu0
    %1524 = vmatprep.mubr.bf16.mxu0 %v1389
    %1525 = vmatmul.mubr.bf16.gmra.mrb[0].mxu0 %v1388
    %v1526 = vpop.f32.mrb[0].mxu0
    %v1527 = vadd.f32 0.0, %v1526
    %v1528 = vpop.f32.mrb[0].mxu0
    %v1529 = vpop.f32.mrb[0].mxu0
    %v1530 = vadd.f32 0.0, %v1529
    %v1531 = vpop.f32.mrb[0].mxu0
    %1532 = vmatprep.mubr.bf16.mxu0 %v1391
    %1533 = vmatmul.mubr.bf16.gmra.mrb[0].mxu0 %v1390
    %v1534 = vpop.f32.mrb[0].mxu0
    %v1535 = vadd.f32 0.0, %v1534
    %v1536 = vpop.f32.mrb[0].mxu0
    %v1537 = vpop.f32.mrb[0].mxu0
    %v1538 = vadd.f32 0.0, %v1537
    %v1539 = vpop.f32.mrb[0].mxu0
    %1540 = vmatprep.mubr.bf16.mxu0 %v1393
    %1541 = vmatmul.mubr.bf16.gmra.mrb[0].mxu0 %v1392
    %v1542 = vpop.f32.mrb[0].mxu0
    %v1543 = vadd.f32 0.0, %v1542
    %v1544 = vpop.f32.mrb[0].mxu0
    %v1545 = vpop.f32.mrb[0].mxu0
    %v1546 = vadd.f32 0.0, %v1545
    %v1547 = vpop.f32.mrb[0].mxu0
    %1548 = vmatprep.mubr.bf16.mxu0 %v1395
    %1549 = vmatmul.mubr.bf16.gmra.mrb[0].mxu0 %v1394
    %v1550 = vpop.f32.mrb[0].mxu0
    %v1551 = vadd.f32 0.0, %v1550
    %v1552 = vpop.f32.mrb[0].mxu0
    %v1553 = vpop.f32.mrb[0].mxu0
    %v1554 = vadd.f32 0.0, %v1553
    %v1555 = vpop.f32.mrb[0].mxu0
    %1556 = vmatprep.mubr.bf16.mxu0 %v1397
    %1557 = vmatmul.mubr.bf16.gmra.mrb[0].mxu0 %v1396
    %v1558 = vpop.f32.mrb[0].mxu0
    %v1559 = vadd.f32 0.0, %v1558
    %v1560 = vpop.f32.mrb[0].mxu0
    %v1561 = vpop.f32.mrb[0].mxu0
    %v1562 = vadd.f32 0.0, %v1561
    %v1563 = vpop.f32.mrb[0].mxu0
    %1564 = vmatprep.mubr.bf16.mxu0 %v1399
    %1565 = vmatmul.mubr.bf16.gmra.mrb[0].mxu0 %v1398
    %v1566 = vpop.f32.mrb[0].mxu0
    %v1567 = vadd.f32 0.0, %v1566
    %v1568 = vpop.f32.mrb[0].mxu0
    %v1569 = vpop.f32.mrb[0].mxu0
    %v1570 = vadd.f32 0.0, %v1569
    %v1571 = vpop.f32.mrb[0].mxu0
    %1572 = vmatprep.mubr.bf16.mxu0 %v1401
    %1573 = vmatmul.mubr.bf16.gmra.mrb[0].mxu0 %v1400
    %v1574 = vpop.f32.mrb[0].mxu0
    %v1575 = vadd.f32 0.0, %v1574
    %v1576 = vpop.f32.mrb[0].mxu0
    %v1577 = vpop.f32.mrb[0].mxu0
    %v1578 = vadd.f32 0.0, %v1577
    %v1579 = vpop.f32.mrb[0].mxu0
    %1580 = vmatprep.mubr.bf16.mxu0 %v1403
    %1581 = vmatmul.mubr.bf16.gmra.mrb[0].mxu0 %v1402
    %v1582 = vpop.f32.mrb[0].mxu0
    %v1583 = vadd.f32 0.0, %v1582
    %v1584 = vpop.f32.mrb[0].mxu0
    %v1585 = vpop.f32.mrb[0].mxu0
    %v1586 = vadd.f32 0.0, %v1585
    %v1587 = vpop.f32.mrb[0].mxu0
    %1588 = vmatprep.mubr.bf16.mxu0 %v1405
    %1589 = vmatmul.mubr.bf16.gmra.mrb[0].mxu0 %v1404
    %v1590 = vpop.f32.mrb[0].mxu0
    %v1591 = vadd.f32 0.0, %v1590
    %v1592 = vpop.f32.mrb[0].mxu0
    %v1593 = vpop.f32.mrb[0].mxu0
    %v1594 = vadd.f32 0.0, %v1593
    %v1595 = vpop.f32.mrb[0].mxu0
    %1596 = vmatprep.mubr.bf16.mxu0 %v1407
    %1597 = vmatmul.mubr.bf16.gmra.mrb[0].mxu0 %v1406
    %v1598 = vpop.f32.mrb[0].mxu0
    %v1599 = vadd.f32 0.0, %v1598
    %v1600 = vpop.f32.mrb[0].mxu0
    %v1601 = vpop.f32.mrb[0].mxu0
    %v1602 = vadd.f32 0.0, %v1601
    %v1603 = vpop.f32.mrb[0].mxu0
    %1604 = vmatprep.mubr.bf16.mxu0 %v1409
    %1605 = vmatmul.mubr.bf16.gmra.mrb[0].mxu0 %v1408
    %v1606 = vpop.f32.mrb[0].mxu0
    %v1607 = vadd.f32 0.0, %v1606
    %v1608 = vpop.f32.mrb[0].mxu0
    %v1609 = vpop.f32.mrb[0].mxu0
    %v1610 = vadd.f32 0.0, %v1609
    %v1611 = vpop.f32.mrb[0].mxu0
    %1612 = vmatprep.mubr.bf16.mxu0 %v1411
    %1613 = vmatmul.mubr.bf16.gmra.mrb[0].mxu0 %v1410
    %v1614 = vpop.f32.mrb[0].mxu0
    %v1615 = vadd.f32 0.0, %v1614
    %v1616 = vpop.f32.mrb[0].mxu0
    %v1617 = vpop.f32.mrb[0].mxu0
    %v1618 = vadd.f32 0.0, %v1617
    %v1619 = vpop.f32.mrb[0].mxu0
    %1620 = vdwg.mxu0
    %v1621 = vrcp.pop %v1286
    %v1622 = vrcp.pop %v1289
    %v1623 = vrcp.pop %v1292
    %v1624 = vrcp.pop %v1295
    %v1625 = vrcp.pop %v1298
    %v1626 = vrcp.pop %v1301
    %v1627 = vrcp.pop %v1304
    %v1628 = vrcp.pop %v1307
    %v1629 = vrcp.pop %v1310
    %v1630 = vrcp.pop %v1313
    %v1631 = vrcp.pop %v1316
    %v1632 = vrcp.pop %v1319
    %v1633 = vrcp.pop %v1322
    %v1634 = vrcp.pop %v1325
    %v1635 = vrcp.pop %v1328
    %v1636 = vrcp.pop %v1331
    %v1637 = vrcp.pop %v1334
    %v1638 = vrcp.pop %v1337
    %v1639 = vrcp.pop %v1340
    %v1640 = vrcp.pop %v1343
    %v1641 = vrcp.pop %v1346
    %v1642 = vrcp.pop %v1349
    %v1643 = vrcp.pop %v1352
    %v1644 = vrcp.pop %v1355
    %v1645 = vrcp.pop %v1358
    %v1646 = vrcp.pop %v1361
    %v1647 = vrcp.pop %v1364
    %v1648 = vrcp.pop %v1367
    %v1649 = vrcp.pop %v1370
    %v1650 = vrcp.pop %v1373
    %v1651 = vrcp.pop %v1376
    %v1652 = vrcp.pop %v1379
    %v1653 = vmul.f32 %v1495, %v1621
    %v1654 = vmul.f32 %v1498, %v1622
    %v1655 = vmul.f32 %v1503, %v1623
    %v1656 = vmul.f32 %v1506, %v1624
    %v1657 = vmul.f32 %v1511, %v1625
    %v1658 = vmul.f32 %v1514, %v1626
    %v1659 = vmul.f32 %v1519, %v1627
    %v1660 = vmul.f32 %v1522, %v1628
    %v1661 = vmul.f32 %v1527, %v1629
    %v1662 = vmul.f32 %v1530, %v1630
    %v1663 = vmul.f32 %v1535, %v1631
    %v1664 = vmul.f32 %v1538, %v1632
    %v1665 = vmul.f32 %v1543, %v1633
    %v1666 = vmul.f32 %v1546, %v1634
    %v1667 = vmul.f32 %v1551, %v1635
    %v1668 = vmul.f32 %v1554, %v1636
    %v1669 = vmul.f32 %v1559, %v1637
    %v1670 = vmul.f32 %v1562, %v1638
    %v1671 = vmul.f32 %v1567, %v1639
    %v1672 = vmul.f32 %v1570, %v1640
    %v1673 = vmul.f32 %v1575, %v1641
    %v1674 = vmul.f32 %v1578, %v1642
    %v1675 = vmul.f32 %v1583, %v1643
    %v1676 = vmul.f32 %v1586, %v1644
    %v1677 = vmul.f32 %v1591, %v1645
    %v1678 = vmul.f32 %v1594, %v1646
    %v1679 = vmul.f32 %v1599, %v1647
    %v1680 = vmul.f32 %v1602, %v1648
    %v1681 = vmul.f32 %v1607, %v1649
    %v1682 = vmul.f32 %v1610, %v1650
    %v1683 = vmul.f32 %v1615, %v1651
    %v1684 = vmul.f32 %v1618, %v1652
    %v1685 = vpack.c.bf16 %v1654, %v1653
    %v1686 = vpack.c.bf16 %v1656, %v1655
    %v1687 = vpack.c.bf16 %v1658, %v1657
    %v1688 = vpack.c.bf16 %v1660, %v1659
    %v1689 = vpack.c.bf16 %v1662, %v1661
    %v1690 = vpack.c.bf16 %v1664, %v1663
    %v1691 = vpack.c.bf16 %v1666, %v1665
    %v1692 = vpack.c.bf16 %v1668, %v1667
    %v1693 = vpack.c.bf16 %v1670, %v1669
    %v1694 = vpack.c.bf16 %v1672, %v1671
    %v1695 = vpack.c.bf16 %v1674, %v1673
    %v1696 = vpack.c.bf16 %v1676, %v1675
    %v1697 = vpack.c.bf16 %v1678, %v1677
    %v1698 = vpack.c.bf16 %v1680, %v1679
    %v1699 = vpack.c.bf16 %v1682, %v1681
    %v1700 = vpack.c.bf16 %v1684, %v1683
    %v1701 = vld [vmem:[#allocation7] sm:$0xf]
    %v1702 = vld [vmem:[#allocation7 + $0x4] sm:$0xf]
    %v1703 = vld [vmem:[#allocation7 + $0x8] sm:$0xf]
    %v1704 = vld [vmem:[#allocation7 + $0xc] sm:$0xf]
    %v1705 = vld [vmem:[#allocation8] sm:$0x1]
    %v1707 = vlaneseq
    %v1708 = vshrl.u32 %v1707, 7
    %v1709 = vsub.s32 0, %v1708
    %v1710 = vrot.slane %v1705, %v1709
    %v1716 = vunpack.c.l.b16 %v1701
    %v1717 = vunpack.c.l.b16 %v1702
    %v1718 = vunpack.c.l.b16 %v1703
    %v1719 = vunpack.c.l.b16 %v1704
    %v1720 = vpack.c.b16 %v1717, %v1716
    %v1721 = vpack.c.b16 %v1719, %v1718
    %v1725 = vsel %vm433, %v1685, 0
    %v1728 = vsel %vm433, %v1686, 0
    %v1731 = vsel %vm433, %v1687, 0
    %v1734 = vsel %vm433, %v1688, 0
    %v1737 = vsel %vm433, %v1689, 0
    %v1740 = vsel %vm433, %v1690, 0
    %v1743 = vsel %vm433, %v1691, 0
    %v1746 = vsel %vm433, %v1692, 0
    %v1749 = vsel %vm433, %v1693, 0
    %v1752 = vsel %vm433, %v1694, 0
    %v1755 = vsel %vm433, %v1695, 0
    %v1758 = vsel %vm433, %v1696, 0
    %v1761 = vsel %vm433, %v1697, 0
    %v1764 = vsel %vm433, %v1698, 0
    %v1767 = vsel %vm433, %v1699, 0
    %v1770 = vsel %vm433, %v1700, 0
    %1772 = vmatprep.subr.bf16.mxu0 0
    %1773 = vmatpush1.bf16.msra.mxu0 %v1720
    %1774 = vmatprep.subr.bf16.mxu0 0
    %1775 = vmatpush1.bf16.msra.mxu0 %v1721
    %1776 = vmatprep.subr.bf16.mxu0 0
    %1777 = vmatpush1.bf16.msra.mxu0 0
    %1778 = vmatprep.subr.bf16.mxu0 0
    %1779 = vmatpush1.bf16.msra.mxu0 0
    %1780 = vmatprep.subr.bf16.mxu0 0
    %1781 = vmatpush1.bf16.msra.mxu0 0
    %1782 = vmatprep.subr.bf16.mxu0 0
    %1783 = vmatpush1.bf16.msra.mxu0 0
    %1784 = vmatprep.subr.bf16.mxu0 0
    %1785 = vmatpush1.bf16.msra.mxu0 0
    %1786 = vmatprep.subr.bf16.mxu0 0
    %1787 = vmatpush1.bf16.msra.mxu0 0
    %1788 = vmatprep.subr.bf16.mxu0 0
    %1789 = vmatpush1.bf16.msra.mxu0 0
    %1790 = vmatprep.subr.bf16.mxu0 0
    %1791 = vmatpush1.bf16.msra.mxu0 0
    %1792 = vmatprep.subr.bf16.mxu0 0
    %1793 = vmatpush1.bf16.msra.mxu0 0
    %1794 = vmatprep.subr.bf16.mxu0 0
    %1795 = vmatpush1.bf16.msra.mxu0 0
    %1796 = vmatprep.subr.bf16.mxu0 0
    %1797 = vmatpush1.bf16.msra.mxu0 0
    %1798 = vmatprep.subr.bf16.mxu0 0
    %1799 = vmatpush1.bf16.msra.mxu0 0
    %1800 = vmatprep.subr.bf16.mxu0 0
    %1801 = vmatpush1.bf16.msra.mxu0 0
    %1802 = vmatprep.subr.bf16.mxu0 0
    %1803 = vmatpush1.bf16.msra.mxu0 0
    %1804 = vmatprep.mubr.bf16.mxu0 0
    %1805 = vmatmul.mubr.bf16.gmra.mrb[0].mxu0 %v1725
    %v1806 = vpop.f32.mrb[0].mxu0
    %v1807 = vadd.f32 %v1710, %v1806
    %v1808 = vpop.f32.mrb[0].mxu0
    %v1809 = vpop.f32.mrb[0].mxu0
    %v1810 = vadd.f32 %v1710, %v1809
    %v1811 = vpop.f32.mrb[0].mxu0
    %1812 = vmatprep.mubr.bf16.mxu0 0
    %1813 = vmatmul.mubr.bf16.gmra.mrb[0].mxu0 %v1728
    %v1814 = vpop.f32.mrb[0].mxu0
    %v1815 = vadd.f32 %v1710, %v1814
    %v1816 = vpop.f32.mrb[0].mxu0
    %v1817 = vpop.f32.mrb[0].mxu0
    %v1818 = vadd.f32 %v1710, %v1817
    %v1819 = vpop.f32.mrb[0].mxu0
    %1820 = vmatprep.mubr.bf16.mxu0 0
    %1821 = vmatmul.mubr.bf16.gmra.mrb[0].mxu0 %v1731
    %v1822 = vpop.f32.mrb[0].mxu0
    %v1823 = vadd.f32 %v1710, %v1822
    %v1824 = vpop.f32.mrb[0].mxu0
    %v1825 = vpop.f32.mrb[0].mxu0
    %v1826 = vadd.f32 %v1710, %v1825
    %v1827 = vpop.f32.mrb[0].mxu0
    %1828 = vmatprep.mubr.bf16.mxu0 0
    %1829 = vmatmul.mubr.bf16.gmra.mrb[0].mxu0 %v1734
    %v1830 = vpop.f32.mrb[0].mxu0
    %v1831 = vadd.f32 %v1710, %v1830
    %v1832 = vpop.f32.mrb[0].mxu0
    %v1833 = vpop.f32.mrb[0].mxu0
    %v1834 = vadd.f32 %v1710, %v1833
    %v1835 = vpop.f32.mrb[0].mxu0
    %1836 = vmatprep.mubr.bf16.mxu0 0
    %1837 = vmatmul.mubr.bf16.gmra.mrb[0].mxu0 %v1737
    %v1838 = vpop.f32.mrb[0].mxu0
    %v1839 = vadd.f32 %v1710, %v1838
    %v1840 = vpop.f32.mrb[0].mxu0
    %v1841 = vpop.f32.mrb[0].mxu0
    %v1842 = vadd.f32 %v1710, %v1841
    %v1843 = vpop.f32.mrb[0].mxu0
    %1844 = vmatprep.mubr.bf16.mxu0 0
    %1845 = vmatmul.mubr.bf16.gmra.mrb[0].mxu0 %v1740
    %v1846 = vpop.f32.mrb[0].mxu0
    %v1847 = vadd.f32 %v1710, %v1846
    %v1848 = vpop.f32.mrb[0].mxu0
    %v1849 = vpop.f32.mrb[0].mxu0
    %v1850 = vadd.f32 %v1710, %v1849
    %v1851 = vpop.f32.mrb[0].mxu0
    %1852 = vmatprep.mubr.bf16.mxu0 0
    %1853 = vmatmul.mubr.bf16.gmra.mrb[0].mxu0 %v1743
    %v1854 = vpop.f32.mrb[0].mxu0
    %v1855 = vadd.f32 %v1710, %v1854
    %v1856 = vpop.f32.mrb[0].mxu0
    %v1857 = vpop.f32.mrb[0].mxu0
    %v1858 = vadd.f32 %v1710, %v1857
    %v1859 = vpop.f32.mrb[0].mxu0
    %1860 = vmatprep.mubr.bf16.mxu0 0
    %1861 = vmatmul.mubr.bf16.gmra.mrb[0].mxu0 %v1746
    %v1862 = vpop.f32.mrb[0].mxu0
    %v1863 = vadd.f32 %v1710, %v1862
    %v1864 = vpop.f32.mrb[0].mxu0
    %v1865 = vpop.f32.mrb[0].mxu0
    %v1866 = vadd.f32 %v1710, %v1865
    %v1867 = vpop.f32.mrb[0].mxu0
    %1868 = vmatprep.mubr.bf16.mxu0 0
    %1869 = vmatmul.mubr.bf16.gmra.mrb[0].mxu0 %v1749
    %v1870 = vpop.f32.mrb[0].mxu0
    %v1871 = vadd.f32 %v1710, %v1870
    %v1872 = vpop.f32.mrb[0].mxu0
    %v1873 = vpop.f32.mrb[0].mxu0
    %v1874 = vadd.f32 %v1710, %v1873
    %v1875 = vpop.f32.mrb[0].mxu0
    %1876 = vmatprep.mubr.bf16.mxu0 0
    %1877 = vmatmul.mubr.bf16.gmra.mrb[0].mxu0 %v1752
    %v1878 = vpop.f32.mrb[0].mxu0
    %v1879 = vadd.f32 %v1710, %v1878
    %v1880 = vpop.f32.mrb[0].mxu0
    %v1881 = vpop.f32.mrb[0].mxu0
    %v1882 = vadd.f32 %v1710, %v1881
    %v1883 = vpop.f32.mrb[0].mxu0
    %1884 = vmatprep.mubr.bf16.mxu0 0
    %1885 = vmatmul.mubr.bf16.gmra.mrb[0].mxu0 %v1755
    %v1886 = vpop.f32.mrb[0].mxu0
    %v1887 = vadd.f32 %v1710, %v1886
    %v1888 = vpop.f32.mrb[0].mxu0
    %v1889 = vpop.f32.mrb[0].mxu0
    %v1890 = vadd.f32 %v1710, %v1889
    %v1891 = vpop.f32.mrb[0].mxu0
    %1892 = vmatprep.mubr.bf16.mxu0 0
    %1893 = vmatmul.mubr.bf16.gmra.mrb[0].mxu0 %v1758
    %v1894 = vpop.f32.mrb[0].mxu0
    %v1895 = vadd.f32 %v1710, %v1894
    %v1896 = vpop.f32.mrb[0].mxu0
    %v1897 = vpop.f32.mrb[0].mxu0
    %v1898 = vadd.f32 %v1710, %v1897
    %v1899 = vpop.f32.mrb[0].mxu0
    %1900 = vmatprep.mubr.bf16.mxu0 0
    %1901 = vmatmul.mubr.bf16.gmra.mrb[0].mxu0 %v1761
    %v1902 = vpop.f32.mrb[0].mxu0
    %v1903 = vadd.f32 %v1710, %v1902
    %v1904 = vpop.f32.mrb[0].mxu0
    %v1905 = vpop.f32.mrb[0].mxu0
    %v1906 = vadd.f32 %v1710, %v1905
    %v1907 = vpop.f32.mrb[0].mxu0
    %1908 = vmatprep.mubr.bf16.mxu0 0
    %1909 = vmatmul.mubr.bf16.gmra.mrb[0].mxu0 %v1764
    %v1910 = vpop.f32.mrb[0].mxu0
    %v1911 = vadd.f32 %v1710, %v1910
    %v1912 = vpop.f32.mrb[0].mxu0
    %v1913 = vpop.f32.mrb[0].mxu0
    %v1914 = vadd.f32 %v1710, %v1913
    %v1915 = vpop.f32.mrb[0].mxu0
    %1916 = vmatprep.mubr.bf16.mxu0 0
    %1917 = vmatmul.mubr.bf16.gmra.mrb[0].mxu0 %v1767
    %v1918 = vpop.f32.mrb[0].mxu0
    %v1919 = vadd.f32 %v1710, %v1918
    %v1920 = vpop.f32.mrb[0].mxu0
    %v1921 = vpop.f32.mrb[0].mxu0
    %v1922 = vadd.f32 %v1710, %v1921
    %v1923 = vpop.f32.mrb[0].mxu0
    %1924 = vmatprep.mubr.bf16.mxu0 0
    %1925 = vmatmul.mubr.bf16.gmra.mrb[0].mxu0 %v1770
    %v1926 = vpop.f32.mrb[0].mxu0
    %v1927 = vadd.f32 %v1710, %v1926
    %v1928 = vpop.f32.mrb[0].mxu0
    %v1929 = vpop.f32.mrb[0].mxu0
    %v1930 = vadd.f32 %v1710, %v1929
    %v1931 = vpop.f32.mrb[0].mxu0
    %1932 = vdwg.mxu0
    %v1933 = vadd.f32 %v206, %v1807
    %v1934 = vadd.f32 %v207, %v1810
    %v1935 = vadd.f32 %v208, %v1815
    %v1936 = vadd.f32 %v209, %v1818
    %v1937 = vadd.f32 %v210, %v1823
    %v1938 = vadd.f32 %v211, %v1826
    %v1939 = vadd.f32 %v212, %v1831
    %v1940 = vadd.f32 %v213, %v1834
    %v1941 = vadd.f32 %v214, %v1839
    %v1942 = vadd.f32 %v215, %v1842
    %v1943 = vadd.f32 %v216, %v1847
    %v1944 = vadd.f32 %v217, %v1850
    %v1945 = vadd.f32 %v218, %v1855
    %v1946 = vadd.f32 %v219, %v1858
    %v1947 = vadd.f32 %v220, %v1863
    %v1948 = vadd.f32 %v221, %v1866
    %v1949 = vadd.f32 %v222, %v1871
    %v1950 = vadd.f32 %v223, %v1874
    %v1951 = vadd.f32 %v224, %v1879
    %v1952 = vadd.f32 %v225, %v1882
    %v1953 = vadd.f32 %v226, %v1887
    %v1954 = vadd.f32 %v227, %v1890
    %v1955 = vadd.f32 %v228, %v1895
    %v1956 = vadd.f32 %v229, %v1898
    %v1957 = vadd.f32 %v230, %v1903
    %v1958 = vadd.f32 %v231, %v1906
    %v1959 = vadd.f32 %v232, %v1911
    %v1960 = vadd.f32 %v233, %v1914
    %v1961 = vadd.f32 %v234, %v1919
    %v1962 = vadd.f32 %v235, %v1922
    %v1963 = vadd.f32 %v236, %v1927
    %v1964 = vadd.f32 %v237, %v1930
    %v1965 = vld [vmem:[%s13] sm:$0x1]
    %v1966 = vld [vmem:[%s14] sm:$0x1]
    %v1967 = vsel %vm433, %v1933, 0.0
    %1968 = vadd.xlane.f32.xlu0 %v1967
    %v1969 = vpop.xlane.xlu0 %1968
    %v1970 = vsel %vm433, %v1934, 0.0
    %1971 = vadd.xlane.f32.xlu0 %v1970
    %v1972 = vpop.xlane.xlu0 %1971
    %v1973 = vsel %vm433, %v1935, 0.0
    %1974 = vadd.xlane.f32.xlu0 %v1973
    %v1975 = vpop.xlane.xlu0 %1974
    %v1976 = vsel %vm433, %v1936, 0.0
    %1977 = vadd.xlane.f32.xlu0 %v1976
    %v1978 = vpop.xlane.xlu0 %1977
    %v1979 = vsel %vm433, %v1937, 0.0
    %1980 = vadd.xlane.f32.xlu0 %v1979
    %v1981 = vpop.xlane.xlu0 %1980
    %v1982 = vsel %vm433, %v1938, 0.0
    %1983 = vadd.xlane.f32.xlu0 %v1982
    %v1984 = vpop.xlane.xlu0 %1983
    %v1985 = vsel %vm433, %v1939, 0.0
    %1986 = vadd.xlane.f32.xlu0 %v1985
    %v1987 = vpop.xlane.xlu0 %1986
    %v1988 = vsel %vm433, %v1940, 0.0
    %1989 = vadd.xlane.f32.xlu0 %v1988
    %v1990 = vpop.xlane.xlu0 %1989
    %v1991 = vsel %vm433, %v1941, 0.0
    %1992 = vadd.xlane.f32.xlu0 %v1991
    %v1993 = vpop.xlane.xlu0 %1992
    %v1994 = vsel %vm433, %v1942, 0.0
    %1995 = vadd.xlane.f32.xlu0 %v1994
    %v1996 = vpop.xlane.xlu0 %1995
    %v1997 = vsel %vm433, %v1943, 0.0
    %1998 = vadd.xlane.f32.xlu0 %v1997
    %v1999 = vpop.xlane.xlu0 %1998
    %v2000 = vsel %vm433, %v1944, 0.0
    %2001 = vadd.xlane.f32.xlu0 %v2000
    %v2002 = vpop.xlane.xlu0 %2001
    %v2003 = vsel %vm433, %v1945, 0.0
    %2004 = vadd.xlane.f32.xlu0 %v2003
    %v2005 = vpop.xlane.xlu0 %2004
    %v2006 = vsel %vm433, %v1946, 0.0
    %2007 = vadd.xlane.f32.xlu0 %v2006
    %v2008 = vpop.xlane.xlu0 %2007
    %v2009 = vsel %vm433, %v1947, 0.0
    %2010 = vadd.xlane.f32.xlu0 %v2009
    %v2011 = vpop.xlane.xlu0 %2010
    %v2012 = vsel %vm433, %v1948, 0.0
    %2013 = vadd.xlane.f32.xlu0 %v2012
    %v2014 = vpop.xlane.xlu0 %2013
    %v2015 = vsel %vm433, %v1949, 0.0
    %2016 = vadd.xlane.f32.xlu0 %v2015
    %v2017 = vpop.xlane.xlu0 %2016
    %v2018 = vsel %vm433, %v1950, 0.0
    %2019 = vadd.xlane.f32.xlu0 %v2018
    %v2020 = vpop.xlane.xlu0 %2019
    %v2021 = vsel %vm433, %v1951, 0.0
    %2022 = vadd.xlane.f32.xlu0 %v2021
    %v2023 = vpop.xlane.xlu0 %2022
    %v2024 = vsel %vm433, %v1952, 0.0
    %2025 = vadd.xlane.f32.xlu0 %v2024
    %v2026 = vpop.xlane.xlu0 %2025
    %v2027 = vsel %vm433, %v1953, 0.0
    %2028 = vadd.xlane.f32.xlu0 %v2027
    %v2029 = vpop.xlane.xlu0 %2028
    %v2030 = vsel %vm433, %v1954, 0.0
    %2031 = vadd.xlane.f32.xlu0 %v2030
    %v2032 = vpop.xlane.xlu0 %2031
    %v2033 = vsel %vm433, %v1955, 0.0
    %2034 = vadd.xlane.f32.xlu0 %v2033
    %v2035 = vpop.xlane.xlu0 %2034
    %v2036 = vsel %vm433, %v1956, 0.0
    %2037 = vadd.xlane.f32.xlu0 %v2036
    %v2038 = vpop.xlane.xlu0 %2037
    %v2039 = vsel %vm433, %v1957, 0.0
    %2040 = vadd.xlane.f32.xlu0 %v2039
    %v2041 = vpop.xlane.xlu0 %2040
    %v2042 = vsel %vm433, %v1958, 0.0
    %2043 = vadd.xlane.f32.xlu0 %v2042
    %v2044 = vpop.xlane.xlu0 %2043
    %v2045 = vsel %vm433, %v1959, 0.0
    %2046 = vadd.xlane.f32.xlu0 %v2045
    %v2047 = vpop.xlane.xlu0 %2046
    %v2048 = vsel %vm433, %v1960, 0.0
    %2049 = vadd.xlane.f32.xlu0 %v2048
    %v2050 = vpop.xlane.xlu0 %2049
    %v2051 = vsel %vm433, %v1961, 0.0
    %2052 = vadd.xlane.f32.xlu0 %v2051
    %v2053 = vpop.xlane.xlu0 %2052
    %v2054 = vsel %vm433, %v1962, 0.0
    %2055 = vadd.xlane.f32.xlu0 %v2054
    %v2056 = vpop.xlane.xlu0 %2055
    %v2057 = vsel %vm433, %v1963, 0.0
    %2058 = vadd.xlane.f32.xlu0 %v2057
    %v2059 = vpop.xlane.xlu0 %2058
    %v2060 = vsel %vm433, %v1964, 0.0
    %2061 = vadd.xlane.f32.xlu0 %v2060
    %v2062 = vpop.xlane.xlu0 %2061
    %v2063 = vrcp.pop 32.0
    %v2064 = vmul.f32 %v1969, %v2063
    %v2065 = vmul.f32 %v1972, %v2063
    %v2066 = vmul.f32 %v1975, %v2063
    %v2067 = vmul.f32 %v1978, %v2063
    %v2068 = vmul.f32 %v1981, %v2063
    %v2069 = vmul.f32 %v1984, %v2063
    %v2070 = vmul.f32 %v1987, %v2063
    %v2071 = vmul.f32 %v1990, %v2063
    %v2072 = vmul.f32 %v1993, %v2063
    %v2073 = vmul.f32 %v1996, %v2063
    %v2074 = vmul.f32 %v1999, %v2063
    %v2075 = vmul.f32 %v2002, %v2063
    %v2076 = vmul.f32 %v2005, %v2063
    %v2077 = vmul.f32 %v2008, %v2063
    %v2078 = vmul.f32 %v2011, %v2063
    %v2079 = vmul.f32 %v2014, %v2063
    %v2080 = vmul.f32 %v2017, %v2063
    %v2081 = vmul.f32 %v2020, %v2063
    %v2082 = vmul.f32 %v2023, %v2063
    %v2083 = vmul.f32 %v2026, %v2063
    %v2084 = vmul.f32 %v2029, %v2063
    %v2085 = vmul.f32 %v2032, %v2063
    %v2086 = vmul.f32 %v2035, %v2063
    %v2087 = vmul.f32 %v2038, %v2063
    %v2088 = vmul.f32 %v2041, %v2063
    %v2089 = vmul.f32 %v2044, %v2063
    %v2090 = vmul.f32 %v2047, %v2063
    %v2091 = vmul.f32 %v2050, %v2063
    %v2092 = vmul.f32 %v2053, %v2063
    %v2093 = vmul.f32 %v2056, %v2063
    %v2094 = vmul.f32 %v2059, %v2063
    %v2095 = vmul.f32 %v2062, %v2063
    %v2096 = vsub.f32 %v1933, %v2064
    %v2097 = vsub.f32 %v1934, %v2065
    %v2098 = vsub.f32 %v1935, %v2066
    %v2099 = vsub.f32 %v1936, %v2067
    %v2100 = vsub.f32 %v1937, %v2068
    %v2101 = vsub.f32 %v1938, %v2069
    %v2102 = vsub.f32 %v1939, %v2070
    %v2103 = vsub.f32 %v1940, %v2071
    %v2104 = vsub.f32 %v1941, %v2072
    %v2105 = vsub.f32 %v1942, %v2073
    %v2106 = vsub.f32 %v1943, %v2074
    %v2107 = vsub.f32 %v1944, %v2075
    %v2108 = vsub.f32 %v1945, %v2076
    %v2109 = vsub.f32 %v1946, %v2077
    %v2110 = vsub.f32 %v1947, %v2078
    %v2111 = vsub.f32 %v1948, %v2079
    %v2112 = vsub.f32 %v1949, %v2080
    %v2113 = vsub.f32 %v1950, %v2081
    %v2114 = vsub.f32 %v1951, %v2082
    %v2115 = vsub.f32 %v1952, %v2083
    %v2116 = vsub.f32 %v1953, %v2084
    %v2117 = vsub.f32 %v1954, %v2085
    %v2118 = vsub.f32 %v1955, %v2086
    %v2119 = vsub.f32 %v1956, %v2087
    %v2120 = vsub.f32 %v1957, %v2088
    %v2121 = vsub.f32 %v1958, %v2089
    %v2122 = vsub.f32 %v1959, %v2090
    %v2123 = vsub.f32 %v1960, %v2091
    %v2124 = vsub.f32 %v1961, %v2092
    %v2125 = vsub.f32 %v1962, %v2093
    %v2126 = vsub.f32 %v1963, %v2094
    %v2127 = vsub.f32 %v1964, %v2095
    %v2128 = vmul.f32 %v2096, %v2096
    %v2129 = vmul.f32 %v2097, %v2097
    %v2130 = vmul.f32 %v2098, %v2098
    %v2131 = vmul.f32 %v2099, %v2099
    %v2132 = vmul.f32 %v2100, %v2100
    %v2133 = vmul.f32 %v2101, %v2101
    %v2134 = vmul.f32 %v2102, %v2102
    %v2135 = vmul.f32 %v2103, %v2103
    %v2136 = vmul.f32 %v2104, %v2104
    %v2137 = vmul.f32 %v2105, %v2105
    %v2138 = vmul.f32 %v2106, %v2106
    %v2139 = vmul.f32 %v2107, %v2107
    %v2140 = vmul.f32 %v2108, %v2108
    %v2141 = vmul.f32 %v2109, %v2109
    %v2142 = vmul.f32 %v2110, %v2110
    %v2143 = vmul.f32 %v2111, %v2111
    %v2144 = vmul.f32 %v2112, %v2112
    %v2145 = vmul.f32 %v2113, %v2113
    %v2146 = vmul.f32 %v2114, %v2114
    %v2147 = vmul.f32 %v2115, %v2115
    %v2148 = vmul.f32 %v2116, %v2116
    %v2149 = vmul.f32 %v2117, %v2117
    %v2150 = vmul.f32 %v2118, %v2118
    %v2151 = vmul.f32 %v2119, %v2119
    %v2152 = vmul.f32 %v2120, %v2120
    %v2153 = vmul.f32 %v2121, %v2121
    %v2154 = vmul.f32 %v2122, %v2122
    %v2155 = vmul.f32 %v2123, %v2123
    %v2156 = vmul.f32 %v2124, %v2124
    %v2157 = vmul.f32 %v2125, %v2125
    %v2158 = vmul.f32 %v2126, %v2126
    %v2159 = vmul.f32 %v2127, %v2127
    %v2160 = vsel %vm433, %v2128, 0.0
    %2161 = vadd.xlane.f32.xlu0 %v2160
    %v2162 = vpop.xlane.xlu0 %2161
    %v2163 = vsel %vm433, %v2129, 0.0
    %2164 = vadd.xlane.f32.xlu0 %v2163
    %v2165 = vpop.xlane.xlu0 %2164
    %v2166 = vsel %vm433, %v2130, 0.0
    %2167 = vadd.xlane.f32.xlu0 %v2166
    %v2168 = vpop.xlane.xlu0 %2167
    %v2169 = vsel %vm433, %v2131, 0.0
    %2170 = vadd.xlane.f32.xlu0 %v2169
    %v2171 = vpop.xlane.xlu0 %2170
    %v2172 = vsel %vm433, %v2132, 0.0
    %2173 = vadd.xlane.f32.xlu0 %v2172
    %v2174 = vpop.xlane.xlu0 %2173
    %v2175 = vsel %vm433, %v2133, 0.0
    %2176 = vadd.xlane.f32.xlu0 %v2175
    %v2177 = vpop.xlane.xlu0 %2176
    %v2178 = vsel %vm433, %v2134, 0.0
    %2179 = vadd.xlane.f32.xlu0 %v2178
    %v2180 = vpop.xlane.xlu0 %2179
    %v2181 = vsel %vm433, %v2135, 0.0
    %2182 = vadd.xlane.f32.xlu0 %v2181
    %v2183 = vpop.xlane.xlu0 %2182
    %v2184 = vsel %vm433, %v2136, 0.0
    %2185 = vadd.xlane.f32.xlu0 %v2184
    %v2186 = vpop.xlane.xlu0 %2185
    %v2187 = vsel %vm433, %v2137, 0.0
    %2188 = vadd.xlane.f32.xlu0 %v2187
    %v2189 = vpop.xlane.xlu0 %2188
    %v2190 = vsel %vm433, %v2138, 0.0
    %2191 = vadd.xlane.f32.xlu0 %v2190
    %v2192 = vpop.xlane.xlu0 %2191
    %v2193 = vsel %vm433, %v2139, 0.0
    %2194 = vadd.xlane.f32.xlu0 %v2193
    %v2195 = vpop.xlane.xlu0 %2194
    %v2196 = vsel %vm433, %v2140, 0.0
    %2197 = vadd.xlane.f32.xlu0 %v2196
    %v2198 = vpop.xlane.xlu0 %2197
    %v2199 = vsel %vm433, %v2141, 0.0
    %2200 = vadd.xlane.f32.xlu0 %v2199
    %v2201 = vpop.xlane.xlu0 %2200
    %v2202 = vsel %vm433, %v2142, 0.0
    %2203 = vadd.xlane.f32.xlu0 %v2202
    %v2204 = vpop.xlane.xlu0 %2203
    %v2205 = vsel %vm433, %v2143, 0.0
    %2206 = vadd.xlane.f32.xlu0 %v2205
    %v2207 = vpop.xlane.xlu0 %2206
    %v2208 = vsel %vm433, %v2144, 0.0
    %2209 = vadd.xlane.f32.xlu0 %v2208
    %v2210 = vpop.xlane.xlu0 %2209
    %v2211 = vsel %vm433, %v2145, 0.0
    %2212 = vadd.xlane.f32.xlu0 %v2211
    %v2213 = vpop.xlane.xlu0 %2212
    %v2214 = vsel %vm433, %v2146, 0.0
    %2215 = vadd.xlane.f32.xlu0 %v2214
    %v2216 = vpop.xlane.xlu0 %2215
    %v2217 = vsel %vm433, %v2147, 0.0
    %2218 = vadd.xlane.f32.xlu0 %v2217
    %v2219 = vpop.xlane.xlu0 %2218
    %v2220 = vsel %vm433, %v2148, 0.0
    %2221 = vadd.xlane.f32.xlu0 %v2220
    %v2222 = vpop.xlane.xlu0 %2221
    %v2223 = vsel %vm433, %v2149, 0.0
    %2224 = vadd.xlane.f32.xlu0 %v2223
    %v2225 = vpop.xlane.xlu0 %2224
    %v2226 = vsel %vm433, %v2150, 0.0
    %2227 = vadd.xlane.f32.xlu0 %v2226
    %v2228 = vpop.xlane.xlu0 %2227
    %v2229 = vsel %vm433, %v2151, 0.0
    %2230 = vadd.xlane.f32.xlu0 %v2229
    %v2231 = vpop.xlane.xlu0 %2230
    %v2232 = vsel %vm433, %v2152, 0.0
    %2233 = vadd.xlane.f32.xlu0 %v2232
    %v2234 = vpop.xlane.xlu0 %2233
    %v2235 = vsel %vm433, %v2153, 0.0
    %2236 = vadd.xlane.f32.xlu0 %v2235
    %v2237 = vpop.xlane.xlu0 %2236
    %v2238 = vsel %vm433, %v2154, 0.0
    %2239 = vadd.xlane.f32.xlu0 %v2238
    %v2240 = vpop.xlane.xlu0 %2239
    %v2241 = vsel %vm433, %v2155, 0.0
    %2242 = vadd.xlane.f32.xlu0 %v2241
    %v2243 = vpop.xlane.xlu0 %2242
    %v2244 = vsel %vm433, %v2156, 0.0
    %2245 = vadd.xlane.f32.xlu0 %v2244
    %v2246 = vpop.xlane.xlu0 %2245
    %v2247 = vsel %vm433, %v2157, 0.0
    %2248 = vadd.xlane.f32.xlu0 %v2247
    %v2249 = vpop.xlane.xlu0 %2248
    %v2250 = vsel %vm433, %v2158, 0.0
    %2251 = vadd.xlane.f32.xlu0 %v2250
    %v2252 = vpop.xlane.xlu0 %2251
    %v2253 = vsel %vm433, %v2159, 0.0
    %2254 = vadd.xlane.f32.xlu0 %v2253
    %v2255 = vpop.xlane.xlu0 %2254
    %v2256 = vmul.f32 %v2162, %v2063
    %v2257 = vmul.f32 %v2165, %v2063
    %v2258 = vmul.f32 %v2168, %v2063
    %v2259 = vmul.f32 %v2171, %v2063
    %v2260 = vmul.f32 %v2174, %v2063
    %v2261 = vmul.f32 %v2177, %v2063
    %v2262 = vmul.f32 %v2180, %v2063
    %v2263 = vmul.f32 %v2183, %v2063
    %v2264 = vmul.f32 %v2186, %v2063
    %v2265 = vmul.f32 %v2189, %v2063
    %v2266 = vmul.f32 %v2192, %v2063
    %v2267 = vmul.f32 %v2195, %v2063
    %v2268 = vmul.f32 %v2198, %v2063
    %v2269 = vmul.f32 %v2201, %v2063
    %v2270 = vmul.f32 %v2204, %v2063
    %v2271 = vmul.f32 %v2207, %v2063
    %v2272 = vmul.f32 %v2210, %v2063
    %v2273 = vmul.f32 %v2213, %v2063
    %v2274 = vmul.f32 %v2216, %v2063
    %v2275 = vmul.f32 %v2219, %v2063
    %v2276 = vmul.f32 %v2222, %v2063
    %v2277 = vmul.f32 %v2225, %v2063
    %v2278 = vmul.f32 %v2228, %v2063
    %v2279 = vmul.f32 %v2231, %v2063
    %v2280 = vmul.f32 %v2234, %v2063
    %v2281 = vmul.f32 %v2237, %v2063
    %v2282 = vmul.f32 %v2240, %v2063
    %v2283 = vmul.f32 %v2243, %v2063
    %v2284 = vmul.f32 %v2246, %v2063
    %v2285 = vmul.f32 %v2249, %v2063
    %v2286 = vmul.f32 %v2252, %v2063
    %v2287 = vmul.f32 %v2255, %v2063
    %v2288 = vadd.f32 %v2256, 1e-05
    %v2289 = vadd.f32 %v2257, 1e-05
    %v2290 = vadd.f32 %v2258, 1e-05
    %v2291 = vadd.f32 %v2259, 1e-05
    %v2292 = vadd.f32 %v2260, 1e-05
    %v2293 = vadd.f32 %v2261, 1e-05
    %v2294 = vadd.f32 %v2262, 1e-05
    %v2295 = vadd.f32 %v2263, 1e-05
    %v2296 = vadd.f32 %v2264, 1e-05
    %v2297 = vadd.f32 %v2265, 1e-05
    %v2298 = vadd.f32 %v2266, 1e-05
    %v2299 = vadd.f32 %v2267, 1e-05
    %v2300 = vadd.f32 %v2268, 1e-05
    %v2301 = vadd.f32 %v2269, 1e-05
    %v2302 = vadd.f32 %v2270, 1e-05
    %v2303 = vadd.f32 %v2271, 1e-05
    %v2304 = vadd.f32 %v2272, 1e-05
    %v2305 = vadd.f32 %v2273, 1e-05
    %v2306 = vadd.f32 %v2274, 1e-05
    %v2307 = vadd.f32 %v2275, 1e-05
    %v2308 = vadd.f32 %v2276, 1e-05
    %v2309 = vadd.f32 %v2277, 1e-05
    %v2310 = vadd.f32 %v2278, 1e-05
    %v2311 = vadd.f32 %v2279, 1e-05
    %v2312 = vadd.f32 %v2280, 1e-05
    %v2313 = vadd.f32 %v2281, 1e-05
    %v2314 = vadd.f32 %v2282, 1e-05
    %v2315 = vadd.f32 %v2283, 1e-05
    %v2316 = vadd.f32 %v2284, 1e-05
    %v2317 = vadd.f32 %v2285, 1e-05
    %v2318 = vadd.f32 %v2286, 1e-05
    %v2319 = vadd.f32 %v2287, 1e-05
    %v2320 = vrsqrt.pop %v2288
    %v2321 = vrsqrt.pop %v2289
    %v2322 = vrsqrt.pop %v2290
    %v2323 = vrsqrt.pop %v2291
    %v2324 = vrsqrt.pop %v2292
    %v2325 = vrsqrt.pop %v2293
    %v2326 = vrsqrt.pop %v2294
    %v2327 = vrsqrt.pop %v2295
    %v2328 = vrsqrt.pop %v2296
    %v2329 = vrsqrt.pop %v2297
    %v2330 = vrsqrt.pop %v2298
    %v2331 = vrsqrt.pop %v2299
    %v2332 = vrsqrt.pop %v2300
    %v2333 = vrsqrt.pop %v2301
    %v2334 = vrsqrt.pop %v2302
    %v2335 = vrsqrt.pop %v2303
    %v2336 = vrsqrt.pop %v2304
    %v2337 = vrsqrt.pop %v2305
    %v2338 = vrsqrt.pop %v2306
    %v2339 = vrsqrt.pop %v2307
    %v2340 = vrsqrt.pop %v2308
    %v2341 = vrsqrt.pop %v2309
    %v2342 = vrsqrt.pop %v2310
    %v2343 = vrsqrt.pop %v2311
    %v2344 = vrsqrt.pop %v2312
    %v2345 = vrsqrt.pop %v2313
    %v2346 = vrsqrt.pop %v2314
    %v2347 = vrsqrt.pop %v2315
    %v2348 = vrsqrt.pop %v2316
    %v2349 = vrsqrt.pop %v2317
    %v2350 = vrsqrt.pop %v2318
    %v2351 = vrsqrt.pop %v2319
    %v2352 = vmul.f32 %v2096, %v2320
    %v2353 = vmul.f32 %v2097, %v2321
    %v2354 = vmul.f32 %v2098, %v2322
    %v2355 = vmul.f32 %v2099, %v2323
    %v2356 = vmul.f32 %v2100, %v2324
    %v2357 = vmul.f32 %v2101, %v2325
    %v2358 = vmul.f32 %v2102, %v2326
    %v2359 = vmul.f32 %v2103, %v2327
    %v2360 = vmul.f32 %v2104, %v2328
    %v2361 = vmul.f32 %v2105, %v2329
    %v2362 = vmul.f32 %v2106, %v2330
    %v2363 = vmul.f32 %v2107, %v2331
    %v2364 = vmul.f32 %v2108, %v2332
    %v2365 = vmul.f32 %v2109, %v2333
    %v2366 = vmul.f32 %v2110, %v2334
    %v2367 = vmul.f32 %v2111, %v2335
    %v2368 = vmul.f32 %v2112, %v2336
    %v2369 = vmul.f32 %v2113, %v2337
    %v2370 = vmul.f32 %v2114, %v2338
    %v2371 = vmul.f32 %v2115, %v2339
    %v2372 = vmul.f32 %v2116, %v2340
    %v2373 = vmul.f32 %v2117, %v2341
    %v2374 = vmul.f32 %v2118, %v2342
    %v2375 = vmul.f32 %v2119, %v2343
    %v2376 = vmul.f32 %v2120, %v2344
    %v2377 = vmul.f32 %v2121, %v2345
    %v2378 = vmul.f32 %v2122, %v2346
    %v2379 = vmul.f32 %v2123, %v2347
    %v2380 = vmul.f32 %v2124, %v2348
    %v2381 = vmul.f32 %v2125, %v2349
    %v2382 = vmul.f32 %v2126, %v2350
    %v2383 = vmul.f32 %v2127, %v2351
    %v2385 = vlaneseq
    %v2386 = vshrl.u32 %v2385, 7
    %v2387 = vsub.s32 0, %v2386
    %v2388 = vrot.slane %v1965, %v2387
    %v2390 = vmul.f32 %v2352, %v2388
    %v2391 = vmul.f32 %v2353, %v2388
    %v2392 = vmul.f32 %v2354, %v2388
    %v2393 = vmul.f32 %v2355, %v2388
    %v2394 = vmul.f32 %v2356, %v2388
    %v2395 = vmul.f32 %v2357, %v2388
    %v2396 = vmul.f32 %v2358, %v2388
    %v2397 = vmul.f32 %v2359, %v2388
    %v2398 = vmul.f32 %v2360, %v2388
    %v2399 = vmul.f32 %v2361, %v2388
    %v2400 = vmul.f32 %v2362, %v2388
    %v2401 = vmul.f32 %v2363, %v2388
    %v2402 = vmul.f32 %v2364, %v2388
    %v2403 = vmul.f32 %v2365, %v2388
    %v2404 = vmul.f32 %v2366, %v2388
    %v2405 = vmul.f32 %v2367, %v2388
    %v2406 = vmul.f32 %v2368, %v2388
    %v2407 = vmul.f32 %v2369, %v2388
    %v2408 = vmul.f32 %v2370, %v2388
    %v2409 = vmul.f32 %v2371, %v2388
    %v2410 = vmul.f32 %v2372, %v2388
    %v2411 = vmul.f32 %v2373, %v2388
    %v2412 = vmul.f32 %v2374, %v2388
    %v2413 = vmul.f32 %v2375, %v2388
    %v2414 = vmul.f32 %v2376, %v2388
    %v2415 = vmul.f32 %v2377, %v2388
    %v2416 = vmul.f32 %v2378, %v2388
    %v2417 = vmul.f32 %v2379, %v2388
    %v2418 = vmul.f32 %v2380, %v2388
    %v2419 = vmul.f32 %v2381, %v2388
    %v2420 = vmul.f32 %v2382, %v2388
    %v2421 = vmul.f32 %v2383, %v2388
    %v2423 = vlaneseq
    %v2424 = vshrl.u32 %v2423, 7
    %v2425 = vsub.s32 0, %v2424
    %v2426 = vrot.slane %v1966, %v2425
    %v2428 = vadd.f32 %v2390, %v2426
    %v2429 = vadd.f32 %v2391, %v2426
    %v2430 = vadd.f32 %v2392, %v2426
    %v2431 = vadd.f32 %v2393, %v2426
    %v2432 = vadd.f32 %v2394, %v2426
    %v2433 = vadd.f32 %v2395, %v2426
    %v2434 = vadd.f32 %v2396, %v2426
    %v2435 = vadd.f32 %v2397, %v2426
    %v2436 = vadd.f32 %v2398, %v2426
    %v2437 = vadd.f32 %v2399, %v2426
    %v2438 = vadd.f32 %v2400, %v2426
    %v2439 = vadd.f32 %v2401, %v2426
    %v2440 = vadd.f32 %v2402, %v2426
    %v2441 = vadd.f32 %v2403, %v2426
    %v2442 = vadd.f32 %v2404, %v2426
    %v2443 = vadd.f32 %v2405, %v2426
    %v2444 = vadd.f32 %v2406, %v2426
    %v2445 = vadd.f32 %v2407, %v2426
    %v2446 = vadd.f32 %v2408, %v2426
    %v2447 = vadd.f32 %v2409, %v2426
    %v2448 = vadd.f32 %v2410, %v2426
    %v2449 = vadd.f32 %v2411, %v2426
    %v2450 = vadd.f32 %v2412, %v2426
    %v2451 = vadd.f32 %v2413, %v2426
    %v2452 = vadd.f32 %v2414, %v2426
    %v2453 = vadd.f32 %v2415, %v2426
    %v2454 = vadd.f32 %v2416, %v2426
    %v2455 = vadd.f32 %v2417, %v2426
    %v2456 = vadd.f32 %v2418, %v2426
    %v2457 = vadd.f32 %v2419, %v2426
    %v2458 = vadd.f32 %v2420, %v2426
    %v2459 = vadd.f32 %v2421, %v2426
    %v2460 = vpack.c.bf16 %v2429, %v2428
    %v2461 = vpack.c.bf16 %v2431, %v2430
    %v2462 = vpack.c.bf16 %v2433, %v2432
    %v2463 = vpack.c.bf16 %v2435, %v2434
    %v2464 = vpack.c.bf16 %v2437, %v2436
    %v2465 = vpack.c.bf16 %v2439, %v2438
    %v2466 = vpack.c.bf16 %v2441, %v2440
    %v2467 = vpack.c.bf16 %v2443, %v2442
    %v2468 = vpack.c.bf16 %v2445, %v2444
    %v2469 = vpack.c.bf16 %v2447, %v2446
    %v2470 = vpack.c.bf16 %v2449, %v2448
    %v2471 = vpack.c.bf16 %v2451, %v2450
    %v2472 = vpack.c.bf16 %v2453, %v2452
    %v2473 = vpack.c.bf16 %v2455, %v2454
    %v2474 = vpack.c.bf16 %v2457, %v2456
    %v2475 = vpack.c.bf16 %v2459, %v2458
    %v2476 = vld [vmem:[#allocation10] sm:$0xf]
    %v2477 = vld [vmem:[#allocation10 + $0x4] sm:$0xf]
    %v2478 = vld [vmem:[#allocation10 + $0x8] sm:$0xf]
    %v2479 = vld [vmem:[#allocation10 + $0xc] sm:$0xf]
    %v2480 = vld [vmem:[#allocation11] sm:$0x1]
    %v2482 = vlaneseq
    %v2483 = vshrl.u32 %v2482, 7
    %v2484 = vsub.s32 0, %v2483
    %v2485 = vrot.slane %v2480, %v2484
    %v2491 = vunpack.c.l.b16 %v2476
    %v2492 = vunpack.c.l.b16 %v2477
    %v2493 = vunpack.c.l.b16 %v2478
    %v2494 = vunpack.c.l.b16 %v2479
    %v2495 = vpack.c.b16 %v2492, %v2491
    %v2496 = vpack.c.b16 %v2494, %v2493
    %v2500 = vsel %vm433, %v2460, 0
    %v2503 = vsel %vm433, %v2461, 0
    %v2506 = vsel %vm433, %v2462, 0
    %v2509 = vsel %vm433, %v2463, 0
    %v2512 = vsel %vm433, %v2464, 0
    %v2515 = vsel %vm433, %v2465, 0
    %v2518 = vsel %vm433, %v2466, 0
    %v2521 = vsel %vm433, %v2467, 0
    %v2524 = vsel %vm433, %v2468, 0
    %v2527 = vsel %vm433, %v2469, 0
    %v2530 = vsel %vm433, %v2470, 0
    %v2533 = vsel %vm433, %v2471, 0
    %v2536 = vsel %vm433, %v2472, 0
    %v2539 = vsel %vm433, %v2473, 0
    %v2542 = vsel %vm433, %v2474, 0
    %v2545 = vsel %vm433, %v2475, 0
    %2547 = vmatprep.subr.bf16.mxu0 0
    %2548 = vmatpush1.bf16.msra.mxu0 %v2495
    %2549 = vmatprep.subr.bf16.mxu0 0
    %2550 = vmatpush1.bf16.msra.mxu0 %v2496
    %2551 = vmatprep.subr.bf16.mxu0 0
    %2552 = vmatpush1.bf16.msra.mxu0 0
    %2553 = vmatprep.subr.bf16.mxu0 0
    %2554 = vmatpush1.bf16.msra.mxu0 0
    %2555 = vmatprep.subr.bf16.mxu0 0
    %2556 = vmatpush1.bf16.msra.mxu0 0
    %2557 = vmatprep.subr.bf16.mxu0 0
    %2558 = vmatpush1.bf16.msra.mxu0 0
    %2559 = vmatprep.subr.bf16.mxu0 0
    %2560 = vmatpush1.bf16.msra.mxu0 0
    %2561 = vmatprep.subr.bf16.mxu0 0
    %2562 = vmatpush1.bf16.msra.mxu0 0
    %2563 = vmatprep.subr.bf16.mxu0 0
    %2564 = vmatpush1.bf16.msra.mxu0 0
    %2565 = vmatprep.subr.bf16.mxu0 0
    %2566 = vmatpush1.bf16.msra.mxu0 0
    %2567 = vmatprep.subr.bf16.mxu0 0
    %2568 = vmatpush1.bf16.msra.mxu0 0
    %2569 = vmatprep.subr.bf16.mxu0 0
    %2570 = vmatpush1.bf16.msra.mxu0 0
    %2571 = vmatprep.subr.bf16.mxu0 0
    %2572 = vmatpush1.bf16.msra.mxu0 0
    %2573 = vmatprep.subr.bf16.mxu0 0
    %2574 = vmatpush1.bf16.msra.mxu0 0
    %2575 = vmatprep.subr.bf16.mxu0 0
    %2576 = vmatpush1.bf16.msra.mxu0 0
    %2577 = vmatprep.subr.bf16.mxu0 0
    %2578 = vmatpush1.bf16.msra.mxu0 0
    %2579 = vmatprep.mubr.bf16.mxu0 0
    %2580 = vmatmul.mubr.bf16.gmra.mrb[0].mxu0 %v2500
    %v2581 = vpop.f32.mrb[0].mxu0
    %v2582 = vadd.f32 %v2485, %v2581
    %v2583 = vpop.f32.mrb[0].mxu0
    %v2584 = vpop.f32.mrb[0].mxu0
    %v2585 = vadd.f32 %v2485, %v2584
    %v2586 = vpop.f32.mrb[0].mxu0
    %2587 = vmatprep.mubr.bf16.mxu0 0
    %2588 = vmatmul.mubr.bf16.gmra.mrb[0].mxu0 %v2503
    %v2589 = vpop.f32.mrb[0].mxu0
    %v2590 = vadd.f32 %v2485, %v2589
    %v2591 = vpop.f32.mrb[0].mxu0
    %v2592 = vpop.f32.mrb[0].mxu0
    %v2593 = vadd.f32 %v2485, %v2592
    %v2594 = vpop.f32.mrb[0].mxu0
    %2595 = vmatprep.mubr.bf16.mxu0 0
    %2596 = vmatmul.mubr.bf16.gmra.mrb[0].mxu0 %v2506
    %v2597 = vpop.f32.mrb[0].mxu0
    %v2598 = vadd.f32 %v2485, %v2597
    %v2599 = vpop.f32.mrb[0].mxu0
    %v2600 = vpop.f32.mrb[0].mxu0
    %v2601 = vadd.f32 %v2485, %v2600
    %v2602 = vpop.f32.mrb[0].mxu0
    %2603 = vmatprep.mubr.bf16.mxu0 0
    %2604 = vmatmul.mubr.bf16.gmra.mrb[0].mxu0 %v2509
    %v2605 = vpop.f32.mrb[0].mxu0
    %v2606 = vadd.f32 %v2485, %v2605
    %v2607 = vpop.f32.mrb[0].mxu0
    %v2608 = vpop.f32.mrb[0].mxu0
    %v2609 = vadd.f32 %v2485, %v2608
    %v2610 = vpop.f32.mrb[0].mxu0
    %2611 = vmatprep.mubr.bf16.mxu0 0
    %2612 = vmatmul.mubr.bf16.gmra.mrb[0].mxu0 %v2512
    %v2613 = vpop.f32.mrb[0].mxu0
    %v2614 = vadd.f32 %v2485, %v2613
    %v2615 = vpop.f32.mrb[0].mxu0
    %v2616 = vpop.f32.mrb[0].mxu0
    %v2617 = vadd.f32 %v2485, %v2616
    %v2618 = vpop.f32.mrb[0].mxu0
    %2619 = vmatprep.mubr.bf16.mxu0 0
    %2620 = vmatmul.mubr.bf16.gmra.mrb[0].mxu0 %v2515
    %v2621 = vpop.f32.mrb[0].mxu0
    %v2622 = vadd.f32 %v2485, %v2621
    %v2623 = vpop.f32.mrb[0].mxu0
    %v2624 = vpop.f32.mrb[0].mxu0
    %v2625 = vadd.f32 %v2485, %v2624
    %v2626 = vpop.f32.mrb[0].mxu0
    %2627 = vmatprep.mubr.bf16.mxu0 0
    %2628 = vmatmul.mubr.bf16.gmra.mrb[0].mxu0 %v2518
    %v2629 = vpop.f32.mrb[0].mxu0
    %v2630 = vadd.f32 %v2485, %v2629
    %v2631 = vpop.f32.mrb[0].mxu0
    %v2632 = vpop.f32.mrb[0].mxu0
    %v2633 = vadd.f32 %v2485, %v2632
    %v2634 = vpop.f32.mrb[0].mxu0
    %2635 = vmatprep.mubr.bf16.mxu0 0
    %2636 = vmatmul.mubr.bf16.gmra.mrb[0].mxu0 %v2521
    %v2637 = vpop.f32.mrb[0].mxu0
    %v2638 = vadd.f32 %v2485, %v2637
    %v2639 = vpop.f32.mrb[0].mxu0
    %v2640 = vpop.f32.mrb[0].mxu0
    %v2641 = vadd.f32 %v2485, %v2640
    %v2642 = vpop.f32.mrb[0].mxu0
    %2643 = vmatprep.mubr.bf16.mxu0 0
    %2644 = vmatmul.mubr.bf16.gmra.mrb[0].mxu0 %v2524
    %v2645 = vpop.f32.mrb[0].mxu0
    %v2646 = vadd.f32 %v2485, %v2645
    %v2647 = vpop.f32.mrb[0].mxu0
    %v2648 = vpop.f32.mrb[0].mxu0
    %v2649 = vadd.f32 %v2485, %v2648
    %v2650 = vpop.f32.mrb[0].mxu0
    %2651 = vmatprep.mubr.bf16.mxu0 0
    %2652 = vmatmul.mubr.bf16.gmra.mrb[0].mxu0 %v2527
    %v2653 = vpop.f32.mrb[0].mxu0
    %v2654 = vadd.f32 %v2485, %v2653
    %v2655 = vpop.f32.mrb[0].mxu0
    %v2656 = vpop.f32.mrb[0].mxu0
    %v2657 = vadd.f32 %v2485, %v2656
    %v2658 = vpop.f32.mrb[0].mxu0
    %2659 = vmatprep.mubr.bf16.mxu0 0
    %2660 = vmatmul.mubr.bf16.gmra.mrb[0].mxu0 %v2530
    %v2661 = vpop.f32.mrb[0].mxu0
    %v2662 = vadd.f32 %v2485, %v2661
    %v2663 = vpop.f32.mrb[0].mxu0
    %v2664 = vpop.f32.mrb[0].mxu0
    %v2665 = vadd.f32 %v2485, %v2664
    %v2666 = vpop.f32.mrb[0].mxu0
    %2667 = vmatprep.mubr.bf16.mxu0 0
    %2668 = vmatmul.mubr.bf16.gmra.mrb[0].mxu0 %v2533
    %v2669 = vpop.f32.mrb[0].mxu0
    %v2670 = vadd.f32 %v2485, %v2669
    %v2671 = vpop.f32.mrb[0].mxu0
    %v2672 = vpop.f32.mrb[0].mxu0
    %v2673 = vadd.f32 %v2485, %v2672
    %v2674 = vpop.f32.mrb[0].mxu0
    %2675 = vmatprep.mubr.bf16.mxu0 0
    %2676 = vmatmul.mubr.bf16.gmra.mrb[0].mxu0 %v2536
    %v2677 = vpop.f32.mrb[0].mxu0
    %v2678 = vadd.f32 %v2485, %v2677
    %v2679 = vpop.f32.mrb[0].mxu0
    %v2680 = vpop.f32.mrb[0].mxu0
    %v2681 = vadd.f32 %v2485, %v2680
    %v2682 = vpop.f32.mrb[0].mxu0
    %2683 = vmatprep.mubr.bf16.mxu0 0
    %2684 = vmatmul.mubr.bf16.gmra.mrb[0].mxu0 %v2539
    %v2685 = vpop.f32.mrb[0].mxu0
    %v2686 = vadd.f32 %v2485, %v2685
    %v2687 = vpop.f32.mrb[0].mxu0
    %v2688 = vpop.f32.mrb[0].mxu0
    %v2689 = vadd.f32 %v2485, %v2688
    %v2690 = vpop.f32.mrb[0].mxu0
    %2691 = vmatprep.mubr.bf16.mxu0 0
    %2692 = vmatmul.mubr.bf16.gmra.mrb[0].mxu0 %v2542
    %v2693 = vpop.f32.mrb[0].mxu0
    %v2694 = vadd.f32 %v2485, %v2693
    %v2695 = vpop.f32.mrb[0].mxu0
    %v2696 = vpop.f32.mrb[0].mxu0
    %v2697 = vadd.f32 %v2485, %v2696
    %v2698 = vpop.f32.mrb[0].mxu0
    %2699 = vmatprep.mubr.bf16.mxu0 0
    %2700 = vmatmul.mubr.bf16.gmra.mrb[0].mxu0 %v2545
    %v2701 = vpop.f32.mrb[0].mxu0
    %v2702 = vadd.f32 %v2485, %v2701
    %v2703 = vpop.f32.mrb[0].mxu0
    %v2704 = vpop.f32.mrb[0].mxu0
    %v2705 = vadd.f32 %v2485, %v2704
    %v2706 = vpop.f32.mrb[0].mxu0
    %2707 = vdwg.mxu0
    %v2708 = vmax.f32 %v2582, 0.0
    %v2709 = vmax.f32 %v2585, 0.0
    %v2710 = vmax.f32 %v2590, 0.0
    %v2711 = vmax.f32 %v2593, 0.0
    %v2712 = vmax.f32 %v2598, 0.0
    %v2713 = vmax.f32 %v2601, 0.0
    %v2714 = vmax.f32 %v2606, 0.0
    %v2715 = vmax.f32 %v2609, 0.0
    %v2716 = vmax.f32 %v2614, 0.0
    %v2717 = vmax.f32 %v2617, 0.0
    %v2718 = vmax.f32 %v2622, 0.0
    %v2719 = vmax.f32 %v2625, 0.0
    %v2720 = vmax.f32 %v2630, 0.0
    %v2721 = vmax.f32 %v2633, 0.0
    %v2722 = vmax.f32 %v2638, 0.0
    %v2723 = vmax.f32 %v2641, 0.0
    %v2724 = vmax.f32 %v2646, 0.0
    %v2725 = vmax.f32 %v2649, 0.0
    %v2726 = vmax.f32 %v2654, 0.0
    %v2727 = vmax.f32 %v2657, 0.0
    %v2728 = vmax.f32 %v2662, 0.0
    %v2729 = vmax.f32 %v2665, 0.0
    %v2730 = vmax.f32 %v2670, 0.0
    %v2731 = vmax.f32 %v2673, 0.0
    %v2732 = vmax.f32 %v2678, 0.0
    %v2733 = vmax.f32 %v2681, 0.0
    %v2734 = vmax.f32 %v2686, 0.0
    %v2735 = vmax.f32 %v2689, 0.0
    %v2736 = vmax.f32 %v2694, 0.0
    %v2737 = vmax.f32 %v2697, 0.0
    %v2738 = vmax.f32 %v2702, 0.0
    %v2739 = vmax.f32 %v2705, 0.0
    %v2740 = vpack.c.bf16 %v2709, %v2708
    %v2741 = vpack.c.bf16 %v2711, %v2710
    %v2742 = vpack.c.bf16 %v2713, %v2712
    %v2743 = vpack.c.bf16 %v2715, %v2714
    %v2744 = vpack.c.bf16 %v2717, %v2716
    %v2745 = vpack.c.bf16 %v2719, %v2718
    %v2746 = vpack.c.bf16 %v2721, %v2720
    %v2747 = vpack.c.bf16 %v2723, %v2722
    %v2748 = vpack.c.bf16 %v2725, %v2724
    %v2749 = vpack.c.bf16 %v2727, %v2726
    %v2750 = vpack.c.bf16 %v2729, %v2728
    %v2751 = vpack.c.bf16 %v2731, %v2730
    %v2752 = vpack.c.bf16 %v2733, %v2732
    %v2753 = vpack.c.bf16 %v2735, %v2734
    %v2754 = vpack.c.bf16 %v2737, %v2736
    %v2755 = vpack.c.bf16 %v2739, %v2738
    %v2756 = vld [vmem:[%s11] sm:$0xf]
    %v2757 = vld [vmem:[%s11 + $0x4] sm:$0xf]
    %v2758 = vld [vmem:[%s11 + $0x8] sm:$0xf]
    %v2759 = vld [vmem:[%s11 + $0xc] sm:$0xf]
    %v2760 = vld [vmem:[%s11 + $0x10] sm:$0xf]
    %v2761 = vld [vmem:[%s11 + $0x14] sm:$0xf]
    %v2762 = vld [vmem:[%s11 + $0x18] sm:$0xf]
    %v2763 = vld [vmem:[%s11 + $0x1c] sm:$0xf]
    %v2764 = vld [vmem:[%s12] sm:$0x1]
    %v2766 = vlaneseq
    %v2767 = vshrl.u32 %v2766, 7
    %v2768 = vsub.s32 0, %v2767
    %v2769 = vrot.slane %v2764, %v2768
    %v2779 = vunpack.c.l.b16 %v2756
    %v2780 = vunpack.c.l.b16 %v2757
    %v2781 = vunpack.c.l.b16 %v2758
    %v2782 = vunpack.c.l.b16 %v2759
    %v2783 = vunpack.c.l.b16 %v2760
    %v2784 = vunpack.c.l.b16 %v2761
    %v2785 = vunpack.c.l.b16 %v2762
    %v2786 = vunpack.c.l.b16 %v2763
    %v2787 = vpack.c.b16 %v2780, %v2779
    %v2788 = vpack.c.b16 %v2782, %v2781
    %v2789 = vpack.c.b16 %v2784, %v2783
    %v2790 = vpack.c.b16 %v2786, %v2785
    %vm2795 = vcmask 523264
    %v2797 = vsel %vm2795, %v2740, 0
    %v2800 = vsel %vm2795, %v2741, 0
    %v2803 = vsel %vm2795, %v2742, 0
    %v2806 = vsel %vm2795, %v2743, 0
    %v2809 = vsel %vm2795, %v2744, 0
    %v2812 = vsel %vm2795, %v2745, 0
    %v2815 = vsel %vm2795, %v2746, 0
    %v2818 = vsel %vm2795, %v2747, 0
    %v2821 = vsel %vm2795, %v2748, 0
    %v2824 = vsel %vm2795, %v2749, 0
    %v2827 = vsel %vm2795, %v2750, 0
    %v2830 = vsel %vm2795, %v2751, 0
    %v2833 = vsel %vm2795, %v2752, 0
    %v2836 = vsel %vm2795, %v2753, 0
    %v2839 = vsel %vm2795, %v2754, 0
    %v2842 = vsel %vm2795, %v2755, 0
    %2844 = vmatprep.subr.bf16.mxu0 0
    %2845 = vmatpush1.bf16.msra.mxu0 %v2787
    %2846 = vmatprep.subr.bf16.mxu0 0
    %2847 = vmatpush1.bf16.msra.mxu0 %v2788
    %2848 = vmatprep.subr.bf16.mxu0 0
    %2849 = vmatpush1.bf16.msra.mxu0 %v2789
    %2850 = vmatprep.subr.bf16.mxu0 0
    %2851 = vmatpush1.bf16.msra.mxu0 %v2790
    %2852 = vmatprep.subr.bf16.mxu0 0
    %2853 = vmatpush1.bf16.msra.mxu0 0
    %2854 = vmatprep.subr.bf16.mxu0 0
    %2855 = vmatpush1.bf16.msra.mxu0 0
    %2856 = vmatprep.subr.bf16.mxu0 0
    %2857 = vmatpush1.bf16.msra.mxu0 0
    %2858 = vmatprep.subr.bf16.mxu0 0
    %2859 = vmatpush1.bf16.msra.mxu0 0
    %2860 = vmatprep.subr.bf16.mxu0 0
    %2861 = vmatpush1.bf16.msra.mxu0 0
    %2862 = vmatprep.subr.bf16.mxu0 0
    %2863 = vmatpush1.bf16.msra.mxu0 0
    %2864 = vmatprep.subr.bf16.mxu0 0
    %2865 = vmatpush1.bf16.msra.mxu0 0
    %2866 = vmatprep.subr.bf16.mxu0 0
    %2867 = vmatpush1.bf16.msra.mxu0 0
    %2868 = vmatprep.subr.bf16.mxu0 0
    %2869 = vmatpush1.bf16.msra.mxu0 0
    %2870 = vmatprep.subr.bf16.mxu0 0
    %2871 = vmatpush1.bf16.msra.mxu0 0
    %2872 = vmatprep.subr.bf16.mxu0 0
    %2873 = vmatpush1.bf16.msra.mxu0 0
    %2874 = vmatprep.subr.bf16.mxu0 0
    %2875 = vmatpush1.bf16.msra.mxu0 0
    %2876 = vmatprep.mubr.bf16.mxu0 0
    %2877 = vmatmul.mubr.bf16.gmra.mrb[0].mxu0 %v2797
    %v2878 = vpop.f32.mrb[0].mxu0
    %v2879 = vadd.f32 %v2769, %v2878
    %v2880 = vpop.f32.mrb[0].mxu0
    %v2881 = vpop.f32.mrb[0].mxu0
    %v2882 = vadd.f32 %v2769, %v2881
    %v2883 = vpop.f32.mrb[0].mxu0
    %2884 = vmatprep.mubr.bf16.mxu0 0
    %2885 = vmatmul.mubr.bf16.gmra.mrb[0].mxu0 %v2800
    %v2886 = vpop.f32.mrb[0].mxu0
    %v2887 = vadd.f32 %v2769, %v2886
    %v2888 = vpop.f32.mrb[0].mxu0
    %v2889 = vpop.f32.mrb[0].mxu0
    %v2890 = vadd.f32 %v2769, %v2889
    %v2891 = vpop.f32.mrb[0].mxu0
    %2892 = vmatprep.mubr.bf16.mxu0 0
    %2893 = vmatmul.mubr.bf16.gmra.mrb[0].mxu0 %v2803
    %v2894 = vpop.f32.mrb[0].mxu0
    %v2895 = vadd.f32 %v2769, %v2894
    %v2896 = vpop.f32.mrb[0].mxu0
    %v2897 = vpop.f32.mrb[0].mxu0
    %v2898 = vadd.f32 %v2769, %v2897
    %v2899 = vpop.f32.mrb[0].mxu0
    %2900 = vmatprep.mubr.bf16.mxu0 0
    %2901 = vmatmul.mubr.bf16.gmra.mrb[0].mxu0 %v2806
    %v2902 = vpop.f32.mrb[0].mxu0
    %v2903 = vadd.f32 %v2769, %v2902
    %v2904 = vpop.f32.mrb[0].mxu0
    %v2905 = vpop.f32.mrb[0].mxu0
    %v2906 = vadd.f32 %v2769, %v2905
    %v2907 = vpop.f32.mrb[0].mxu0
    %2908 = vmatprep.mubr.bf16.mxu0 0
    %2909 = vmatmul.mubr.bf16.gmra.mrb[0].mxu0 %v2809
    %v2910 = vpop.f32.mrb[0].mxu0
    %v2911 = vadd.f32 %v2769, %v2910
    %v2912 = vpop.f32.mrb[0].mxu0
    %v2913 = vpop.f32.mrb[0].mxu0
    %v2914 = vadd.f32 %v2769, %v2913
    %v2915 = vpop.f32.mrb[0].mxu0
    %2916 = vmatprep.mubr.bf16.mxu0 0
    %2917 = vmatmul.mubr.bf16.gmra.mrb[0].mxu0 %v2812
    %v2918 = vpop.f32.mrb[0].mxu0
    %v2919 = vadd.f32 %v2769, %v2918
    %v2920 = vpop.f32.mrb[0].mxu0
    %v2921 = vpop.f32.mrb[0].mxu0
    %v2922 = vadd.f32 %v2769, %v2921
    %v2923 = vpop.f32.mrb[0].mxu0
    %2924 = vmatprep.mubr.bf16.mxu0 0
    %2925 = vmatmul.mubr.bf16.gmra.mrb[0].mxu0 %v2815
    %v2926 = vpop.f32.mrb[0].mxu0
    %v2927 = vadd.f32 %v2769, %v2926
    %v2928 = vpop.f32.mrb[0].mxu0
    %v2929 = vpop.f32.mrb[0].mxu0
    %v2930 = vadd.f32 %v2769, %v2929
    %v2931 = vpop.f32.mrb[0].mxu0
    %2932 = vmatprep.mubr.bf16.mxu0 0
    %2933 = vmatmul.mubr.bf16.gmra.mrb[0].mxu0 %v2818
    %v2934 = vpop.f32.mrb[0].mxu0
    %v2935 = vadd.f32 %v2769, %v2934
    %v2936 = vpop.f32.mrb[0].mxu0
    %v2937 = vpop.f32.mrb[0].mxu0
    %v2938 = vadd.f32 %v2769, %v2937
    %v2939 = vpop.f32.mrb[0].mxu0
    %2940 = vmatprep.mubr.bf16.mxu0 0
    %2941 = vmatmul.mubr.bf16.gmra.mrb[0].mxu0 %v2821
    %v2942 = vpop.f32.mrb[0].mxu0
    %v2943 = vadd.f32 %v2769, %v2942
    %v2944 = vpop.f32.mrb[0].mxu0
    %v2945 = vpop.f32.mrb[0].mxu0
    %v2946 = vadd.f32 %v2769, %v2945
    %v2947 = vpop.f32.mrb[0].mxu0
    %2948 = vmatprep.mubr.bf16.mxu0 0
    %2949 = vmatmul.mubr.bf16.gmra.mrb[0].mxu0 %v2824
    %v2950 = vpop.f32.mrb[0].mxu0
    %v2951 = vadd.f32 %v2769, %v2950
    %v2952 = vpop.f32.mrb[0].mxu0
    %v2953 = vpop.f32.mrb[0].mxu0
    %v2954 = vadd.f32 %v2769, %v2953
    %v2955 = vpop.f32.mrb[0].mxu0
    %2956 = vmatprep.mubr.bf16.mxu0 0
    %2957 = vmatmul.mubr.bf16.gmra.mrb[0].mxu0 %v2827
    %v2958 = vpop.f32.mrb[0].mxu0
    %v2959 = vadd.f32 %v2769, %v2958
    %v2960 = vpop.f32.mrb[0].mxu0
    %v2961 = vpop.f32.mrb[0].mxu0
    %v2962 = vadd.f32 %v2769, %v2961
    %v2963 = vpop.f32.mrb[0].mxu0
    %2964 = vmatprep.mubr.bf16.mxu0 0
    %2965 = vmatmul.mubr.bf16.gmra.mrb[0].mxu0 %v2830
    %v2966 = vpop.f32.mrb[0].mxu0
    %v2967 = vadd.f32 %v2769, %v2966
    %v2968 = vpop.f32.mrb[0].mxu0
    %v2969 = vpop.f32.mrb[0].mxu0
    %v2970 = vadd.f32 %v2769, %v2969
    %v2971 = vpop.f32.mrb[0].mxu0
    %2972 = vmatprep.mubr.bf16.mxu0 0
    %2973 = vmatmul.mubr.bf16.gmra.mrb[0].mxu0 %v2833
    %v2974 = vpop.f32.mrb[0].mxu0
    %v2975 = vadd.f32 %v2769, %v2974
    %v2976 = vpop.f32.mrb[0].mxu0
    %v2977 = vpop.f32.mrb[0].mxu0
    %v2978 = vadd.f32 %v2769, %v2977
    %v2979 = vpop.f32.mrb[0].mxu0
    %2980 = vmatprep.mubr.bf16.mxu0 0
    %2981 = vmatmul.mubr.bf16.gmra.mrb[0].mxu0 %v2836
    %v2982 = vpop.f32.mrb[0].mxu0
    %v2983 = vadd.f32 %v2769, %v2982
    %v2984 = vpop.f32.mrb[0].mxu0
    %v2985 = vpop.f32.mrb[0].mxu0
    %v2986 = vadd.f32 %v2769, %v2985
    %v2987 = vpop.f32.mrb[0].mxu0
    %2988 = vmatprep.mubr.bf16.mxu0 0
    %2989 = vmatmul.mubr.bf16.gmra.mrb[0].mxu0 %v2839
    %v2990 = vpop.f32.mrb[0].mxu0
    %v2991 = vadd.f32 %v2769, %v2990
    %v2992 = vpop.f32.mrb[0].mxu0
    %v2993 = vpop.f32.mrb[0].mxu0
    %v2994 = vadd.f32 %v2769, %v2993
    %v2995 = vpop.f32.mrb[0].mxu0
    %2996 = vmatprep.mubr.bf16.mxu0 0
    %2997 = vmatmul.mubr.bf16.gmra.mrb[0].mxu0 %v2842
    %v2998 = vpop.f32.mrb[0].mxu0
    %v2999 = vadd.f32 %v2769, %v2998
    %v3000 = vpop.f32.mrb[0].mxu0
    %v3001 = vpop.f32.mrb[0].mxu0
    %v3002 = vadd.f32 %v2769, %v3001
    %v3003 = vpop.f32.mrb[0].mxu0
    %3004 = vdwg.mxu0
    %v3005 = vadd.f32 %v2428, %v2879
    %v3006 = vadd.f32 %v2429, %v2882
    %v3007 = vadd.f32 %v2430, %v2887
    %v3008 = vadd.f32 %v2431, %v2890
    %v3009 = vadd.f32 %v2432, %v2895
    %v3010 = vadd.f32 %v2433, %v2898
    %v3011 = vadd.f32 %v2434, %v2903
    %v3012 = vadd.f32 %v2435, %v2906
    %v3013 = vadd.f32 %v2436, %v2911
    %v3014 = vadd.f32 %v2437, %v2914
    %v3015 = vadd.f32 %v2438, %v2919
    %v3016 = vadd.f32 %v2439, %v2922
    %v3017 = vadd.f32 %v2440, %v2927
    %v3018 = vadd.f32 %v2441, %v2930
    %v3019 = vadd.f32 %v2442, %v2935
    %v3020 = vadd.f32 %v2443, %v2938
    %v3021 = vadd.f32 %v2444, %v2943
    %v3022 = vadd.f32 %v2445, %v2946
    %v3023 = vadd.f32 %v2446, %v2951
    %v3024 = vadd.f32 %v2447, %v2954
    %v3025 = vadd.f32 %v2448, %v2959
    %v3026 = vadd.f32 %v2449, %v2962
    %v3027 = vadd.f32 %v2450, %v2967
    %v3028 = vadd.f32 %v2451, %v2970
    %v3029 = vadd.f32 %v2452, %v2975
    %v3030 = vadd.f32 %v2453, %v2978
    %v3031 = vadd.f32 %v2454, %v2983
    %v3032 = vadd.f32 %v2455, %v2986
    %v3033 = vadd.f32 %v2456, %v2991
    %v3034 = vadd.f32 %v2457, %v2994
    %v3035 = vadd.f32 %v2458, %v2999
    %v3036 = vadd.f32 %v2459, %v3002
    %v3037 = vld [vmem:[%s15] sm:$0x1]
    %v3038 = vld [vmem:[%s16] sm:$0x1]
    %v3039 = vsel %vm433, %v3005, 0.0
    %3040 = vadd.xlane.f32.xlu0 %v3039
    %v3041 = vpop.xlane.xlu0 %3040
    %v3042 = vsel %vm433, %v3006, 0.0
    %3043 = vadd.xlane.f32.xlu0 %v3042
    %v3044 = vpop.xlane.xlu0 %3043
    %v3045 = vsel %vm433, %v3007, 0.0
    %3046 = vadd.xlane.f32.xlu0 %v3045
    %v3047 = vpop.xlane.xlu0 %3046
    %v3048 = vsel %vm433, %v3008, 0.0
    %3049 = vadd.xlane.f32.xlu0 %v3048
    %v3050 = vpop.xlane.xlu0 %3049
    %v3051 = vsel %vm433, %v3009, 0.0
    %3052 = vadd.xlane.f32.xlu0 %v3051
    %v3053 = vpop.xlane.xlu0 %3052
    %v3054 = vsel %vm433, %v3010, 0.0
    %3055 = vadd.xlane.f32.xlu0 %v3054
    %v3056 = vpop.xlane.xlu0 %3055
    %v3057 = vsel %vm433, %v3011, 0.0
    %3058 = vadd.xlane.f32.xlu0 %v3057
    %v3059 = vpop.xlane.xlu0 %3058
    %v3060 = vsel %vm433, %v3012, 0.0
    %3061 = vadd.xlane.f32.xlu0 %v3060
    %v3062 = vpop.xlane.xlu0 %3061
    %v3063 = vsel %vm433, %v3013, 0.0
    %3064 = vadd.xlane.f32.xlu0 %v3063
    %v3065 = vpop.xlane.xlu0 %3064
    %v3066 = vsel %vm433, %v3014, 0.0
    %3067 = vadd.xlane.f32.xlu0 %v3066
    %v3068 = vpop.xlane.xlu0 %3067
    %v3069 = vsel %vm433, %v3015, 0.0
    %3070 = vadd.xlane.f32.xlu0 %v3069
    %v3071 = vpop.xlane.xlu0 %3070
    %v3072 = vsel %vm433, %v3016, 0.0
    %3073 = vadd.xlane.f32.xlu0 %v3072
    %v3074 = vpop.xlane.xlu0 %3073
    %v3075 = vsel %vm433, %v3017, 0.0
    %3076 = vadd.xlane.f32.xlu0 %v3075
    %v3077 = vpop.xlane.xlu0 %3076
    %v3078 = vsel %vm433, %v3018, 0.0
    %3079 = vadd.xlane.f32.xlu0 %v3078
    %v3080 = vpop.xlane.xlu0 %3079
    %v3081 = vsel %vm433, %v3019, 0.0
    %3082 = vadd.xlane.f32.xlu0 %v3081
    %v3083 = vpop.xlane.xlu0 %3082
    %v3084 = vsel %vm433, %v3020, 0.0
    %3085 = vadd.xlane.f32.xlu0 %v3084
    %v3086 = vpop.xlane.xlu0 %3085
    %v3087 = vsel %vm433, %v3021, 0.0
    %3088 = vadd.xlane.f32.xlu0 %v3087
    %v3089 = vpop.xlane.xlu0 %3088
    %v3090 = vsel %vm433, %v3022, 0.0
    %3091 = vadd.xlane.f32.xlu0 %v3090
    %v3092 = vpop.xlane.xlu0 %3091
    %v3093 = vsel %vm433, %v3023, 0.0
    %3094 = vadd.xlane.f32.xlu0 %v3093
    %v3095 = vpop.xlane.xlu0 %3094
    %v3096 = vsel %vm433, %v3024, 0.0
    %3097 = vadd.xlane.f32.xlu0 %v3096
    %v3098 = vpop.xlane.xlu0 %3097
    %v3099 = vsel %vm433, %v3025, 0.0
    %3100 = vadd.xlane.f32.xlu0 %v3099
    %v3101 = vpop.xlane.xlu0 %3100
    %v3102 = vsel %vm433, %v3026, 0.0
    %3103 = vadd.xlane.f32.xlu0 %v3102
    %v3104 = vpop.xlane.xlu0 %3103
    %v3105 = vsel %vm433, %v3027, 0.0
    %3106 = vadd.xlane.f32.xlu0 %v3105
    %v3107 = vpop.xlane.xlu0 %3106
    %v3108 = vsel %vm433, %v3028, 0.0
    %3109 = vadd.xlane.f32.xlu0 %v3108
    %v3110 = vpop.xlane.xlu0 %3109
    %v3111 = vsel %vm433, %v3029, 0.0
    %3112 = vadd.xlane.f32.xlu0 %v3111
    %v3113 = vpop.xlane.xlu0 %3112
    %v3114 = vsel %vm433, %v3030, 0.0
    %3115 = vadd.xlane.f32.xlu0 %v3114
    %v3116 = vpop.xlane.xlu0 %3115
    %v3117 = vsel %vm433, %v3031, 0.0
    %3118 = vadd.xlane.f32.xlu0 %v3117
    %v3119 = vpop.xlane.xlu0 %3118
    %v3120 = vsel %vm433, %v3032, 0.0
    %3121 = vadd.xlane.f32.xlu0 %v3120
    %v3122 = vpop.xlane.xlu0 %3121
    %v3123 = vsel %vm433, %v3033, 0.0
    %3124 = vadd.xlane.f32.xlu0 %v3123
    %v3125 = vpop.xlane.xlu0 %3124
    %v3126 = vsel %vm433, %v3034, 0.0
    %3127 = vadd.xlane.f32.xlu0 %v3126
    %v3128 = vpop.xlane.xlu0 %3127
    %v3129 = vsel %vm433, %v3035, 0.0
    %3130 = vadd.xlane.f32.xlu0 %v3129
    %v3131 = vpop.xlane.xlu0 %3130
    %v3132 = vsel %vm433, %v3036, 0.0
    %3133 = vadd.xlane.f32.xlu0 %v3132
    %v3134 = vpop.xlane.xlu0 %3133
    %v3135 = vmul.f32 %v3041, %v2063
    %v3136 = vmul.f32 %v3044, %v2063
    %v3137 = vmul.f32 %v3047, %v2063
    %v3138 = vmul.f32 %v3050, %v2063
    %v3139 = vmul.f32 %v3053, %v2063
    %v3140 = vmul.f32 %v3056, %v2063
    %v3141 = vmul.f32 %v3059, %v2063
    %v3142 = vmul.f32 %v3062, %v2063
    %v3143 = vmul.f32 %v3065, %v2063
    %v3144 = vmul.f32 %v3068, %v2063
    %v3145 = vmul.f32 %v3071, %v2063
    %v3146 = vmul.f32 %v3074, %v2063
    %v3147 = vmul.f32 %v3077, %v2063
    %v3148 = vmul.f32 %v3080, %v2063
    %v3149 = vmul.f32 %v3083, %v2063
    %v3150 = vmul.f32 %v3086, %v2063
    %v3151 = vmul.f32 %v3089, %v2063
    %v3152 = vmul.f32 %v3092, %v2063
    %v3153 = vmul.f32 %v3095, %v2063
    %v3154 = vmul.f32 %v3098, %v2063
    %v3155 = vmul.f32 %v3101, %v2063
    %v3156 = vmul.f32 %v3104, %v2063
    %v3157 = vmul.f32 %v3107, %v2063
    %v3158 = vmul.f32 %v3110, %v2063
    %v3159 = vmul.f32 %v3113, %v2063
    %v3160 = vmul.f32 %v3116, %v2063
    %v3161 = vmul.f32 %v3119, %v2063
    %v3162 = vmul.f32 %v3122, %v2063
    %v3163 = vmul.f32 %v3125, %v2063
    %v3164 = vmul.f32 %v3128, %v2063
    %v3165 = vmul.f32 %v3131, %v2063
    %v3166 = vmul.f32 %v3134, %v2063
    %v3167 = vsub.f32 %v3005, %v3135
    %v3168 = vsub.f32 %v3006, %v3136
    %v3169 = vsub.f32 %v3007, %v3137
    %v3170 = vsub.f32 %v3008, %v3138
    %v3171 = vsub.f32 %v3009, %v3139
    %v3172 = vsub.f32 %v3010, %v3140
    %v3173 = vsub.f32 %v3011, %v3141
    %v3174 = vsub.f32 %v3012, %v3142
    %v3175 = vsub.f32 %v3013, %v3143
    %v3176 = vsub.f32 %v3014, %v3144
    %v3177 = vsub.f32 %v3015, %v3145
    %v3178 = vsub.f32 %v3016, %v3146
    %v3179 = vsub.f32 %v3017, %v3147
    %v3180 = vsub.f32 %v3018, %v3148
    %v3181 = vsub.f32 %v3019, %v3149
    %v3182 = vsub.f32 %v3020, %v3150
    %v3183 = vsub.f32 %v3021, %v3151
    %v3184 = vsub.f32 %v3022, %v3152
    %v3185 = vsub.f32 %v3023, %v3153
    %v3186 = vsub.f32 %v3024, %v3154
    %v3187 = vsub.f32 %v3025, %v3155
    %v3188 = vsub.f32 %v3026, %v3156
    %v3189 = vsub.f32 %v3027, %v3157
    %v3190 = vsub.f32 %v3028, %v3158
    %v3191 = vsub.f32 %v3029, %v3159
    %v3192 = vsub.f32 %v3030, %v3160
    %v3193 = vsub.f32 %v3031, %v3161
    %v3194 = vsub.f32 %v3032, %v3162
    %v3195 = vsub.f32 %v3033, %v3163
    %v3196 = vsub.f32 %v3034, %v3164
    %v3197 = vsub.f32 %v3035, %v3165
    %v3198 = vsub.f32 %v3036, %v3166
    %v3199 = vmul.f32 %v3167, %v3167
    %v3200 = vmul.f32 %v3168, %v3168
    %v3201 = vmul.f32 %v3169, %v3169
    %v3202 = vmul.f32 %v3170, %v3170
    %v3203 = vmul.f32 %v3171, %v3171
    %v3204 = vmul.f32 %v3172, %v3172
    %v3205 = vmul.f32 %v3173, %v3173
    %v3206 = vmul.f32 %v3174, %v3174
    %v3207 = vmul.f32 %v3175, %v3175
    %v3208 = vmul.f32 %v3176, %v3176
    %v3209 = vmul.f32 %v3177, %v3177
    %v3210 = vmul.f32 %v3178, %v3178
    %v3211 = vmul.f32 %v3179, %v3179
    %v3212 = vmul.f32 %v3180, %v3180
    %v3213 = vmul.f32 %v3181, %v3181
    %v3214 = vmul.f32 %v3182, %v3182
    %v3215 = vmul.f32 %v3183, %v3183
    %v3216 = vmul.f32 %v3184, %v3184
    %v3217 = vmul.f32 %v3185, %v3185
    %v3218 = vmul.f32 %v3186, %v3186
    %v3219 = vmul.f32 %v3187, %v3187
    %v3220 = vmul.f32 %v3188, %v3188
    %v3221 = vmul.f32 %v3189, %v3189
    %v3222 = vmul.f32 %v3190, %v3190
    %v3223 = vmul.f32 %v3191, %v3191
    %v3224 = vmul.f32 %v3192, %v3192
    %v3225 = vmul.f32 %v3193, %v3193
    %v3226 = vmul.f32 %v3194, %v3194
    %v3227 = vmul.f32 %v3195, %v3195
    %v3228 = vmul.f32 %v3196, %v3196
    %v3229 = vmul.f32 %v3197, %v3197
    %v3230 = vmul.f32 %v3198, %v3198
    %v3231 = vsel %vm433, %v3199, 0.0
    %3232 = vadd.xlane.f32.xlu0 %v3231
    %v3233 = vpop.xlane.xlu0 %3232
    %v3234 = vsel %vm433, %v3200, 0.0
    %3235 = vadd.xlane.f32.xlu0 %v3234
    %v3236 = vpop.xlane.xlu0 %3235
    %v3237 = vsel %vm433, %v3201, 0.0
    %3238 = vadd.xlane.f32.xlu0 %v3237
    %v3239 = vpop.xlane.xlu0 %3238
    %v3240 = vsel %vm433, %v3202, 0.0
    %3241 = vadd.xlane.f32.xlu0 %v3240
    %v3242 = vpop.xlane.xlu0 %3241
    %v3243 = vsel %vm433, %v3203, 0.0
    %3244 = vadd.xlane.f32.xlu0 %v3243
    %v3245 = vpop.xlane.xlu0 %3244
    %v3246 = vsel %vm433, %v3204, 0.0
    %3247 = vadd.xlane.f32.xlu0 %v3246
    %v3248 = vpop.xlane.xlu0 %3247
    %v3249 = vsel %vm433, %v3205, 0.0
    %3250 = vadd.xlane.f32.xlu0 %v3249
    %v3251 = vpop.xlane.xlu0 %3250
    %v3252 = vsel %vm433, %v3206, 0.0
    %3253 = vadd.xlane.f32.xlu0 %v3252
    %v3254 = vpop.xlane.xlu0 %3253
    %v3255 = vsel %vm433, %v3207, 0.0
    %3256 = vadd.xlane.f32.xlu0 %v3255
    %v3257 = vpop.xlane.xlu0 %3256
    %v3258 = vsel %vm433, %v3208, 0.0
    %3259 = vadd.xlane.f32.xlu0 %v3258
    %v3260 = vpop.xlane.xlu0 %3259
    %v3261 = vsel %vm433, %v3209, 0.0
    %3262 = vadd.xlane.f32.xlu0 %v3261
    %v3263 = vpop.xlane.xlu0 %3262
    %v3264 = vsel %vm433, %v3210, 0.0
    %3265 = vadd.xlane.f32.xlu0 %v3264
    %v3266 = vpop.xlane.xlu0 %3265
    %v3267 = vsel %vm433, %v3211, 0.0
    %3268 = vadd.xlane.f32.xlu0 %v3267
    %v3269 = vpop.xlane.xlu0 %3268
    %v3270 = vsel %vm433, %v3212, 0.0
    %3271 = vadd.xlane.f32.xlu0 %v3270
    %v3272 = vpop.xlane.xlu0 %3271
    %v3273 = vsel %vm433, %v3213, 0.0
    %3274 = vadd.xlane.f32.xlu0 %v3273
    %v3275 = vpop.xlane.xlu0 %3274
    %v3276 = vsel %vm433, %v3214, 0.0
    %3277 = vadd.xlane.f32.xlu0 %v3276
    %v3278 = vpop.xlane.xlu0 %3277
    %v3279 = vsel %vm433, %v3215, 0.0
    %3280 = vadd.xlane.f32.xlu0 %v3279
    %v3281 = vpop.xlane.xlu0 %3280
    %v3282 = vsel %vm433, %v3216, 0.0
    %3283 = vadd.xlane.f32.xlu0 %v3282
    %v3284 = vpop.xlane.xlu0 %3283
    %v3285 = vsel %vm433, %v3217, 0.0
    %3286 = vadd.xlane.f32.xlu0 %v3285
    %v3287 = vpop.xlane.xlu0 %3286
    %v3288 = vsel %vm433, %v3218, 0.0
    %3289 = vadd.xlane.f32.xlu0 %v3288
    %v3290 = vpop.xlane.xlu0 %3289
    %v3291 = vsel %vm433, %v3219, 0.0
    %3292 = vadd.xlane.f32.xlu0 %v3291
    %v3293 = vpop.xlane.xlu0 %3292
    %v3294 = vsel %vm433, %v3220, 0.0
    %3295 = vadd.xlane.f32.xlu0 %v3294
    %v3296 = vpop.xlane.xlu0 %3295
    %v3297 = vsel %vm433, %v3221, 0.0
    %3298 = vadd.xlane.f32.xlu0 %v3297
    %v3299 = vpop.xlane.xlu0 %3298
    %v3300 = vsel %vm433, %v3222, 0.0
    %3301 = vadd.xlane.f32.xlu0 %v3300
    %v3302 = vpop.xlane.xlu0 %3301
    %v3303 = vsel %vm433, %v3223, 0.0
    %3304 = vadd.xlane.f32.xlu0 %v3303
    %v3305 = vpop.xlane.xlu0 %3304
    %v3306 = vsel %vm433, %v3224, 0.0
    %3307 = vadd.xlane.f32.xlu0 %v3306
    %v3308 = vpop.xlane.xlu0 %3307
    %v3309 = vsel %vm433, %v3225, 0.0
    %3310 = vadd.xlane.f32.xlu0 %v3309
    %v3311 = vpop.xlane.xlu0 %3310
    %v3312 = vsel %vm433, %v3226, 0.0
    %3313 = vadd.xlane.f32.xlu0 %v3312
    %v3314 = vpop.xlane.xlu0 %3313
    %v3315 = vsel %vm433, %v3227, 0.0
    %3316 = vadd.xlane.f32.xlu0 %v3315
    %v3317 = vpop.xlane.xlu0 %3316
    %v3318 = vsel %vm433, %v3228, 0.0
    %3319 = vadd.xlane.f32.xlu0 %v3318
    %v3320 = vpop.xlane.xlu0 %3319
    %v3321 = vsel %vm433, %v3229, 0.0
    %3322 = vadd.xlane.f32.xlu0 %v3321
    %v3323 = vpop.xlane.xlu0 %3322
    %v3324 = vsel %vm433, %v3230, 0.0
    %3325 = vadd.xlane.f32.xlu0 %v3324
    %v3326 = vpop.xlane.xlu0 %3325
    %v3327 = vmul.f32 %v3233, %v2063
    %v3328 = vmul.f32 %v3236, %v2063
    %v3329 = vmul.f32 %v3239, %v2063
    %v3330 = vmul.f32 %v3242, %v2063
    %v3331 = vmul.f32 %v3245, %v2063
    %v3332 = vmul.f32 %v3248, %v2063
    %v3333 = vmul.f32 %v3251, %v2063
    %v3334 = vmul.f32 %v3254, %v2063
    %v3335 = vmul.f32 %v3257, %v2063
    %v3336 = vmul.f32 %v3260, %v2063
    %v3337 = vmul.f32 %v3263, %v2063
    %v3338 = vmul.f32 %v3266, %v2063
    %v3339 = vmul.f32 %v3269, %v2063
    %v3340 = vmul.f32 %v3272, %v2063
    %v3341 = vmul.f32 %v3275, %v2063
    %v3342 = vmul.f32 %v3278, %v2063
    %v3343 = vmul.f32 %v3281, %v2063
    %v3344 = vmul.f32 %v3284, %v2063
    %v3345 = vmul.f32 %v3287, %v2063
    %v3346 = vmul.f32 %v3290, %v2063
    %v3347 = vmul.f32 %v3293, %v2063
    %v3348 = vmul.f32 %v3296, %v2063
    %v3349 = vmul.f32 %v3299, %v2063
    %v3350 = vmul.f32 %v3302, %v2063
    %v3351 = vmul.f32 %v3305, %v2063
    %v3352 = vmul.f32 %v3308, %v2063
    %v3353 = vmul.f32 %v3311, %v2063
    %v3354 = vmul.f32 %v3314, %v2063
    %v3355 = vmul.f32 %v3317, %v2063
    %v3356 = vmul.f32 %v3320, %v2063
    %v3357 = vmul.f32 %v3323, %v2063
    %v3358 = vmul.f32 %v3326, %v2063
    %v3359 = vadd.f32 %v3327, 1e-05
    %v3360 = vadd.f32 %v3328, 1e-05
    %v3361 = vadd.f32 %v3329, 1e-05
    %v3362 = vadd.f32 %v3330, 1e-05
    %v3363 = vadd.f32 %v3331, 1e-05
    %v3364 = vadd.f32 %v3332, 1e-05
    %v3365 = vadd.f32 %v3333, 1e-05
    %v3366 = vadd.f32 %v3334, 1e-05
    %v3367 = vadd.f32 %v3335, 1e-05
    %v3368 = vadd.f32 %v3336, 1e-05
    %v3369 = vadd.f32 %v3337, 1e-05
    %v3370 = vadd.f32 %v3338, 1e-05
    %v3371 = vadd.f32 %v3339, 1e-05
    %v3372 = vadd.f32 %v3340, 1e-05
    %v3373 = vadd.f32 %v3341, 1e-05
    %v3374 = vadd.f32 %v3342, 1e-05
    %v3375 = vadd.f32 %v3343, 1e-05
    %v3376 = vadd.f32 %v3344, 1e-05
    %v3377 = vadd.f32 %v3345, 1e-05
    %v3378 = vadd.f32 %v3346, 1e-05
    %v3379 = vadd.f32 %v3347, 1e-05
    %v3380 = vadd.f32 %v3348, 1e-05
    %v3381 = vadd.f32 %v3349, 1e-05
    %v3382 = vadd.f32 %v3350, 1e-05
    %v3383 = vadd.f32 %v3351, 1e-05
    %v3384 = vadd.f32 %v3352, 1e-05
    %v3385 = vadd.f32 %v3353, 1e-05
    %v3386 = vadd.f32 %v3354, 1e-05
    %v3387 = vadd.f32 %v3355, 1e-05
    %v3388 = vadd.f32 %v3356, 1e-05
    %v3389 = vadd.f32 %v3357, 1e-05
    %v3390 = vadd.f32 %v3358, 1e-05
    %v3391 = vrsqrt.pop %v3359
    %v3392 = vrsqrt.pop %v3360
    %v3393 = vrsqrt.pop %v3361
    %v3394 = vrsqrt.pop %v3362
    %v3395 = vrsqrt.pop %v3363
    %v3396 = vrsqrt.pop %v3364
    %v3397 = vrsqrt.pop %v3365
    %v3398 = vrsqrt.pop %v3366
    %v3399 = vrsqrt.pop %v3367
    %v3400 = vrsqrt.pop %v3368
    %v3401 = vrsqrt.pop %v3369
    %v3402 = vrsqrt.pop %v3370
    %v3403 = vrsqrt.pop %v3371
    %v3404 = vrsqrt.pop %v3372
    %v3405 = vrsqrt.pop %v3373
    %v3406 = vrsqrt.pop %v3374
    %v3407 = vrsqrt.pop %v3375
    %v3408 = vrsqrt.pop %v3376
    %v3409 = vrsqrt.pop %v3377
    %v3410 = vrsqrt.pop %v3378
    %v3411 = vrsqrt.pop %v3379
    %v3412 = vrsqrt.pop %v3380
    %v3413 = vrsqrt.pop %v3381
    %v3414 = vrsqrt.pop %v3382
    %v3415 = vrsqrt.pop %v3383
    %v3416 = vrsqrt.pop %v3384
    %v3417 = vrsqrt.pop %v3385
    %v3418 = vrsqrt.pop %v3386
    %v3419 = vrsqrt.pop %v3387
    %v3420 = vrsqrt.pop %v3388
    %v3421 = vrsqrt.pop %v3389
    %v3422 = vrsqrt.pop %v3390
    %v3423 = vmul.f32 %v3167, %v3391
    %v3424 = vmul.f32 %v3168, %v3392
    %v3425 = vmul.f32 %v3169, %v3393
    %v3426 = vmul.f32 %v3170, %v3394
    %v3427 = vmul.f32 %v3171, %v3395
    %v3428 = vmul.f32 %v3172, %v3396
    %v3429 = vmul.f32 %v3173, %v3397
    %v3430 = vmul.f32 %v3174, %v3398
    %v3431 = vmul.f32 %v3175, %v3399
    %v3432 = vmul.f32 %v3176, %v3400
    %v3433 = vmul.f32 %v3177, %v3401
    %v3434 = vmul.f32 %v3178, %v3402
    %v3435 = vmul.f32 %v3179, %v3403
    %v3436 = vmul.f32 %v3180, %v3404
    %v3437 = vmul.f32 %v3181, %v3405
    %v3438 = vmul.f32 %v3182, %v3406
    %v3439 = vmul.f32 %v3183, %v3407
    %v3440 = vmul.f32 %v3184, %v3408
    %v3441 = vmul.f32 %v3185, %v3409
    %v3442 = vmul.f32 %v3186, %v3410
    %v3443 = vmul.f32 %v3187, %v3411
    %v3444 = vmul.f32 %v3188, %v3412
    %v3445 = vmul.f32 %v3189, %v3413
    %v3446 = vmul.f32 %v3190, %v3414
    %v3447 = vmul.f32 %v3191, %v3415
    %v3448 = vmul.f32 %v3192, %v3416
    %v3449 = vmul.f32 %v3193, %v3417
    %v3450 = vmul.f32 %v3194, %v3418
    %v3451 = vmul.f32 %v3195, %v3419
    %v3452 = vmul.f32 %v3196, %v3420
    %v3453 = vmul.f32 %v3197, %v3421
    %v3454 = vmul.f32 %v3198, %v3422
    %v3456 = vlaneseq
    %v3457 = vshrl.u32 %v3456, 7
    %v3458 = vsub.s32 0, %v3457
    %v3459 = vrot.slane %v3037, %v3458
    %v3461 = vmul.f32 %v3423, %v3459
    %v3462 = vmul.f32 %v3424, %v3459
    %v3463 = vmul.f32 %v3425, %v3459
    %v3464 = vmul.f32 %v3426, %v3459
    %v3465 = vmul.f32 %v3427, %v3459
    %v3466 = vmul.f32 %v3428, %v3459
    %v3467 = vmul.f32 %v3429, %v3459
    %v3468 = vmul.f32 %v3430, %v3459
    %v3469 = vmul.f32 %v3431, %v3459
    %v3470 = vmul.f32 %v3432, %v3459
    %v3471 = vmul.f32 %v3433, %v3459
    %v3472 = vmul.f32 %v3434, %v3459
    %v3473 = vmul.f32 %v3435, %v3459
    %v3474 = vmul.f32 %v3436, %v3459
    %v3475 = vmul.f32 %v3437, %v3459
    %v3476 = vmul.f32 %v3438, %v3459
    %v3477 = vmul.f32 %v3439, %v3459
    %v3478 = vmul.f32 %v3440, %v3459
    %v3479 = vmul.f32 %v3441, %v3459
    %v3480 = vmul.f32 %v3442, %v3459
    %v3481 = vmul.f32 %v3443, %v3459
    %v3482 = vmul.f32 %v3444, %v3459
    %v3483 = vmul.f32 %v3445, %v3459
    %v3484 = vmul.f32 %v3446, %v3459
    %v3485 = vmul.f32 %v3447, %v3459
    %v3486 = vmul.f32 %v3448, %v3459
    %v3487 = vmul.f32 %v3449, %v3459
    %v3488 = vmul.f32 %v3450, %v3459
    %v3489 = vmul.f32 %v3451, %v3459
    %v3490 = vmul.f32 %v3452, %v3459
    %v3491 = vmul.f32 %v3453, %v3459
    %v3492 = vmul.f32 %v3454, %v3459
    %v3494 = vlaneseq
    %v3495 = vshrl.u32 %v3494, 7
    %v3496 = vsub.s32 0, %v3495
    %v3497 = vrot.slane %v3038, %v3496
    %v3499 = vadd.f32 %v3461, %v3497
    %v3500 = vadd.f32 %v3462, %v3497
    %v3501 = vadd.f32 %v3463, %v3497
    %v3502 = vadd.f32 %v3464, %v3497
    %v3503 = vadd.f32 %v3465, %v3497
    %v3504 = vadd.f32 %v3466, %v3497
    %v3505 = vadd.f32 %v3467, %v3497
    %v3506 = vadd.f32 %v3468, %v3497
    %v3507 = vadd.f32 %v3469, %v3497
    %v3508 = vadd.f32 %v3470, %v3497
    %v3509 = vadd.f32 %v3471, %v3497
    %v3510 = vadd.f32 %v3472, %v3497
    %v3511 = vadd.f32 %v3473, %v3497
    %v3512 = vadd.f32 %v3474, %v3497
    %v3513 = vadd.f32 %v3475, %v3497
    %v3514 = vadd.f32 %v3476, %v3497
    %v3515 = vadd.f32 %v3477, %v3497
    %v3516 = vadd.f32 %v3478, %v3497
    %v3517 = vadd.f32 %v3479, %v3497
    %v3518 = vadd.f32 %v3480, %v3497
    %v3519 = vadd.f32 %v3481, %v3497
    %v3520 = vadd.f32 %v3482, %v3497
    %v3521 = vadd.f32 %v3483, %v3497
    %v3522 = vadd.f32 %v3484, %v3497
    %v3523 = vadd.f32 %v3485, %v3497
    %v3524 = vadd.f32 %v3486, %v3497
    %v3525 = vadd.f32 %v3487, %v3497
    %v3526 = vadd.f32 %v3488, %v3497
    %v3527 = vadd.f32 %v3489, %v3497
    %v3528 = vadd.f32 %v3490, %v3497
    %v3529 = vadd.f32 %v3491, %v3497
    %v3530 = vadd.f32 %v3492, %v3497
    %v3531 = vpack.c.bf16 %v3500, %v3499
    %v3532 = vpack.c.bf16 %v3502, %v3501
    %v3533 = vpack.c.bf16 %v3504, %v3503
    %v3534 = vpack.c.bf16 %v3506, %v3505
    %v3535 = vpack.c.bf16 %v3508, %v3507
    %v3536 = vpack.c.bf16 %v3510, %v3509
    %v3537 = vpack.c.bf16 %v3512, %v3511
    %v3538 = vpack.c.bf16 %v3514, %v3513
    %v3539 = vpack.c.bf16 %v3516, %v3515
    %v3540 = vpack.c.bf16 %v3518, %v3517
    %v3541 = vpack.c.bf16 %v3520, %v3519
    %v3542 = vpack.c.bf16 %v3522, %v3521
    %v3543 = vpack.c.bf16 %v3524, %v3523
    %v3544 = vpack.c.bf16 %v3526, %v3525
    %v3545 = vpack.c.bf16 %v3528, %v3527
    %v3546 = vpack.c.bf16 %v3530, %v3529
    %s3547 = scalar_lea.vmem %s5, 16
    %v3548 = vld [vmem:[%s3547] sm:$0xf]
    %v3549 = vld [vmem:[%s3547 + $0x4] sm:$0xf]
    %v3550 = vld [vmem:[%s3547 + $0x8] sm:$0xf]
    %v3551 = vld [vmem:[%s3547 + $0xc] sm:$0xf]
    %s3552 = scalar_lea.vmem %s6, 1
    %v3553 = vld [vmem:[%s3552] sm:$0x1]
    %v3554 = vpack.c.bf16 %v3499, %v3499
    %v3555 = vpack.c.bf16 %v3500, %v3500
    %v3556 = vpack.c.bf16 %v3501, %v3501
    %v3557 = vpack.c.bf16 %v3502, %v3502
    %v3558 = vpack.c.bf16 %v3503, %v3503
    %v3559 = vpack.c.bf16 %v3504, %v3504
    %v3560 = vpack.c.bf16 %v3505, %v3505
    %v3561 = vpack.c.bf16 %v3506, %v3506
    %v3562 = vpack.c.bf16 %v3507, %v3507
    %v3563 = vpack.c.bf16 %v3508, %v3508
    %v3564 = vpack.c.bf16 %v3509, %v3509
    %v3565 = vpack.c.bf16 %v3510, %v3510
    %v3566 = vpack.c.bf16 %v3511, %v3511
    %v3567 = vpack.c.bf16 %v3512, %v3512
    %v3568 = vpack.c.bf16 %v3513, %v3513
    %v3569 = vpack.c.bf16 %v3514, %v3514
    %v3570 = vpack.c.bf16 %v3515, %v3515
    %v3571 = vpack.c.bf16 %v3516, %v3516
    %v3572 = vpack.c.bf16 %v3517, %v3517
    %v3573 = vpack.c.bf16 %v3518, %v3518
    %v3574 = vpack.c.bf16 %v3519, %v3519
    %v3575 = vpack.c.bf16 %v3520, %v3520
    %v3576 = vpack.c.bf16 %v3521, %v3521
    %v3577 = vpack.c.bf16 %v3522, %v3522
    %v3578 = vpack.c.bf16 %v3523, %v3523
    %v3579 = vpack.c.bf16 %v3524, %v3524
    %v3580 = vpack.c.bf16 %v3525, %v3525
    %v3581 = vpack.c.bf16 %v3526, %v3526
    %v3582 = vpack.c.bf16 %v3527, %v3527
    %v3583 = vpack.c.bf16 %v3528, %v3528
    %v3584 = vpack.c.bf16 %v3529, %v3529
    %v3585 = vpack.c.bf16 %v3530, %v3530
    %v3587 = vlaneseq
    %v3588 = vshrl.u32 %v3587, 7
    %v3589 = vsub.s32 0, %v3588
    %v3590 = vrot.slane %v3553, %v3589
    %v3624 = vunpack.c.l.b16 %v3554
    %v3625 = vunpack.c.l.b16 %v3555
    %v3626 = vunpack.c.l.b16 %v3556
    %v3627 = vunpack.c.l.b16 %v3557
    %v3628 = vunpack.c.l.b16 %v3558
    %v3629 = vunpack.c.l.b16 %v3559
    %v3630 = vunpack.c.l.b16 %v3560
    %v3631 = vunpack.c.l.b16 %v3561
    %v3632 = vunpack.c.l.b16 %v3562
    %v3633 = vunpack.c.l.b16 %v3563
    %v3634 = vunpack.c.l.b16 %v3564
    %v3635 = vunpack.c.l.b16 %v3565
    %v3636 = vunpack.c.l.b16 %v3566
    %v3637 = vunpack.c.l.b16 %v3567
    %v3638 = vunpack.c.l.b16 %v3568
    %v3639 = vunpack.c.l.b16 %v3569
    %v3640 = vunpack.c.l.b16 %v3570
    %v3641 = vunpack.c.l.b16 %v3571
    %v3642 = vunpack.c.l.b16 %v3572
    %v3643 = vunpack.c.l.b16 %v3573
    %v3644 = vunpack.c.l.b16 %v3574
    %v3645 = vunpack.c.l.b16 %v3575
    %v3646 = vunpack.c.l.b16 %v3576
    %v3647 = vunpack.c.l.b16 %v3577
    %v3648 = vunpack.c.l.b16 %v3578
    %v3649 = vunpack.c.l.b16 %v3579
    %v3650 = vunpack.c.l.b16 %v3580
    %v3651 = vunpack.c.l.b16 %v3581
    %v3652 = vunpack.c.l.b16 %v3582
    %v3653 = vunpack.c.l.b16 %v3583
    %v3654 = vunpack.c.l.b16 %v3584
    %v3655 = vunpack.c.l.b16 %v3585
    %v3656 = vrot.slane %v3625, 7
    %vm3657 = vcmask 1041409
    %v3658 = vsel %vm3657, %v3656, %v3624
    %v3659 = vrot.slane %v3626, 6
    %vm3660 = vcmask 1042434
    %v3661 = vsel %vm3660, %v3659, %v3658
    %v3662 = vrot.slane %v3627, 5
    %vm3663 = vcmask 1043459
    %v3664 = vsel %vm3663, %v3662, %v3661
    %v3665 = vrot.slane %v3628, 4
    %vm3666 = vcmask 1044484
    %v3667 = vsel %vm3666, %v3665, %v3664
    %v3668 = vrot.slane %v3629, 3
    %vm3669 = vcmask 1045509
    %v3670 = vsel %vm3669, %v3668, %v3667
    %v3671 = vrot.slane %v3630, 2
    %vm3672 = vcmask 1046534
    %v3673 = vsel %vm3672, %v3671, %v3670
    %v3674 = vrot.slane %v3631, 1
    %vm3675 = vcmask 1047559
    %v3676 = vsel %vm3675, %v3674, %v3673
    %v3677 = vrot.slane %v3633, 7
    %v3678 = vsel %vm3657, %v3677, %v3632
    %v3679 = vrot.slane %v3634, 6
    %v3680 = vsel %vm3660, %v3679, %v3678
    %v3681 = vrot.slane %v3635, 5
    %v3682 = vsel %vm3663, %v3681, %v3680
    %v3683 = vrot.slane %v3636, 4
    %v3684 = vsel %vm3666, %v3683, %v3682
    %v3685 = vrot.slane %v3637, 3
    %v3686 = vsel %vm3669, %v3685, %v3684
    %v3687 = vrot.slane %v3638, 2
    %v3688 = vsel %vm3672, %v3687, %v3686
    %v3689 = vrot.slane %v3639, 1
    %v3690 = vsel %vm3675, %v3689, %v3688
    %v3691 = vrot.slane %v3641, 7
    %v3692 = vsel %vm3657, %v3691, %v3640
    %v3693 = vrot.slane %v3642, 6
    %v3694 = vsel %vm3660, %v3693, %v3692
    %v3695 = vrot.slane %v3643, 5
    %v3696 = vsel %vm3663, %v3695, %v3694
    %v3697 = vrot.slane %v3644, 4
    %v3698 = vsel %vm3666, %v3697, %v3696
    %v3699 = vrot.slane %v3645, 3
    %v3700 = vsel %vm3669, %v3699, %v3698
    %v3701 = vrot.slane %v3646, 2
    %v3702 = vsel %vm3672, %v3701, %v3700
    %v3703 = vrot.slane %v3647, 1
    %v3704 = vsel %vm3675, %v3703, %v3702
    %v3705 = vrot.slane %v3649, 7
    %v3706 = vsel %vm3657, %v3705, %v3648
    %v3707 = vrot.slane %v3650, 6
    %v3708 = vsel %vm3660, %v3707, %v3706
    %v3709 = vrot.slane %v3651, 5
    %v3710 = vsel %vm3663, %v3709, %v3708
    %v3711 = vrot.slane %v3652, 4
    %v3712 = vsel %vm3666, %v3711, %v3710
    %v3713 = vrot.slane %v3653, 3
    %v3714 = vsel %vm3669, %v3713, %v3712
    %v3715 = vrot.slane %v3654, 2
    %v3716 = vsel %vm3672, %v3715, %v3714
    %v3717 = vrot.slane %v3655, 1
    %v3718 = vsel %vm3675, %v3717, %v3716
    %v3719 = vpack.c.b16 %v3690, %v3676
    %v3720 = vpack.c.b16 %v3718, %v3704
    %v3725 = vunpack.c.l.b16 %v3548
    %v3726 = vunpack.c.l.b16 %v3549
    %v3727 = vunpack.c.l.b16 %v3550
    %v3728 = vunpack.c.l.b16 %v3551
    %v3729 = vpack.c.b16 %v3726, %v3725
    %v3730 = vpack.c.b16 %v3728, %v3727
    %v3734 = vsel %vm433, %v3719, 0
    %v3737 = vsel %vm433, %v3720, 0
    %3739 = vmatprep.subr.bf16.mxu0 0
    %3740 = vmatpush1.bf16.msra.mxu0 %v3729
    %3741 = vmatprep.subr.bf16.mxu0 0
    %3742 = vmatpush1.bf16.msra.mxu0 %v3730
    %3743 = vmatprep.subr.bf16.mxu0 0
    %3744 = vmatpush1.bf16.msra.mxu0 0
    %3745 = vmatprep.subr.bf16.mxu0 0
    %3746 = vmatpush1.bf16.msra.mxu0 0
    %3747 = vmatprep.subr.bf16.mxu0 0
    %3748 = vmatpush1.bf16.msra.mxu0 0
    %3749 = vmatprep.subr.bf16.mxu0 0
    %3750 = vmatpush1.bf16.msra.mxu0 0
    %3751 = vmatprep.subr.bf16.mxu0 0
    %3752 = vmatpush1.bf16.msra.mxu0 0
    %3753 = vmatprep.subr.bf16.mxu0 0
    %3754 = vmatpush1.bf16.msra.mxu0 0
    %3755 = vmatprep.subr.bf16.mxu0 0
    %3756 = vmatpush1.bf16.msra.mxu0 0
    %3757 = vmatprep.subr.bf16.mxu0 0
    %3758 = vmatpush1.bf16.msra.mxu0 0
    %3759 = vmatprep.subr.bf16.mxu0 0
    %3760 = vmatpush1.bf16.msra.mxu0 0
    %3761 = vmatprep.subr.bf16.mxu0 0
    %3762 = vmatpush1.bf16.msra.mxu0 0
    %3763 = vmatprep.subr.bf16.mxu0 0
    %3764 = vmatpush1.bf16.msra.mxu0 0
    %3765 = vmatprep.subr.bf16.mxu0 0
    %3766 = vmatpush1.bf16.msra.mxu0 0
    %3767 = vmatprep.subr.bf16.mxu0 0
    %3768 = vmatpush1.bf16.msra.mxu0 0
    %3769 = vmatprep.subr.bf16.mxu0 0
    %3770 = vmatpush1.bf16.msra.mxu0 0
    %3771 = vmatprep.mubr.bf16.mxu0 0
    %3772 = vmatmul.mubr.bf16.gmra.mrb[0].mxu0 %v3734
    %v3773 = vpop.f32.mrb[0].mxu0
    %v3774 = vadd.f32 %v3590, %v3773
    %v3775 = vpop.f32.mrb[0].mxu0
    %v3776 = vpop.f32.mrb[0].mxu0
    %v3777 = vadd.f32 %v3590, %v3776
    %v3778 = vpop.f32.mrb[0].mxu0
    %3779 = vmatprep.mubr.bf16.mxu0 0
    %3780 = vmatmul.mubr.bf16.gmra.mrb[0].mxu0 %v3737
    %v3781 = vpop.f32.mrb[0].mxu0
    %v3782 = vadd.f32 %v3590, %v3781
    %v3783 = vpop.f32.mrb[0].mxu0
    %v3784 = vpop.f32.mrb[0].mxu0
    %v3785 = vadd.f32 %v3590, %v3784
    %v3786 = vpop.f32.mrb[0].mxu0
    %3787 = vdwg.mxu0
    %v3788 = vpack.c.bf16 %v3777, %v3774
    %v3789 = vpack.c.bf16 %v3785, %v3782
    %3790 = vrot.lane.b32.xlu0 %v3729, 96
    %v3791 = vpop.permute.xlu0 %3790
    %3792 = vrot.lane.b32.xlu0 %v3730, 96
    %v3793 = vpop.permute.xlu0 %3792
    %3796 = vrot.lane.b32.xlu0 %v3590, 96
    %v3797 = vpop.permute.xlu0 %3796
    %v3800 = vsel %vm433, %v3531, 0
    %v3803 = vsel %vm433, %v3532, 0
    %v3806 = vsel %vm433, %v3533, 0
    %v3809 = vsel %vm433, %v3534, 0
    %v3812 = vsel %vm433, %v3535, 0
    %v3815 = vsel %vm433, %v3536, 0
    %v3818 = vsel %vm433, %v3537, 0
    %v3821 = vsel %vm433, %v3538, 0
    %v3824 = vsel %vm433, %v3539, 0
    %v3827 = vsel %vm433, %v3540, 0
    %v3830 = vsel %vm433, %v3541, 0
    %v3833 = vsel %vm433, %v3542, 0
    %v3836 = vsel %vm433, %v3543, 0
    %v3839 = vsel %vm433, %v3544, 0
    %v3842 = vsel %vm433, %v3545, 0
    %v3845 = vsel %vm433, %v3546, 0
    %3847 = vmatprep.subr.bf16.mxu0 0
    %3848 = vmatpush1.bf16.msra.mxu0 %v3791
    %3849 = vmatprep.subr.bf16.mxu0 0
    %3850 = vmatpush1.bf16.msra.mxu0 %v3793
    %3851 = vmatprep.subr.bf16.mxu0 0
    %3852 = vmatpush1.bf16.msra.mxu0 0
    %3853 = vmatprep.subr.bf16.mxu0 0
    %3854 = vmatpush1.bf16.msra.mxu0 0
    %3855 = vmatprep.subr.bf16.mxu0 0
    %3856 = vmatpush1.bf16.msra.mxu0 0
    %3857 = vmatprep.subr.bf16.mxu0 0
    %3858 = vmatpush1.bf16.msra.mxu0 0
    %3859 = vmatprep.subr.bf16.mxu0 0
    %3860 = vmatpush1.bf16.msra.mxu0 0
    %3861 = vmatprep.subr.bf16.mxu0 0
    %3862 = vmatpush1.bf16.msra.mxu0 0
    %3863 = vmatprep.subr.bf16.mxu0 0
    %3864 = vmatpush1.bf16.msra.mxu0 0
    %3865 = vmatprep.subr.bf16.mxu0 0
    %3866 = vmatpush1.bf16.msra.mxu0 0
    %3867 = vmatprep.subr.bf16.mxu0 0
    %3868 = vmatpush1.bf16.msra.mxu0 0
    %3869 = vmatprep.subr.bf16.mxu0 0
    %3870 = vmatpush1.bf16.msra.mxu0 0
    %3871 = vmatprep.subr.bf16.mxu0 0
    %3872 = vmatpush1.bf16.msra.mxu0 0
    %3873 = vmatprep.subr.bf16.mxu0 0
    %3874 = vmatpush1.bf16.msra.mxu0 0
    %3875 = vmatprep.subr.bf16.mxu0 0
    %3876 = vmatpush1.bf16.msra.mxu0 0
    %3877 = vmatprep.subr.bf16.mxu0 0
    %3878 = vmatpush1.bf16.msra.mxu0 0
    %3879 = vmatprep.mubr.bf16.mxu0 0
    %3880 = vmatmul.mubr.bf16.gmra.mrb[0].mxu0 %v3800
    %v3881 = vpop.f32.mrb[0].mxu0
    %v3882 = vadd.f32 %v3797, %v3881
    %v3883 = vpop.f32.mrb[0].mxu0
    %v3884 = vpop.f32.mrb[0].mxu0
    %v3885 = vadd.f32 %v3797, %v3884
    %v3886 = vpop.f32.mrb[0].mxu0
    %3887 = vmatprep.mubr.bf16.mxu0 0
    %3888 = vmatmul.mubr.bf16.gmra.mrb[0].mxu0 %v3803
    %v3889 = vpop.f32.mrb[0].mxu0
    %v3890 = vadd.f32 %v3797, %v3889
    %v3891 = vpop.f32.mrb[0].mxu0
    %v3892 = vpop.f32.mrb[0].mxu0
    %v3893 = vadd.f32 %v3797, %v3892
    %v3894 = vpop.f32.mrb[0].mxu0
    %3895 = vmatprep.mubr.bf16.mxu0 0
    %3896 = vmatmul.mubr.bf16.gmra.mrb[0].mxu0 %v3806
    %v3897 = vpop.f32.mrb[0].mxu0
    %v3898 = vadd.f32 %v3797, %v3897
    %v3899 = vpop.f32.mrb[0].mxu0
    %v3900 = vpop.f32.mrb[0].mxu0
    %v3901 = vadd.f32 %v3797, %v3900
    %v3902 = vpop.f32.mrb[0].mxu0
    %3903 = vmatprep.mubr.bf16.mxu0 0
    %3904 = vmatmul.mubr.bf16.gmra.mrb[0].mxu0 %v3809
    %v3905 = vpop.f32.mrb[0].mxu0
    %v3906 = vadd.f32 %v3797, %v3905
    %v3907 = vpop.f32.mrb[0].mxu0
    %v3908 = vpop.f32.mrb[0].mxu0
    %v3909 = vadd.f32 %v3797, %v3908
    %v3910 = vpop.f32.mrb[0].mxu0
    %3911 = vmatprep.mubr.bf16.mxu0 0
    %3912 = vmatmul.mubr.bf16.gmra.mrb[0].mxu0 %v3812
    %v3913 = vpop.f32.mrb[0].mxu0
    %v3914 = vadd.f32 %v3797, %v3913
    %v3915 = vpop.f32.mrb[0].mxu0
    %v3916 = vpop.f32.mrb[0].mxu0
    %v3917 = vadd.f32 %v3797, %v3916
    %v3918 = vpop.f32.mrb[0].mxu0
    %3919 = vmatprep.mubr.bf16.mxu0 0
    %3920 = vmatmul.mubr.bf16.gmra.mrb[0].mxu0 %v3815
    %v3921 = vpop.f32.mrb[0].mxu0
    %v3922 = vadd.f32 %v3797, %v3921
    %v3923 = vpop.f32.mrb[0].mxu0
    %v3924 = vpop.f32.mrb[0].mxu0
    %v3925 = vadd.f32 %v3797, %v3924
    %v3926 = vpop.f32.mrb[0].mxu0
    %3927 = vmatprep.mubr.bf16.mxu0 0
    %3928 = vmatmul.mubr.bf16.gmra.mrb[0].mxu0 %v3818
    %v3929 = vpop.f32.mrb[0].mxu0
    %v3930 = vadd.f32 %v3797, %v3929
    %v3931 = vpop.f32.mrb[0].mxu0
    %v3932 = vpop.f32.mrb[0].mxu0
    %v3933 = vadd.f32 %v3797, %v3932
    %v3934 = vpop.f32.mrb[0].mxu0
    %3935 = vmatprep.mubr.bf16.mxu0 0
    %3936 = vmatmul.mubr.bf16.gmra.mrb[0].mxu0 %v3821
    %v3937 = vpop.f32.mrb[0].mxu0
    %v3938 = vadd.f32 %v3797, %v3937
    %v3939 = vpop.f32.mrb[0].mxu0
    %v3940 = vpop.f32.mrb[0].mxu0
    %v3941 = vadd.f32 %v3797, %v3940
    %v3942 = vpop.f32.mrb[0].mxu0
    %3943 = vmatprep.mubr.bf16.mxu0 0
    %3944 = vmatmul.mubr.bf16.gmra.mrb[0].mxu0 %v3824
    %v3945 = vpop.f32.mrb[0].mxu0
    %v3946 = vadd.f32 %v3797, %v3945
    %v3947 = vpop.f32.mrb[0].mxu0
    %v3948 = vpop.f32.mrb[0].mxu0
    %v3949 = vadd.f32 %v3797, %v3948
    %v3950 = vpop.f32.mrb[0].mxu0
    %3951 = vmatprep.mubr.bf16.mxu0 0
    %3952 = vmatmul.mubr.bf16.gmra.mrb[0].mxu0 %v3827
    %v3953 = vpop.f32.mrb[0].mxu0
    %v3954 = vadd.f32 %v3797, %v3953
    %v3955 = vpop.f32.mrb[0].mxu0
    %v3956 = vpop.f32.mrb[0].mxu0
    %v3957 = vadd.f32 %v3797, %v3956
    %v3958 = vpop.f32.mrb[0].mxu0
    %3959 = vmatprep.mubr.bf16.mxu0 0
    %3960 = vmatmul.mubr.bf16.gmra.mrb[0].mxu0 %v3830
    %v3961 = vpop.f32.mrb[0].mxu0
    %v3962 = vadd.f32 %v3797, %v3961
    %v3963 = vpop.f32.mrb[0].mxu0
    %v3964 = vpop.f32.mrb[0].mxu0
    %v3965 = vadd.f32 %v3797, %v3964
    %v3966 = vpop.f32.mrb[0].mxu0
    %3967 = vmatprep.mubr.bf16.mxu0 0
    %3968 = vmatmul.mubr.bf16.gmra.mrb[0].mxu0 %v3833
    %v3969 = vpop.f32.mrb[0].mxu0
    %v3970 = vadd.f32 %v3797, %v3969
    %v3971 = vpop.f32.mrb[0].mxu0
    %v3972 = vpop.f32.mrb[0].mxu0
    %v3973 = vadd.f32 %v3797, %v3972
    %v3974 = vpop.f32.mrb[0].mxu0
    %3975 = vmatprep.mubr.bf16.mxu0 0
    %3976 = vmatmul.mubr.bf16.gmra.mrb[0].mxu0 %v3836
    %v3977 = vpop.f32.mrb[0].mxu0
    %v3978 = vadd.f32 %v3797, %v3977
    %v3979 = vpop.f32.mrb[0].mxu0
    %v3980 = vpop.f32.mrb[0].mxu0
    %v3981 = vadd.f32 %v3797, %v3980
    %v3982 = vpop.f32.mrb[0].mxu0
    %3983 = vmatprep.mubr.bf16.mxu0 0
    %3984 = vmatmul.mubr.bf16.gmra.mrb[0].mxu0 %v3839
    %v3985 = vpop.f32.mrb[0].mxu0
    %v3986 = vadd.f32 %v3797, %v3985
    %v3987 = vpop.f32.mrb[0].mxu0
    %v3988 = vpop.f32.mrb[0].mxu0
    %v3989 = vadd.f32 %v3797, %v3988
    %v3990 = vpop.f32.mrb[0].mxu0
    %3991 = vmatprep.mubr.bf16.mxu0 0
    %3992 = vmatmul.mubr.bf16.gmra.mrb[0].mxu0 %v3842
    %v3993 = vpop.f32.mrb[0].mxu0
    %v3994 = vadd.f32 %v3797, %v3993
    %v3995 = vpop.f32.mrb[0].mxu0
    %v3996 = vpop.f32.mrb[0].mxu0
    %v3997 = vadd.f32 %v3797, %v3996
    %v3998 = vpop.f32.mrb[0].mxu0
    %3999 = vmatprep.mubr.bf16.mxu0 0
    %4000 = vmatmul.mubr.bf16.gmra.mrb[0].mxu0 %v3845
    %v4001 = vpop.f32.mrb[0].mxu0
    %v4002 = vadd.f32 %v3797, %v4001
    %v4003 = vpop.f32.mrb[0].mxu0
    %v4004 = vpop.f32.mrb[0].mxu0
    %v4005 = vadd.f32 %v3797, %v4004
    %v4006 = vpop.f32.mrb[0].mxu0
    %4007 = vdwg.mxu0
    %v4008 = vpack.c.bf16 %v3885, %v3882
    %v4009 = vpack.c.bf16 %v3893, %v3890
    %v4010 = vpack.c.bf16 %v3901, %v3898
    %v4011 = vpack.c.bf16 %v3909, %v3906
    %v4012 = vpack.c.bf16 %v3917, %v3914
    %v4013 = vpack.c.bf16 %v3925, %v3922
    %v4014 = vpack.c.bf16 %v3933, %v3930
    %v4015 = vpack.c.bf16 %v3941, %v3938
    %v4016 = vpack.c.bf16 %v3949, %v3946
    %v4017 = vpack.c.bf16 %v3957, %v3954
    %v4018 = vpack.c.bf16 %v3965, %v3962
    %v4019 = vpack.c.bf16 %v3973, %v3970
    %v4020 = vpack.c.bf16 %v3981, %v3978
    %v4021 = vpack.c.bf16 %v3989, %v3986
    %v4022 = vpack.c.bf16 %v3997, %v3994
    %v4023 = vpack.c.bf16 %v4005, %v4002
    %v4025 = vsel %vm433, %v3788, 0
    %v4028 = vsel %vm433, %v3789, 0
    %v4031 = vsel %vm433, %v4008, 0
    %v4034 = vsel %vm433, %v4009, 0
    %v4037 = vsel %vm433, %v4010, 0
    %v4040 = vsel %vm433, %v4011, 0
    %v4043 = vsel %vm433, %v4012, 0
    %v4046 = vsel %vm433, %v4013, 0
    %v4049 = vsel %vm433, %v4014, 0
    %v4052 = vsel %vm433, %v4015, 0
    %v4055 = vsel %vm433, %v4016, 0
    %v4058 = vsel %vm433, %v4017, 0
    %v4061 = vsel %vm433, %v4018, 0
    %v4064 = vsel %vm433, %v4019, 0
    %v4067 = vsel %vm433, %v4020, 0
    %v4070 = vsel %vm433, %v4021, 0
    %v4073 = vsel %vm433, %v4022, 0
    %v4076 = vsel %vm433, %v4023, 0
    %4078 = vmatprep.subr.bf16.mxu0 0
    %4079 = vmatpush1.bf16.xpose.msra.mxu0 %v4031
    %4080 = vmatprep.subr.bf16.mxu0 0
    %4081 = vmatpush1.bf16.xpose.msra.mxu0 %v4034
    %4082 = vmatprep.subr.bf16.mxu0 0
    %4083 = vmatpush1.bf16.xpose.msra.mxu0 %v4037
    %4084 = vmatprep.subr.bf16.mxu0 0
    %4085 = vmatpush1.bf16.xpose.msra.mxu0 %v4040
    %4086 = vmatprep.subr.bf16.mxu0 0
    %4087 = vmatpush1.bf16.xpose.msra.mxu0 %v4043
    %4088 = vmatprep.subr.bf16.mxu0 0
    %4089 = vmatpush1.bf16.xpose.msra.mxu0 %v4046
    %4090 = vmatprep.subr.bf16.mxu0 0
    %4091 = vmatpush1.bf16.xpose.msra.mxu0 %v4049
    %4092 = vmatprep.subr.bf16.mxu0 0
    %4093 = vmatpush1.bf16.xpose.msra.mxu0 %v4052
    %4094 = vmatprep.subr.bf16.mxu0 0
    %4095 = vmatpush1.bf16.xpose.msra.mxu0 %v4055
    %4096 = vmatprep.subr.bf16.mxu0 0
    %4097 = vmatpush1.bf16.xpose.msra.mxu0 %v4058
    %4098 = vmatprep.subr.bf16.mxu0 0
    %4099 = vmatpush1.bf16.xpose.msra.mxu0 %v4061
    %4100 = vmatprep.subr.bf16.mxu0 0
    %4101 = vmatpush1.bf16.xpose.msra.mxu0 %v4064
    %4102 = vmatprep.subr.bf16.mxu0 0
    %4103 = vmatpush1.bf16.xpose.msra.mxu0 %v4067
    %4104 = vmatprep.subr.bf16.mxu0 0
    %4105 = vmatpush1.bf16.xpose.msra.mxu0 %v4070
    %4106 = vmatprep.subr.bf16.mxu0 0
    %4107 = vmatpush1.bf16.xpose.msra.mxu0 %v4073
    %4108 = vmatprep.subr.bf16.mxu0 0
    %4109 = vmatpush1.bf16.xpose.msra.mxu0 %v4076
    %4110 = vmatprep.mubr.bf16.mxu0 0
    %4111 = vmatmul.mubr.bf16.gmra.mrb[0].mxu0 %v4025
    %v4112 = vpop.f32.mrb[0].mxu0
    %v4113 = vadd.f32 %v386, %v4112
    %v4114 = vpop.f32.mrb[0].mxu0
    %v4115 = vadd.f32 %v387, %v4114
    %v4116 = vpop.f32.mrb[0].mxu0
    %v4117 = vadd.f32 %v388, %v4116
    %v4118 = vpop.f32.mrb[0].mxu0
    %v4119 = vadd.f32 %v389, %v4118
    %4120 = vmatprep.mubr.bf16.mxu0 0
    %4121 = vmatmul.mubr.bf16.gmra.mrb[0].mxu0 %v4028
    %v4122 = vpop.f32.mrb[0].mxu0
    %v4123 = vadd.f32 %v390, %v4122
    %v4124 = vpop.f32.mrb[0].mxu0
    %v4125 = vadd.f32 %v391, %v4124
    %v4126 = vpop.f32.mrb[0].mxu0
    %v4127 = vadd.f32 %v392, %v4126
    %v4128 = vpop.f32.mrb[0].mxu0
    %v4129 = vadd.f32 %v393, %v4128
    %4130 = vdwg.mxu0
    %v4131 = vmax.f32 %v4113, %v4115
    %4132 = vmax.xlane.f32.xlu0 %v4131
    %v4133 = vpop.xlane.xlu0 %4132
    %v4134 = vmax.f32 %v4117, %v4119
    %4135 = vmax.xlane.f32.xlu0 %v4134
    %v4136 = vpop.xlane.xlu0 %4135
    %v4137 = vmax.f32 %v4123, %v4125
    %4138 = vmax.xlane.f32.xlu0 %v4137
    %v4139 = vpop.xlane.xlu0 %4138
    %v4140 = vmax.f32 %v4127, %v4129
    %4141 = vmax.xlane.f32.xlu0 %v4140
    %v4142 = vpop.xlane.xlu0 %4141
    %v4143 = vsub.f32 %v4113, %v4133
    %v4144 = vsub.f32 %v4115, %v4133
    %v4145 = vsub.f32 %v4117, %v4136
    %v4146 = vsub.f32 %v4119, %v4136
    %v4147 = vsub.f32 %v4123, %v4139
    %v4148 = vsub.f32 %v4125, %v4139
    %v4149 = vsub.f32 %v4127, %v4142
    %v4150 = vsub.f32 %v4129, %v4142
    %v4151 = vmul.f32 %v4143, 1.442695
    %v4152 = vpow.pop %v4151
    %v4153 = vmul.f32 %v4144, 1.442695
    %v4154 = vpow.pop %v4153
    %v4155 = vmul.f32 %v4145, 1.442695
    %v4156 = vpow.pop %v4155
    %v4157 = vmul.f32 %v4146, 1.442695
    %v4158 = vpow.pop %v4157
    %v4159 = vmul.f32 %v4147, 1.442695
    %v4160 = vpow.pop %v4159
    %v4161 = vmul.f32 %v4148, 1.442695
    %v4162 = vpow.pop %v4161
    %v4163 = vmul.f32 %v4149, 1.442695
    %v4164 = vpow.pop %v4163
    %v4165 = vmul.f32 %v4150, 1.442695
    %v4166 = vpow.pop %v4165
    %v4167 = vadd.f32 %v4152, %v4154
    %4168 = vadd.xlane.f32.xlu0 %v4167
    %v4169 = vpop.xlane.xlu0 %4168
    %v4170 = vadd.f32 %v4156, %v4158
    %4171 = vadd.xlane.f32.xlu0 %v4170
    %v4172 = vpop.xlane.xlu0 %4171
    %v4173 = vadd.f32 %v4160, %v4162
    %4174 = vadd.xlane.f32.xlu0 %v4173
    %v4175 = vpop.xlane.xlu0 %4174
    %v4176 = vadd.f32 %v4164, %v4166
    %4177 = vadd.xlane.f32.xlu0 %v4176
    %v4178 = vpop.xlane.xlu0 %4177
    %v4179 = vpack.c.bf16 %v4156, %v4152
    %v4180 = vpack.c.bf16 %v4158, %v4154
    %v4181 = vpack.c.bf16 %v4164, %v4160
    %v4182 = vpack.c.bf16 %v4166, %v4162
    %4199 = vrot.lane.b32.xlu0 %v4008, 96
    %v4200 = vpop.permute.xlu0 %4199
    %4201 = vrot.lane.b32.xlu0 %v4009, 96
    %v4202 = vpop.permute.xlu0 %4201
    %4203 = vrot.lane.b32.xlu0 %v4010, 96
    %v4204 = vpop.permute.xlu0 %4203
    %4205 = vrot.lane.b32.xlu0 %v4011, 96
    %v4206 = vpop.permute.xlu0 %4205
    %4207 = vrot.lane.b32.xlu0 %v4012, 96
    %v4208 = vpop.permute.xlu0 %4207
    %4209 = vrot.lane.b32.xlu0 %v4013, 96
    %v4210 = vpop.permute.xlu0 %4209
    %4211 = vrot.lane.b32.xlu0 %v4014, 96
    %v4212 = vpop.permute.xlu0 %4211
    %4213 = vrot.lane.b32.xlu0 %v4015, 96
    %v4214 = vpop.permute.xlu0 %4213
    %4215 = vrot.lane.b32.xlu0 %v4016, 96
    %v4216 = vpop.permute.xlu0 %4215
    %4217 = vrot.lane.b32.xlu0 %v4017, 96
    %v4218 = vpop.permute.xlu0 %4217
    %4219 = vrot.lane.b32.xlu0 %v4018, 96
    %v4220 = vpop.permute.xlu0 %4219
    %4221 = vrot.lane.b32.xlu0 %v4019, 96
    %v4222 = vpop.permute.xlu0 %4221
    %4223 = vrot.lane.b32.xlu0 %v4020, 96
    %v4224 = vpop.permute.xlu0 %4223
    %4225 = vrot.lane.b32.xlu0 %v4021, 96
    %v4226 = vpop.permute.xlu0 %4225
    %4227 = vrot.lane.b32.xlu0 %v4022, 96
    %v4228 = vpop.permute.xlu0 %4227
    %4229 = vrot.lane.b32.xlu0 %v4023, 96
    %v4230 = vpop.permute.xlu0 %4229
    %4247 = vmatprep.subr.bf16.mxu0 0
    %4248 = vmatpush1.bf16.msra.mxu0 %v4200
    %4249 = vmatprep.subr.bf16.mxu0 0
    %4250 = vmatpush1.bf16.msra.mxu0 %v4202
    %4251 = vmatprep.subr.bf16.mxu0 0
    %4252 = vmatpush1.bf16.msra.mxu0 %v4204
    %4253 = vmatprep.subr.bf16.mxu0 0
    %4254 = vmatpush1.bf16.msra.mxu0 %v4206
    %4255 = vmatprep.subr.bf16.mxu0 0
    %4256 = vmatpush1.bf16.msra.mxu0 %v4208
    %4257 = vmatprep.subr.bf16.mxu0 0
    %4258 = vmatpush1.bf16.msra.mxu0 %v4210
    %4259 = vmatprep.subr.bf16.mxu0 0
    %4260 = vmatpush1.bf16.msra.mxu0 %v4212
    %4261 = vmatprep.subr.bf16.mxu0 0
    %4262 = vmatpush1.bf16.msra.mxu0 %v4214
    %4263 = vmatprep.subr.bf16.mxu0 0
    %4264 = vmatpush1.bf16.msra.mxu0 %v4216
    %4265 = vmatprep.subr.bf16.mxu0 0
    %4266 = vmatpush1.bf16.msra.mxu0 %v4218
    %4267 = vmatprep.subr.bf16.mxu0 0
    %4268 = vmatpush1.bf16.msra.mxu0 %v4220
    %4269 = vmatprep.subr.bf16.mxu0 0
    %4270 = vmatpush1.bf16.msra.mxu0 %v4222
    %4271 = vmatprep.subr.bf16.mxu0 0
    %4272 = vmatpush1.bf16.msra.mxu0 %v4224
    %4273 = vmatprep.subr.bf16.mxu0 0
    %4274 = vmatpush1.bf16.msra.mxu0 %v4226
    %4275 = vmatprep.subr.bf16.mxu0 0
    %4276 = vmatpush1.bf16.msra.mxu0 %v4228
    %4277 = vmatprep.subr.bf16.mxu0 0
    %4278 = vmatpush1.bf16.msra.mxu0 %v4230
    %4279 = vmatprep.mubr.bf16.mxu0 %v4180
    %4280 = vmatmul.mubr.bf16.gmra.mrb[0].mxu0 %v4179
    %v4281 = vpop.f32.mrb[0].mxu0
    %v4282 = vadd.f32 0.0, %v4281
    %v4283 = vpop.f32.mrb[0].mxu0
    %v4284 = vpop.f32.mrb[0].mxu0
    %v4285 = vadd.f32 0.0, %v4284
    %v4286 = vpop.f32.mrb[0].mxu0
    %4287 = vmatprep.mubr.bf16.mxu0 %v4182
    %4288 = vmatmul.mubr.bf16.gmra.mrb[0].mxu0 %v4181
    %v4289 = vpop.f32.mrb[0].mxu0
    %v4290 = vadd.f32 0.0, %v4289
    %v4291 = vpop.f32.mrb[0].mxu0
    %v4292 = vpop.f32.mrb[0].mxu0
    %v4293 = vadd.f32 0.0, %v4292
    %v4294 = vpop.f32.mrb[0].mxu0
    %4295 = vdwg.mxu0
    %v4296 = vrcp.pop %v4169
    %v4297 = vrcp.pop %v4172
    %v4298 = vrcp.pop %v4175
    %v4299 = vrcp.pop %v4178
    %v4300 = vmul.f32 %v4282, %v4296
    %v4301 = vmul.f32 %v4285, %v4297
    %v4302 = vmul.f32 %v4290, %v4298
    %v4303 = vmul.f32 %v4293, %v4299
    %v4304 = vpack.c.bf16 %v4301, %v4300
    %v4305 = vpack.c.bf16 %v4303, %v4302
    %s4306 = scalar_lea.vmem [#allocation7], 16
    %v4307 = vld [vmem:[%s4306] sm:$0xf]
    %v4308 = vld [vmem:[%s4306 + $0x4] sm:$0xf]
    %v4309 = vld [vmem:[%s4306 + $0x8] sm:$0xf]
    %v4310 = vld [vmem:[%s4306 + $0xc] sm:$0xf]
    %s4311 = scalar_lea.vmem [#allocation8], 1
    %v4312 = vld [vmem:[%s4311] sm:$0x1]
    %v4314 = vlaneseq
    %v4315 = vshrl.u32 %v4314, 7
    %v4316 = vsub.s32 0, %v4315
    %v4317 = vrot.slane %v4312, %v4316
    %v4323 = vunpack.c.l.b16 %v4307
    %v4324 = vunpack.c.l.b16 %v4308
    %v4325 = vunpack.c.l.b16 %v4309
    %v4326 = vunpack.c.l.b16 %v4310
    %v4327 = vpack.c.b16 %v4324, %v4323
    %v4328 = vpack.c.b16 %v4326, %v4325
    %v4332 = vsel %vm433, %v4304, 0
    %v4335 = vsel %vm433, %v4305, 0
    %4337 = vmatprep.subr.bf16.mxu0 0
    %4338 = vmatpush1.bf16.msra.mxu0 %v4327
    %4339 = vmatprep.subr.bf16.mxu0 0
    %4340 = vmatpush1.bf16.msra.mxu0 %v4328
    %4341 = vmatprep.subr.bf16.mxu0 0
    %4342 = vmatpush1.bf16.msra.mxu0 0
    %4343 = vmatprep.subr.bf16.mxu0 0
    %4344 = vmatpush1.bf16.msra.mxu0 0
    %4345 = vmatprep.subr.bf16.mxu0 0
    %4346 = vmatpush1.bf16.msra.mxu0 0
    %4347 = vmatprep.subr.bf16.mxu0 0
    %4348 = vmatpush1.bf16.msra.mxu0 0
    %4349 = vmatprep.subr.bf16.mxu0 0
    %4350 = vmatpush1.bf16.msra.mxu0 0
    %4351 = vmatprep.subr.bf16.mxu0 0
    %4352 = vmatpush1.bf16.msra.mxu0 0
    %4353 = vmatprep.subr.bf16.mxu0 0
    %4354 = vmatpush1.bf16.msra.mxu0 0
    %4355 = vmatprep.subr.bf16.mxu0 0
    %4356 = vmatpush1.bf16.msra.mxu0 0
    %4357 = vmatprep.subr.bf16.mxu0 0
    %4358 = vmatpush1.bf16.msra.mxu0 0
    %4359 = vmatprep.subr.bf16.mxu0 0
    %4360 = vmatpush1.bf16.msra.mxu0 0
    %4361 = vmatprep.subr.bf16.mxu0 0
    %4362 = vmatpush1.bf16.msra.mxu0 0
    %4363 = vmatprep.subr.bf16.mxu0 0
    %4364 = vmatpush1.bf16.msra.mxu0 0
    %4365 = vmatprep.subr.bf16.mxu0 0
    %4366 = vmatpush1.bf16.msra.mxu0 0
    %4367 = vmatprep.subr.bf16.mxu0 0
    %4368 = vmatpush1.bf16.msra.mxu0 0
    %4369 = vmatprep.mubr.bf16.mxu0 0
    %4370 = vmatmul.mubr.bf16.gmra.mrb[0].mxu0 %v4332
    %v4371 = vpop.f32.mrb[0].mxu0
    %v4372 = vadd.f32 %v4317, %v4371
    %v4373 = vpop.f32.mrb[0].mxu0
    %v4374 = vpop.f32.mrb[0].mxu0
    %v4375 = vadd.f32 %v4317, %v4374
    %v4376 = vpop.f32.mrb[0].mxu0
    %4377 = vmatprep.mubr.bf16.mxu0 0
    %4378 = vmatmul.mubr.bf16.gmra.mrb[0].mxu0 %v4335
    %v4379 = vpop.f32.mrb[0].mxu0
    %v4380 = vadd.f32 %v4317, %v4379
    %v4381 = vpop.f32.mrb[0].mxu0
    %v4382 = vpop.f32.mrb[0].mxu0
    %v4383 = vadd.f32 %v4317, %v4382
    %v4384 = vpop.f32.mrb[0].mxu0
    %4385 = vdwg.mxu0
    %v4390 = vrot.slane %v4372, 1
    %v4391 = vrot.slane %v4372, 2
    %v4392 = vrot.slane %v4372, 3
    %v4393 = vrot.slane %v4372, 4
    %v4394 = vrot.slane %v4372, 5
    %v4395 = vrot.slane %v4372, 6
    %v4396 = vrot.slane %v4372, 7
    %v4397 = vrot.slane %v4375, 1
    %v4398 = vrot.slane %v4375, 2
    %v4399 = vrot.slane %v4375, 3
    %v4400 = vrot.slane %v4375, 4
    %v4401 = vrot.slane %v4375, 5
    %v4402 = vrot.slane %v4375, 6
    %v4403 = vrot.slane %v4375, 7
    %v4404 = vrot.slane %v4380, 1
    %v4405 = vrot.slane %v4380, 2
    %v4406 = vrot.slane %v4380, 3
    %v4407 = vrot.slane %v4380, 4
    %v4408 = vrot.slane %v4380, 5
    %v4409 = vrot.slane %v4380, 6
    %v4410 = vrot.slane %v4380, 7
    %v4411 = vrot.slane %v4383, 1
    %v4412 = vrot.slane %v4383, 2
    %v4413 = vrot.slane %v4383, 3
    %v4414 = vrot.slane %v4383, 4
    %v4415 = vrot.slane %v4383, 5
    %v4416 = vrot.slane %v4383, 6
    %v4417 = vrot.slane %v4383, 7
    %v4450 = vadd.f32 %v3499, %v4372
    %v4451 = vadd.f32 %v3500, %v4390
    %v4452 = vadd.f32 %v3501, %v4391
    %v4453 = vadd.f32 %v3502, %v4392
    %v4454 = vadd.f32 %v3503, %v4393
    %v4455 = vadd.f32 %v3504, %v4394
    %v4456 = vadd.f32 %v3505, %v4395
    %v4457 = vadd.f32 %v3506, %v4396
    %v4458 = vadd.f32 %v3507, %v4375
    %v4459 = vadd.f32 %v3508, %v4397
    %v4460 = vadd.f32 %v3509, %v4398
    %v4461 = vadd.f32 %v3510, %v4399
    %v4462 = vadd.f32 %v3511, %v4400
    %v4463 = vadd.f32 %v3512, %v4401
    %v4464 = vadd.f32 %v3513, %v4402
    %v4465 = vadd.f32 %v3514, %v4403
    %v4466 = vadd.f32 %v3515, %v4380
    %v4467 = vadd.f32 %v3516, %v4404
    %v4468 = vadd.f32 %v3517, %v4405
    %v4469 = vadd.f32 %v3518, %v4406
    %v4470 = vadd.f32 %v3519, %v4407
    %v4471 = vadd.f32 %v3520, %v4408
    %v4472 = vadd.f32 %v3521, %v4409
    %v4473 = vadd.f32 %v3522, %v4410
    %v4474 = vadd.f32 %v3523, %v4383
    %v4475 = vadd.f32 %v3524, %v4411
    %v4476 = vadd.f32 %v3525, %v4412
    %v4477 = vadd.f32 %v3526, %v4413
    %v4478 = vadd.f32 %v3527, %v4414
    %v4479 = vadd.f32 %v3528, %v4415
    %v4480 = vadd.f32 %v3529, %v4416
    %v4481 = vadd.f32 %v3530, %v4417
    %s4482 = scalar_lea.vmem %s13, 1
    %v4483 = vld [vmem:[%s4482] sm:$0x1]
    %s4484 = scalar_lea.vmem %s14, 1
    %v4485 = vld [vmem:[%s4484] sm:$0x1]
    %v4518 = vrot.slane %v4451, 7
    %v4519 = vsel %vm3657, %v4518, %v4450
    %v4520 = vrot.slane %v4452, 6
    %v4521 = vsel %vm3660, %v4520, %v4519
    %v4522 = vrot.slane %v4453, 5
    %v4523 = vsel %vm3663, %v4522, %v4521
    %v4524 = vrot.slane %v4454, 4
    %v4525 = vsel %vm3666, %v4524, %v4523
    %v4526 = vrot.slane %v4455, 3
    %v4527 = vsel %vm3669, %v4526, %v4525
    %v4528 = vrot.slane %v4456, 2
    %v4529 = vsel %vm3672, %v4528, %v4527
    %v4530 = vrot.slane %v4457, 1
    %v4531 = vsel %vm3675, %v4530, %v4529
    %v4532 = vrot.slane %v4459, 7
    %v4533 = vsel %vm3657, %v4532, %v4458
    %v4534 = vrot.slane %v4460, 6
    %v4535 = vsel %vm3660, %v4534, %v4533
    %v4536 = vrot.slane %v4461, 5
    %v4537 = vsel %vm3663, %v4536, %v4535
    %v4538 = vrot.slane %v4462, 4
    %v4539 = vsel %vm3666, %v4538, %v4537
    %v4540 = vrot.slane %v4463, 3
    %v4541 = vsel %vm3669, %v4540, %v4539
    %v4542 = vrot.slane %v4464, 2
    %v4543 = vsel %vm3672, %v4542, %v4541
    %v4544 = vrot.slane %v4465, 1
    %v4545 = vsel %vm3675, %v4544, %v4543
    %v4546 = vrot.slane %v4467, 7
    %v4547 = vsel %vm3657, %v4546, %v4466
    %v4548 = vrot.slane %v4468, 6
    %v4549 = vsel %vm3660, %v4548, %v4547
    %v4550 = vrot.slane %v4469, 5
    %v4551 = vsel %vm3663, %v4550, %v4549
    %v4552 = vrot.slane %v4470, 4
    %v4553 = vsel %vm3666, %v4552, %v4551
    %v4554 = vrot.slane %v4471, 3
    %v4555 = vsel %vm3669, %v4554, %v4553
    %v4556 = vrot.slane %v4472, 2
    %v4557 = vsel %vm3672, %v4556, %v4555
    %v4558 = vrot.slane %v4473, 1
    %v4559 = vsel %vm3675, %v4558, %v4557
    %v4560 = vrot.slane %v4475, 7
    %v4561 = vsel %vm3657, %v4560, %v4474
    %v4562 = vrot.slane %v4476, 6
    %v4563 = vsel %vm3660, %v4562, %v4561
    %v4564 = vrot.slane %v4477, 5
    %v4565 = vsel %vm3663, %v4564, %v4563
    %v4566 = vrot.slane %v4478, 4
    %v4567 = vsel %vm3666, %v4566, %v4565
    %v4568 = vrot.slane %v4479, 3
    %v4569 = vsel %vm3669, %v4568, %v4567
    %v4570 = vrot.slane %v4480, 2
    %v4571 = vsel %vm3672, %v4570, %v4569
    %v4572 = vrot.slane %v4481, 1
    %v4573 = vsel %vm3675, %v4572, %v4571
    %v4578 = vsel %vm433, %v4531, 0.0
    %4579 = vadd.xlane.f32.xlu0 %v4578
    %v4580 = vpop.xlane.xlu0 %4579
    %v4581 = vsel %vm433, %v4545, 0.0
    %4582 = vadd.xlane.f32.xlu0 %v4581
    %v4583 = vpop.xlane.xlu0 %4582
    %v4584 = vsel %vm433, %v4559, 0.0
    %4585 = vadd.xlane.f32.xlu0 %v4584
    %v4586 = vpop.xlane.xlu0 %4585
    %v4587 = vsel %vm433, %v4573, 0.0
    %4588 = vadd.xlane.f32.xlu0 %v4587
    %v4589 = vpop.xlane.xlu0 %4588
    %v4590 = vmul.f32 %v4580, %v2063
    %v4591 = vmul.f32 %v4583, %v2063
    %v4592 = vmul.f32 %v4586, %v2063
    %v4593 = vmul.f32 %v4589, %v2063
    %v4598 = vrot.slane %v4590, 1
    %v4599 = vrot.slane %v4590, 2
    %v4600 = vrot.slane %v4590, 3
    %v4601 = vrot.slane %v4590, 4
    %v4602 = vrot.slane %v4590, 5
    %v4603 = vrot.slane %v4590, 6
    %v4604 = vrot.slane %v4590, 7
    %v4605 = vrot.slane %v4591, 1
    %v4606 = vrot.slane %v4591, 2
    %v4607 = vrot.slane %v4591, 3
    %v4608 = vrot.slane %v4591, 4
    %v4609 = vrot.slane %v4591, 5
    %v4610 = vrot.slane %v4591, 6
    %v4611 = vrot.slane %v4591, 7
    %v4612 = vrot.slane %v4592, 1
    %v4613 = vrot.slane %v4592, 2
    %v4614 = vrot.slane %v4592, 3
    %v4615 = vrot.slane %v4592, 4
    %v4616 = vrot.slane %v4592, 5
    %v4617 = vrot.slane %v4592, 6
    %v4618 = vrot.slane %v4592, 7
    %v4619 = vrot.slane %v4593, 1
    %v4620 = vrot.slane %v4593, 2
    %v4621 = vrot.slane %v4593, 3
    %v4622 = vrot.slane %v4593, 4
    %v4623 = vrot.slane %v4593, 5
    %v4624 = vrot.slane %v4593, 6
    %v4625 = vrot.slane %v4593, 7
    %v4658 = vsub.f32 %v4450, %v4590
    %v4659 = vsub.f32 %v4451, %v4598
    %v4660 = vsub.f32 %v4452, %v4599
    %v4661 = vsub.f32 %v4453, %v4600
    %v4662 = vsub.f32 %v4454, %v4601
    %v4663 = vsub.f32 %v4455, %v4602
    %v4664 = vsub.f32 %v4456, %v4603
    %v4665 = vsub.f32 %v4457, %v4604
    %v4666 = vsub.f32 %v4458, %v4591
    %v4667 = vsub.f32 %v4459, %v4605
    %v4668 = vsub.f32 %v4460, %v4606
    %v4669 = vsub.f32 %v4461, %v4607
    %v4670 = vsub.f32 %v4462, %v4608
    %v4671 = vsub.f32 %v4463, %v4609
    %v4672 = vsub.f32 %v4464, %v4610
    %v4673 = vsub.f32 %v4465, %v4611
    %v4674 = vsub.f32 %v4466, %v4592
    %v4675 = vsub.f32 %v4467, %v4612
    %v4676 = vsub.f32 %v4468, %v4613
    %v4677 = vsub.f32 %v4469, %v4614
    %v4678 = vsub.f32 %v4470, %v4615
    %v4679 = vsub.f32 %v4471, %v4616
    %v4680 = vsub.f32 %v4472, %v4617
    %v4681 = vsub.f32 %v4473, %v4618
    %v4682 = vsub.f32 %v4474, %v4593
    %v4683 = vsub.f32 %v4475, %v4619
    %v4684 = vsub.f32 %v4476, %v4620
    %v4685 = vsub.f32 %v4477, %v4621
    %v4686 = vsub.f32 %v4478, %v4622
    %v4687 = vsub.f32 %v4479, %v4623
    %v4688 = vsub.f32 %v4480, %v4624
    %v4689 = vsub.f32 %v4481, %v4625
    %v4690 = vmul.f32 %v4658, %v4658
    %v4691 = vmul.f32 %v4659, %v4659
    %v4692 = vmul.f32 %v4660, %v4660
    %v4693 = vmul.f32 %v4661, %v4661
    %v4694 = vmul.f32 %v4662, %v4662
    %v4695 = vmul.f32 %v4663, %v4663
    %v4696 = vmul.f32 %v4664, %v4664
    %v4697 = vmul.f32 %v4665, %v4665
    %v4698 = vmul.f32 %v4666, %v4666
    %v4699 = vmul.f32 %v4667, %v4667
    %v4700 = vmul.f32 %v4668, %v4668
    %v4701 = vmul.f32 %v4669, %v4669
    %v4702 = vmul.f32 %v4670, %v4670
    %v4703 = vmul.f32 %v4671, %v4671
    %v4704 = vmul.f32 %v4672, %v4672
    %v4705 = vmul.f32 %v4673, %v4673
    %v4706 = vmul.f32 %v4674, %v4674
    %v4707 = vmul.f32 %v4675, %v4675
    %v4708 = vmul.f32 %v4676, %v4676
    %v4709 = vmul.f32 %v4677, %v4677
    %v4710 = vmul.f32 %v4678, %v4678
    %v4711 = vmul.f32 %v4679, %v4679
    %v4712 = vmul.f32 %v4680, %v4680
    %v4713 = vmul.f32 %v4681, %v4681
    %v4714 = vmul.f32 %v4682, %v4682
    %v4715 = vmul.f32 %v4683, %v4683
    %v4716 = vmul.f32 %v4684, %v4684
    %v4717 = vmul.f32 %v4685, %v4685
    %v4718 = vmul.f32 %v4686, %v4686
    %v4719 = vmul.f32 %v4687, %v4687
    %v4720 = vmul.f32 %v4688, %v4688
    %v4721 = vmul.f32 %v4689, %v4689
    %v4754 = vrot.slane %v4691, 7
    %v4755 = vsel %vm3657, %v4754, %v4690
    %v4756 = vrot.slane %v4692, 6
    %v4757 = vsel %vm3660, %v4756, %v4755
    %v4758 = vrot.slane %v4693, 5
    %v4759 = vsel %vm3663, %v4758, %v4757
    %v4760 = vrot.slane %v4694, 4
    %v4761 = vsel %vm3666, %v4760, %v4759
    %v4762 = vrot.slane %v4695, 3
    %v4763 = vsel %vm3669, %v4762, %v4761
    %v4764 = vrot.slane %v4696, 2
    %v4765 = vsel %vm3672, %v4764, %v4763
    %v4766 = vrot.slane %v4697, 1
    %v4767 = vsel %vm3675, %v4766, %v4765
    %v4768 = vrot.slane %v4699, 7
    %v4769 = vsel %vm3657, %v4768, %v4698
    %v4770 = vrot.slane %v4700, 6
    %v4771 = vsel %vm3660, %v4770, %v4769
    %v4772 = vrot.slane %v4701, 5
    %v4773 = vsel %vm3663, %v4772, %v4771
    %v4774 = vrot.slane %v4702, 4
    %v4775 = vsel %vm3666, %v4774, %v4773
    %v4776 = vrot.slane %v4703, 3
    %v4777 = vsel %vm3669, %v4776, %v4775
    %v4778 = vrot.slane %v4704, 2
    %v4779 = vsel %vm3672, %v4778, %v4777
    %v4780 = vrot.slane %v4705, 1
    %v4781 = vsel %vm3675, %v4780, %v4779
    %v4782 = vrot.slane %v4707, 7
    %v4783 = vsel %vm3657, %v4782, %v4706
    %v4784 = vrot.slane %v4708, 6
    %v4785 = vsel %vm3660, %v4784, %v4783
    %v4786 = vrot.slane %v4709, 5
    %v4787 = vsel %vm3663, %v4786, %v4785
    %v4788 = vrot.slane %v4710, 4
    %v4789 = vsel %vm3666, %v4788, %v4787
    %v4790 = vrot.slane %v4711, 3
    %v4791 = vsel %vm3669, %v4790, %v4789
    %v4792 = vrot.slane %v4712, 2
    %v4793 = vsel %vm3672, %v4792, %v4791
    %v4794 = vrot.slane %v4713, 1
    %v4795 = vsel %vm3675, %v4794, %v4793
    %v4796 = vrot.slane %v4715, 7
    %v4797 = vsel %vm3657, %v4796, %v4714
    %v4798 = vrot.slane %v4716, 6
    %v4799 = vsel %vm3660, %v4798, %v4797
    %v4800 = vrot.slane %v4717, 5
    %v4801 = vsel %vm3663, %v4800, %v4799
    %v4802 = vrot.slane %v4718, 4
    %v4803 = vsel %vm3666, %v4802, %v4801
    %v4804 = vrot.slane %v4719, 3
    %v4805 = vsel %vm3669, %v4804, %v4803
    %v4806 = vrot.slane %v4720, 2
    %v4807 = vsel %vm3672, %v4806, %v4805
    %v4808 = vrot.slane %v4721, 1
    %v4809 = vsel %vm3675, %v4808, %v4807
    %v4814 = vsel %vm433, %v4767, 0.0
    %4815 = vadd.xlane.f32.xlu0 %v4814
    %v4816 = vpop.xlane.xlu0 %4815
    %v4817 = vsel %vm433, %v4781, 0.0
    %4818 = vadd.xlane.f32.xlu0 %v4817
    %v4819 = vpop.xlane.xlu0 %4818
    %v4820 = vsel %vm433, %v4795, 0.0
    %4821 = vadd.xlane.f32.xlu0 %v4820
    %v4822 = vpop.xlane.xlu0 %4821
    %v4823 = vsel %vm433, %v4809, 0.0
    %4824 = vadd.xlane.f32.xlu0 %v4823
    %v4825 = vpop.xlane.xlu0 %4824
    %v4826 = vmul.f32 %v4816, %v2063
    %v4827 = vmul.f32 %v4819, %v2063
    %v4828 = vmul.f32 %v4822, %v2063
    %v4829 = vmul.f32 %v4825, %v2063
    %v4830 = vadd.f32 %v4826, 1e-05
    %v4831 = vadd.f32 %v4827, 1e-05
    %v4832 = vadd.f32 %v4828, 1e-05
    %v4833 = vadd.f32 %v4829, 1e-05
    %v4834 = vrsqrt.pop %v4830
    %v4835 = vrsqrt.pop %v4831
    %v4836 = vrsqrt.pop %v4832
    %v4837 = vrsqrt.pop %v4833
    %v4842 = vrot.slane %v4834, 1
    %v4843 = vrot.slane %v4834, 2
    %v4844 = vrot.slane %v4834, 3
    %v4845 = vrot.slane %v4834, 4
    %v4846 = vrot.slane %v4834, 5
    %v4847 = vrot.slane %v4834, 6
    %v4848 = vrot.slane %v4834, 7
    %v4849 = vrot.slane %v4835, 1
    %v4850 = vrot.slane %v4835, 2
    %v4851 = vrot.slane %v4835, 3
    %v4852 = vrot.slane %v4835, 4
    %v4853 = vrot.slane %v4835, 5
    %v4854 = vrot.slane %v4835, 6
    %v4855 = vrot.slane %v4835, 7
    %v4856 = vrot.slane %v4836, 1
    %v4857 = vrot.slane %v4836, 2
    %v4858 = vrot.slane %v4836, 3
    %v4859 = vrot.slane %v4836, 4
    %v4860 = vrot.slane %v4836, 5
    %v4861 = vrot.slane %v4836, 6
    %v4862 = vrot.slane %v4836, 7
    %v4863 = vrot.slane %v4837, 1
    %v4864 = vrot.slane %v4837, 2
    %v4865 = vrot.slane %v4837, 3
    %v4866 = vrot.slane %v4837, 4
    %v4867 = vrot.slane %v4837, 5
    %v4868 = vrot.slane %v4837, 6
    %v4869 = vrot.slane %v4837, 7
    %v4902 = vmul.f32 %v4658, %v4834
    %v4903 = vmul.f32 %v4659, %v4842
    %v4904 = vmul.f32 %v4660, %v4843
    %v4905 = vmul.f32 %v4661, %v4844
    %v4906 = vmul.f32 %v4662, %v4845
    %v4907 = vmul.f32 %v4663, %v4846
    %v4908 = vmul.f32 %v4664, %v4847
    %v4909 = vmul.f32 %v4665, %v4848
    %v4910 = vmul.f32 %v4666, %v4835
    %v4911 = vmul.f32 %v4667, %v4849
    %v4912 = vmul.f32 %v4668, %v4850
    %v4913 = vmul.f32 %v4669, %v4851
    %v4914 = vmul.f32 %v4670, %v4852
    %v4915 = vmul.f32 %v4671, %v4853
    %v4916 = vmul.f32 %v4672, %v4854
    %v4917 = vmul.f32 %v4673, %v4855
    %v4918 = vmul.f32 %v4674, %v4836
    %v4919 = vmul.f32 %v4675, %v4856
    %v4920 = vmul.f32 %v4676, %v4857
    %v4921 = vmul.f32 %v4677, %v4858
    %v4922 = vmul.f32 %v4678, %v4859
    %v4923 = vmul.f32 %v4679, %v4860
    %v4924 = vmul.f32 %v4680, %v4861
    %v4925 = vmul.f32 %v4681, %v4862
    %v4926 = vmul.f32 %v4682, %v4837
    %v4927 = vmul.f32 %v4683, %v4863
    %v4928 = vmul.f32 %v4684, %v4864
    %v4929 = vmul.f32 %v4685, %v4865
    %v4930 = vmul.f32 %v4686, %v4866
    %v4931 = vmul.f32 %v4687, %v4867
    %v4932 = vmul.f32 %v4688, %v4868
    %v4933 = vmul.f32 %v4689, %v4869
    %v4935 = vlaneseq
    %v4936 = vshrl.u32 %v4935, 7
    %v4937 = vsub.s32 0, %v4936
    %v4938 = vrot.slane %v4483, %v4937
    %v4940 = vmul.f32 %v4902, %v4938
    %v4941 = vmul.f32 %v4903, %v4938
    %v4942 = vmul.f32 %v4904, %v4938
    %v4943 = vmul.f32 %v4905, %v4938
    %v4944 = vmul.f32 %v4906, %v4938
    %v4945 = vmul.f32 %v4907, %v4938
    %v4946 = vmul.f32 %v4908, %v4938
    %v4947 = vmul.f32 %v4909, %v4938
    %v4948 = vmul.f32 %v4910, %v4938
    %v4949 = vmul.f32 %v4911, %v4938
    %v4950 = vmul.f32 %v4912, %v4938
    %v4951 = vmul.f32 %v4913, %v4938
    %v4952 = vmul.f32 %v4914, %v4938
    %v4953 = vmul.f32 %v4915, %v4938
    %v4954 = vmul.f32 %v4916, %v4938
    %v4955 = vmul.f32 %v4917, %v4938
    %v4956 = vmul.f32 %v4918, %v4938
    %v4957 = vmul.f32 %v4919, %v4938
    %v4958 = vmul.f32 %v4920, %v4938
    %v4959 = vmul.f32 %v4921, %v4938
    %v4960 = vmul.f32 %v4922, %v4938
    %v4961 = vmul.f32 %v4923, %v4938
    %v4962 = vmul.f32 %v4924, %v4938
    %v4963 = vmul.f32 %v4925, %v4938
    %v4964 = vmul.f32 %v4926, %v4938
    %v4965 = vmul.f32 %v4927, %v4938
    %v4966 = vmul.f32 %v4928, %v4938
    %v4967 = vmul.f32 %v4929, %v4938
    %v4968 = vmul.f32 %v4930, %v4938
    %v4969 = vmul.f32 %v4931, %v4938
    %v4970 = vmul.f32 %v4932, %v4938
    %v4971 = vmul.f32 %v4933, %v4938
    %v4973 = vlaneseq
    %v4974 = vshrl.u32 %v4973, 7
    %v4975 = vsub.s32 0, %v4974
    %v4976 = vrot.slane %v4485, %v4975
    %v4978 = vadd.f32 %v4940, %v4976
    %v4979 = vadd.f32 %v4941, %v4976
    %v4980 = vadd.f32 %v4942, %v4976
    %v4981 = vadd.f32 %v4943, %v4976
    %v4982 = vadd.f32 %v4944, %v4976
    %v4983 = vadd.f32 %v4945, %v4976
    %v4984 = vadd.f32 %v4946, %v4976
    %v4985 = vadd.f32 %v4947, %v4976
    %v4986 = vadd.f32 %v4948, %v4976
    %v4987 = vadd.f32 %v4949, %v4976
    %v4988 = vadd.f32 %v4950, %v4976
    %v4989 = vadd.f32 %v4951, %v4976
    %v4990 = vadd.f32 %v4952, %v4976
    %v4991 = vadd.f32 %v4953, %v4976
    %v4992 = vadd.f32 %v4954, %v4976
    %v4993 = vadd.f32 %v4955, %v4976
    %v4994 = vadd.f32 %v4956, %v4976
    %v4995 = vadd.f32 %v4957, %v4976
    %v4996 = vadd.f32 %v4958, %v4976
    %v4997 = vadd.f32 %v4959, %v4976
    %v4998 = vadd.f32 %v4960, %v4976
    %v4999 = vadd.f32 %v4961, %v4976
    %v5000 = vadd.f32 %v4962, %v4976
    %v5001 = vadd.f32 %v4963, %v4976
    %v5002 = vadd.f32 %v4964, %v4976
    %v5003 = vadd.f32 %v4965, %v4976
    %v5004 = vadd.f32 %v4966, %v4976
    %v5005 = vadd.f32 %v4967, %v4976
    %v5006 = vadd.f32 %v4968, %v4976
    %v5007 = vadd.f32 %v4969, %v4976
    %v5008 = vadd.f32 %v4970, %v4976
    %v5009 = vadd.f32 %v4971, %v4976
    %v5010 = vpack.c.bf16 %v4978, %v4978
    %v5011 = vpack.c.bf16 %v4979, %v4979
    %v5012 = vpack.c.bf16 %v4980, %v4980
    %v5013 = vpack.c.bf16 %v4981, %v4981
    %v5014 = vpack.c.bf16 %v4982, %v4982
    %v5015 = vpack.c.bf16 %v4983, %v4983
    %v5016 = vpack.c.bf16 %v4984, %v4984
    %v5017 = vpack.c.bf16 %v4985, %v4985
    %v5018 = vpack.c.bf16 %v4986, %v4986
    %v5019 = vpack.c.bf16 %v4987, %v4987
    %v5020 = vpack.c.bf16 %v4988, %v4988
    %v5021 = vpack.c.bf16 %v4989, %v4989
    %v5022 = vpack.c.bf16 %v4990, %v4990
    %v5023 = vpack.c.bf16 %v4991, %v4991
    %v5024 = vpack.c.bf16 %v4992, %v4992
    %v5025 = vpack.c.bf16 %v4993, %v4993
    %v5026 = vpack.c.bf16 %v4994, %v4994
    %v5027 = vpack.c.bf16 %v4995, %v4995
    %v5028 = vpack.c.bf16 %v4996, %v4996
    %v5029 = vpack.c.bf16 %v4997, %v4997
    %v5030 = vpack.c.bf16 %v4998, %v4998
    %v5031 = vpack.c.bf16 %v4999, %v4999
    %v5032 = vpack.c.bf16 %v5000, %v5000
    %v5033 = vpack.c.bf16 %v5001, %v5001
    %v5034 = vpack.c.bf16 %v5002, %v5002
    %v5035 = vpack.c.bf16 %v5003, %v5003
    %v5036 = vpack.c.bf16 %v5004, %v5004
    %v5037 = vpack.c.bf16 %v5005, %v5005
    %v5038 = vpack.c.bf16 %v5006, %v5006
    %v5039 = vpack.c.bf16 %v5007, %v5007
    %v5040 = vpack.c.bf16 %v5008, %v5008
    %v5041 = vpack.c.bf16 %v5009, %v5009
    %s5042 = scalar_lea.vmem [#allocation10], 16
    %v5043 = vld [vmem:[%s5042] sm:$0xf]
    %v5044 = vld [vmem:[%s5042 + $0x4] sm:$0xf]
    %v5045 = vld [vmem:[%s5042 + $0x8] sm:$0xf]
    %v5046 = vld [vmem:[%s5042 + $0xc] sm:$0xf]
    %s5047 = scalar_lea.vmem [#allocation11], 1
    %v5048 = vld [vmem:[%s5047] sm:$0x1]
    %v5050 = vlaneseq
    %v5051 = vshrl.u32 %v5050, 7
    %v5052 = vsub.s32 0, %v5051
    %v5053 = vrot.slane %v5048, %v5052
    %v5087 = vunpack.c.l.b16 %v5010
    %v5088 = vunpack.c.l.b16 %v5011
    %v5089 = vunpack.c.l.b16 %v5012
    %v5090 = vunpack.c.l.b16 %v5013
    %v5091 = vunpack.c.l.b16 %v5014
    %v5092 = vunpack.c.l.b16 %v5015
    %v5093 = vunpack.c.l.b16 %v5016
    %v5094 = vunpack.c.l.b16 %v5017
    %v5095 = vunpack.c.l.b16 %v5018
    %v5096 = vunpack.c.l.b16 %v5019
    %v5097 = vunpack.c.l.b16 %v5020
    %v5098 = vunpack.c.l.b16 %v5021
    %v5099 = vunpack.c.l.b16 %v5022
    %v5100 = vunpack.c.l.b16 %v5023
    %v5101 = vunpack.c.l.b16 %v5024
    %v5102 = vunpack.c.l.b16 %v5025
    %v5103 = vunpack.c.l.b16 %v5026
    %v5104 = vunpack.c.l.b16 %v5027
    %v5105 = vunpack.c.l.b16 %v5028
    %v5106 = vunpack.c.l.b16 %v5029
    %v5107 = vunpack.c.l.b16 %v5030
    %v5108 = vunpack.c.l.b16 %v5031
    %v5109 = vunpack.c.l.b16 %v5032
    %v5110 = vunpack.c.l.b16 %v5033
    %v5111 = vunpack.c.l.b16 %v5034
    %v5112 = vunpack.c.l.b16 %v5035
    %v5113 = vunpack.c.l.b16 %v5036
    %v5114 = vunpack.c.l.b16 %v5037
    %v5115 = vunpack.c.l.b16 %v5038
    %v5116 = vunpack.c.l.b16 %v5039
    %v5117 = vunpack.c.l.b16 %v5040
    %v5118 = vunpack.c.l.b16 %v5041
    %v5119 = vrot.slane %v5088, 7
    %v5120 = vsel %vm3657, %v5119, %v5087
    %v5121 = vrot.slane %v5089, 6
    %v5122 = vsel %vm3660, %v5121, %v5120
    %v5123 = vrot.slane %v5090, 5
    %v5124 = vsel %vm3663, %v5123, %v5122
    %v5125 = vrot.slane %v5091, 4
    %v5126 = vsel %vm3666, %v5125, %v5124
    %v5127 = vrot.slane %v5092, 3
    %v5128 = vsel %vm3669, %v5127, %v5126
    %v5129 = vrot.slane %v5093, 2
    %v5130 = vsel %vm3672, %v5129, %v5128
    %v5131 = vrot.slane %v5094, 1
    %v5132 = vsel %vm3675, %v5131, %v5130
    %v5133 = vrot.slane %v5096, 7
    %v5134 = vsel %vm3657, %v5133, %v5095
    %v5135 = vrot.slane %v5097, 6
    %v5136 = vsel %vm3660, %v5135, %v5134
    %v5137 = vrot.slane %v5098, 5
    %v5138 = vsel %vm3663, %v5137, %v5136
    %v5139 = vrot.slane %v5099, 4
    %v5140 = vsel %vm3666, %v5139, %v5138
    %v5141 = vrot.slane %v5100, 3
    %v5142 = vsel %vm3669, %v5141, %v5140
    %v5143 = vrot.slane %v5101, 2
    %v5144 = vsel %vm3672, %v5143, %v5142
    %v5145 = vrot.slane %v5102, 1
    %v5146 = vsel %vm3675, %v5145, %v5144
    %v5147 = vrot.slane %v5104, 7
    %v5148 = vsel %vm3657, %v5147, %v5103
    %v5149 = vrot.slane %v5105, 6
    %v5150 = vsel %vm3660, %v5149, %v5148
    %v5151 = vrot.slane %v5106, 5
    %v5152 = vsel %vm3663, %v5151, %v5150
    %v5153 = vrot.slane %v5107, 4
    %v5154 = vsel %vm3666, %v5153, %v5152
    %v5155 = vrot.slane %v5108, 3
    %v5156 = vsel %vm3669, %v5155, %v5154
    %v5157 = vrot.slane %v5109, 2
    %v5158 = vsel %vm3672, %v5157, %v5156
    %v5159 = vrot.slane %v5110, 1
    %v5160 = vsel %vm3675, %v5159, %v5158
    %v5161 = vrot.slane %v5112, 7
    %v5162 = vsel %vm3657, %v5161, %v5111
    %v5163 = vrot.slane %v5113, 6
    %v5164 = vsel %vm3660, %v5163, %v5162
    %v5165 = vrot.slane %v5114, 5
    %v5166 = vsel %vm3663, %v5165, %v5164
    %v5167 = vrot.slane %v5115, 4
    %v5168 = vsel %vm3666, %v5167, %v5166
    %v5169 = vrot.slane %v5116, 3
    %v5170 = vsel %vm3669, %v5169, %v5168
    %v5171 = vrot.slane %v5117, 2
    %v5172 = vsel %vm3672, %v5171, %v5170
    %v5173 = vrot.slane %v5118, 1
    %v5174 = vsel %vm3675, %v5173, %v5172
    %v5175 = vpack.c.b16 %v5146, %v5132
    %v5176 = vpack.c.b16 %v5174, %v5160
    %v5181 = vunpack.c.l.b16 %v5043
    %v5182 = vunpack.c.l.b16 %v5044
    %v5183 = vunpack.c.l.b16 %v5045
    %v5184 = vunpack.c.l.b16 %v5046
    %v5185 = vpack.c.b16 %v5182, %v5181
    %v5186 = vpack.c.b16 %v5184, %v5183
    %v5190 = vsel %vm433, %v5175, 0
    %v5193 = vsel %vm433, %v5176, 0
    %5195 = vmatprep.subr.bf16.mxu0 0
    %5196 = vmatpush1.bf16.msra.mxu0 %v5185
    %5197 = vmatprep.subr.bf16.mxu0 0
    %5198 = vmatpush1.bf16.msra.mxu0 %v5186
    %5199 = vmatprep.subr.bf16.mxu0 0
    %5200 = vmatpush1.bf16.msra.mxu0 0
    %5201 = vmatprep.subr.bf16.mxu0 0
    %5202 = vmatpush1.bf16.msra.mxu0 0
    %5203 = vmatprep.subr.bf16.mxu0 0
    %5204 = vmatpush1.bf16.msra.mxu0 0
    %5205 = vmatprep.subr.bf16.mxu0 0
    %5206 = vmatpush1.bf16.msra.mxu0 0
    %5207 = vmatprep.subr.bf16.mxu0 0
    %5208 = vmatpush1.bf16.msra.mxu0 0
    %5209 = vmatprep.subr.bf16.mxu0 0
    %5210 = vmatpush1.bf16.msra.mxu0 0
    %5211 = vmatprep.subr.bf16.mxu0 0
    %5212 = vmatpush1.bf16.msra.mxu0 0
    %5213 = vmatprep.subr.bf16.mxu0 0
    %5214 = vmatpush1.bf16.msra.mxu0 0
    %5215 = vmatprep.subr.bf16.mxu0 0
    %5216 = vmatpush1.bf16.msra.mxu0 0
    %5217 = vmatprep.subr.bf16.mxu0 0
    %5218 = vmatpush1.bf16.msra.mxu0 0
    %5219 = vmatprep.subr.bf16.mxu0 0
    %5220 = vmatpush1.bf16.msra.mxu0 0
    %5221 = vmatprep.subr.bf16.mxu0 0
    %5222 = vmatpush1.bf16.msra.mxu0 0
    %5223 = vmatprep.subr.bf16.mxu0 0
    %5224 = vmatpush1.bf16.msra.mxu0 0
    %5225 = vmatprep.subr.bf16.mxu0 0
    %5226 = vmatpush1.bf16.msra.mxu0 0
    %5227 = vmatprep.mubr.bf16.mxu0 0
    %5228 = vmatmul.mubr.bf16.gmra.mrb[0].mxu0 %v5190
    %v5229 = vpop.f32.mrb[0].mxu0
    %v5230 = vadd.f32 %v5053, %v5229
    %v5231 = vpop.f32.mrb[0].mxu0
    %v5232 = vpop.f32.mrb[0].mxu0
    %v5233 = vadd.f32 %v5053, %v5232
    %v5234 = vpop.f32.mrb[0].mxu0
    %5235 = vmatprep.mubr.bf16.mxu0 0
    %5236 = vmatmul.mubr.bf16.gmra.mrb[0].mxu0 %v5193
    %v5237 = vpop.f32.mrb[0].mxu0
    %v5238 = vadd.f32 %v5053, %v5237
    %v5239 = vpop.f32.mrb[0].mxu0
    %v5240 = vpop.f32.mrb[0].mxu0
    %v5241 = vadd.f32 %v5053, %v5240
    %v5242 = vpop.f32.mrb[0].mxu0
    %5243 = vdwg.mxu0
    %v5244 = vmax.f32 %v5230, 0.0
    %v5245 = vmax.f32 %v5233, 0.0
    %v5246 = vmax.f32 %v5238, 0.0
    %v5247 = vmax.f32 %v5241, 0.0
    %v5248 = vpack.c.bf16 %v5245, %v5244
    %v5249 = vpack.c.bf16 %v5247, %v5246
    %s5250 = scalar_lea.vmem %s11, 32
    %v5251 = vld [vmem:[%s5250] sm:$0xf]
    %v5252 = vld [vmem:[%s5250 + $0x4] sm:$0xf]
    %v5253 = vld [vmem:[%s5250 + $0x8] sm:$0xf]
    %v5254 = vld [vmem:[%s5250 + $0xc] sm:$0xf]
    %v5255 = vld [vmem:[%s5250 + $0x10] sm:$0xf]
    %v5256 = vld [vmem:[%s5250 + $0x14] sm:$0xf]
    %v5257 = vld [vmem:[%s5250 + $0x18] sm:$0xf]
    %v5258 = vld [vmem:[%s5250 + $0x1c] sm:$0xf]
    %s5259 = scalar_lea.vmem %s12, 1
    %v5260 = vld [vmem:[%s5259] sm:$0x1]
    %v5262 = vlaneseq
    %v5263 = vshrl.u32 %v5262, 7
    %v5264 = vsub.s32 0, %v5263
    %v5265 = vrot.slane %v5260, %v5264
    %v5275 = vunpack.c.l.b16 %v5251
    %v5276 = vunpack.c.l.b16 %v5252
    %v5277 = vunpack.c.l.b16 %v5253
    %v5278 = vunpack.c.l.b16 %v5254
    %v5279 = vunpack.c.l.b16 %v5255
    %v5280 = vunpack.c.l.b16 %v5256
    %v5281 = vunpack.c.l.b16 %v5257
    %v5282 = vunpack.c.l.b16 %v5258
    %v5283 = vpack.c.b16 %v5276, %v5275
    %v5284 = vpack.c.b16 %v5278, %v5277
    %v5285 = vpack.c.b16 %v5280, %v5279
    %v5286 = vpack.c.b16 %v5282, %v5281
    %v5292 = vsel %vm2795, %v5248, 0
    %v5295 = vsel %vm2795, %v5249, 0
    %5297 = vmatprep.subr.bf16.mxu0 0
    %5298 = vmatpush1.bf16.msra.mxu0 %v5283
    %5299 = vmatprep.subr.bf16.mxu0 0
    %5300 = vmatpush1.bf16.msra.mxu0 %v5284
    %5301 = vmatprep.subr.bf16.mxu0 0
    %5302 = vmatpush1.bf16.msra.mxu0 %v5285
    %5303 = vmatprep.subr.bf16.mxu0 0
    %5304 = vmatpush1.bf16.msra.mxu0 %v5286
    %5305 = vmatprep.subr.bf16.mxu0 0
    %5306 = vmatpush1.bf16.msra.mxu0 0
    %5307 = vmatprep.subr.bf16.mxu0 0
    %5308 = vmatpush1.bf16.msra.mxu0 0
    %5309 = vmatprep.subr.bf16.mxu0 0
    %5310 = vmatpush1.bf16.msra.mxu0 0
    %5311 = vmatprep.subr.bf16.mxu0 0
    %5312 = vmatpush1.bf16.msra.mxu0 0
    %5313 = vmatprep.subr.bf16.mxu0 0
    %5314 = vmatpush1.bf16.msra.mxu0 0
    %5315 = vmatprep.subr.bf16.mxu0 0
    %5316 = vmatpush1.bf16.msra.mxu0 0
    %5317 = vmatprep.subr.bf16.mxu0 0
    %5318 = vmatpush1.bf16.msra.mxu0 0
    %5319 = vmatprep.subr.bf16.mxu0 0
    %5320 = vmatpush1.bf16.msra.mxu0 0
    %5321 = vmatprep.subr.bf16.mxu0 0
    %5322 = vmatpush1.bf16.msra.mxu0 0
    %5323 = vmatprep.subr.bf16.mxu0 0
    %5324 = vmatpush1.bf16.msra.mxu0 0
    %5325 = vmatprep.subr.bf16.mxu0 0
    %5326 = vmatpush1.bf16.msra.mxu0 0
    %5327 = vmatprep.subr.bf16.mxu0 0
    %5328 = vmatpush1.bf16.msra.mxu0 0
    %5329 = vmatprep.mubr.bf16.mxu0 0
    %5330 = vmatmul.mubr.bf16.gmra.mrb[0].mxu0 %v5292
    %v5331 = vpop.f32.mrb[0].mxu0
    %v5332 = vadd.f32 %v5265, %v5331
    %v5333 = vpop.f32.mrb[0].mxu0
    %v5334 = vpop.f32.mrb[0].mxu0
    %v5335 = vadd.f32 %v5265, %v5334
    %v5336 = vpop.f32.mrb[0].mxu0
    %5337 = vmatprep.mubr.bf16.mxu0 0
    %5338 = vmatmul.mubr.bf16.gmra.mrb[0].mxu0 %v5295
    %v5339 = vpop.f32.mrb[0].mxu0
    %v5340 = vadd.f32 %v5265, %v5339
    %v5341 = vpop.f32.mrb[0].mxu0
    %v5342 = vpop.f32.mrb[0].mxu0
    %v5343 = vadd.f32 %v5265, %v5342
    %v5344 = vpop.f32.mrb[0].mxu0
    %5345 = vdwg.mxu0
    %v5350 = vrot.slane %v5332, 1
    %v5351 = vrot.slane %v5332, 2
    %v5352 = vrot.slane %v5332, 3
    %v5353 = vrot.slane %v5332, 4
    %v5354 = vrot.slane %v5332, 5
    %v5355 = vrot.slane %v5332, 6
    %v5356 = vrot.slane %v5332, 7
    %v5357 = vrot.slane %v5335, 1
    %v5358 = vrot.slane %v5335, 2
    %v5359 = vrot.slane %v5335, 3
    %v5360 = vrot.slane %v5335, 4
    %v5361 = vrot.slane %v5335, 5
    %v5362 = vrot.slane %v5335, 6
    %v5363 = vrot.slane %v5335, 7
    %v5364 = vrot.slane %v5340, 1
    %v5365 = vrot.slane %v5340, 2
    %v5366 = vrot.slane %v5340, 3
    %v5367 = vrot.slane %v5340, 4
    %v5368 = vrot.slane %v5340, 5
    %v5369 = vrot.slane %v5340, 6
    %v5370 = vrot.slane %v5340, 7
    %v5371 = vrot.slane %v5343, 1
    %v5372 = vrot.slane %v5343, 2
    %v5373 = vrot.slane %v5343, 3
    %v5374 = vrot.slane %v5343, 4
    %v5375 = vrot.slane %v5343, 5
    %v5376 = vrot.slane %v5343, 6
    %v5377 = vrot.slane %v5343, 7
    %v5410 = vadd.f32 %v4978, %v5332
    %v5411 = vadd.f32 %v4979, %v5350
    %v5412 = vadd.f32 %v4980, %v5351
    %v5413 = vadd.f32 %v4981, %v5352
    %v5414 = vadd.f32 %v4982, %v5353
    %v5415 = vadd.f32 %v4983, %v5354
    %v5416 = vadd.f32 %v4984, %v5355
    %v5417 = vadd.f32 %v4985, %v5356
    %v5418 = vadd.f32 %v4986, %v5335
    %v5419 = vadd.f32 %v4987, %v5357
    %v5420 = vadd.f32 %v4988, %v5358
    %v5421 = vadd.f32 %v4989, %v5359
    %v5422 = vadd.f32 %v4990, %v5360
    %v5423 = vadd.f32 %v4991, %v5361
    %v5424 = vadd.f32 %v4992, %v5362
    %v5425 = vadd.f32 %v4993, %v5363
    %v5426 = vadd.f32 %v4994, %v5340
    %v5427 = vadd.f32 %v4995, %v5364
    %v5428 = vadd.f32 %v4996, %v5365
    %v5429 = vadd.f32 %v4997, %v5366
    %v5430 = vadd.f32 %v4998, %v5367
    %v5431 = vadd.f32 %v4999, %v5368
    %v5432 = vadd.f32 %v5000, %v5369
    %v5433 = vadd.f32 %v5001, %v5370
    %v5434 = vadd.f32 %v5002, %v5343
    %v5435 = vadd.f32 %v5003, %v5371
    %v5436 = vadd.f32 %v5004, %v5372
    %v5437 = vadd.f32 %v5005, %v5373
    %v5438 = vadd.f32 %v5006, %v5374
    %v5439 = vadd.f32 %v5007, %v5375
    %v5440 = vadd.f32 %v5008, %v5376
    %v5441 = vadd.f32 %v5009, %v5377
    %s5442 = scalar_lea.vmem %s15, 1
    %v5443 = vld [vmem:[%s5442] sm:$0x1]
    %s5444 = scalar_lea.vmem %s16, 1
    %v5445 = vld [vmem:[%s5444] sm:$0x1]
    %v5478 = vrot.slane %v5411, 7
    %v5479 = vsel %vm3657, %v5478, %v5410
    %v5480 = vrot.slane %v5412, 6
    %v5481 = vsel %vm3660, %v5480, %v5479
    %v5482 = vrot.slane %v5413, 5
    %v5483 = vsel %vm3663, %v5482, %v5481
    %v5484 = vrot.slane %v5414, 4
    %v5485 = vsel %vm3666, %v5484, %v5483
    %v5486 = vrot.slane %v5415, 3
    %v5487 = vsel %vm3669, %v5486, %v5485
    %v5488 = vrot.slane %v5416, 2
    %v5489 = vsel %vm3672, %v5488, %v5487
    %v5490 = vrot.slane %v5417, 1
    %v5491 = vsel %vm3675, %v5490, %v5489
    %v5492 = vrot.slane %v5419, 7
    %v5493 = vsel %vm3657, %v5492, %v5418
    %v5494 = vrot.slane %v5420, 6
    %v5495 = vsel %vm3660, %v5494, %v5493
    %v5496 = vrot.slane %v5421, 5
    %v5497 = vsel %vm3663, %v5496, %v5495
    %v5498 = vrot.slane %v5422, 4
    %v5499 = vsel %vm3666, %v5498, %v5497
    %v5500 = vrot.slane %v5423, 3
    %v5501 = vsel %vm3669, %v5500, %v5499
    %v5502 = vrot.slane %v5424, 2
    %v5503 = vsel %vm3672, %v5502, %v5501
    %v5504 = vrot.slane %v5425, 1
    %v5505 = vsel %vm3675, %v5504, %v5503
    %v5506 = vrot.slane %v5427, 7
    %v5507 = vsel %vm3657, %v5506, %v5426
    %v5508 = vrot.slane %v5428, 6
    %v5509 = vsel %vm3660, %v5508, %v5507
    %v5510 = vrot.slane %v5429, 5
    %v5511 = vsel %vm3663, %v5510, %v5509
    %v5512 = vrot.slane %v5430, 4
    %v5513 = vsel %vm3666, %v5512, %v5511
    %v5514 = vrot.slane %v5431, 3
    %v5515 = vsel %vm3669, %v5514, %v5513
    %v5516 = vrot.slane %v5432, 2
    %v5517 = vsel %vm3672, %v5516, %v5515
    %v5518 = vrot.slane %v5433, 1
    %v5519 = vsel %vm3675, %v5518, %v5517
    %v5520 = vrot.slane %v5435, 7
    %v5521 = vsel %vm3657, %v5520, %v5434
    %v5522 = vrot.slane %v5436, 6
    %v5523 = vsel %vm3660, %v5522, %v5521
    %v5524 = vrot.slane %v5437, 5
    %v5525 = vsel %vm3663, %v5524, %v5523
    %v5526 = vrot.slane %v5438, 4
    %v5527 = vsel %vm3666, %v5526, %v5525
    %v5528 = vrot.slane %v5439, 3
    %v5529 = vsel %vm3669, %v5528, %v5527
    %v5530 = vrot.slane %v5440, 2
    %v5531 = vsel %vm3672, %v5530, %v5529
    %v5532 = vrot.slane %v5441, 1
    %v5533 = vsel %vm3675, %v5532, %v5531
    %v5538 = vsel %vm433, %v5491, 0.0
    %5539 = vadd.xlane.f32.xlu0 %v5538
    %v5540 = vpop.xlane.xlu0 %5539
    %v5541 = vsel %vm433, %v5505, 0.0
    %5542 = vadd.xlane.f32.xlu0 %v5541
    %v5543 = vpop.xlane.xlu0 %5542
    %v5544 = vsel %vm433, %v5519, 0.0
    %5545 = vadd.xlane.f32.xlu0 %v5544
    %v5546 = vpop.xlane.xlu0 %5545
    %v5547 = vsel %vm433, %v5533, 0.0
    %5548 = vadd.xlane.f32.xlu0 %v5547
    %v5549 = vpop.xlane.xlu0 %5548
    %v5550 = vmul.f32 %v5540, %v2063
    %v5551 = vmul.f32 %v5543, %v2063
    %v5552 = vmul.f32 %v5546, %v2063
    %v5553 = vmul.f32 %v5549, %v2063
    %v5558 = vrot.slane %v5550, 1
    %v5559 = vrot.slane %v5550, 2
    %v5560 = vrot.slane %v5550, 3
    %v5561 = vrot.slane %v5550, 4
    %v5562 = vrot.slane %v5550, 5
    %v5563 = vrot.slane %v5550, 6
    %v5564 = vrot.slane %v5550, 7
    %v5565 = vrot.slane %v5551, 1
    %v5566 = vrot.slane %v5551, 2
    %v5567 = vrot.slane %v5551, 3
    %v5568 = vrot.slane %v5551, 4
    %v5569 = vrot.slane %v5551, 5
    %v5570 = vrot.slane %v5551, 6
    %v5571 = vrot.slane %v5551, 7
    %v5572 = vrot.slane %v5552, 1
    %v5573 = vrot.slane %v5552, 2
    %v5574 = vrot.slane %v5552, 3
    %v5575 = vrot.slane %v5552, 4
    %v5576 = vrot.slane %v5552, 5
    %v5577 = vrot.slane %v5552, 6
    %v5578 = vrot.slane %v5552, 7
    %v5579 = vrot.slane %v5553, 1
    %v5580 = vrot.slane %v5553, 2
    %v5581 = vrot.slane %v5553, 3
    %v5582 = vrot.slane %v5553, 4
    %v5583 = vrot.slane %v5553, 5
    %v5584 = vrot.slane %v5553, 6
    %v5585 = vrot.slane %v5553, 7
    %v5618 = vsub.f32 %v5410, %v5550
    %v5619 = vsub.f32 %v5411, %v5558
    %v5620 = vsub.f32 %v5412, %v5559
    %v5621 = vsub.f32 %v5413, %v5560
    %v5622 = vsub.f32 %v5414, %v5561
    %v5623 = vsub.f32 %v5415, %v5562
    %v5624 = vsub.f32 %v5416, %v5563
    %v5625 = vsub.f32 %v5417, %v5564
    %v5626 = vsub.f32 %v5418, %v5551
    %v5627 = vsub.f32 %v5419, %v5565
    %v5628 = vsub.f32 %v5420, %v5566
    %v5629 = vsub.f32 %v5421, %v5567
    %v5630 = vsub.f32 %v5422, %v5568
    %v5631 = vsub.f32 %v5423, %v5569
    %v5632 = vsub.f32 %v5424, %v5570
    %v5633 = vsub.f32 %v5425, %v5571
    %v5634 = vsub.f32 %v5426, %v5552
    %v5635 = vsub.f32 %v5427, %v5572
    %v5636 = vsub.f32 %v5428, %v5573
    %v5637 = vsub.f32 %v5429, %v5574
    %v5638 = vsub.f32 %v5430, %v5575
    %v5639 = vsub.f32 %v5431, %v5576
    %v5640 = vsub.f32 %v5432, %v5577
    %v5641 = vsub.f32 %v5433, %v5578
    %v5642 = vsub.f32 %v5434, %v5553
    %v5643 = vsub.f32 %v5435, %v5579
    %v5644 = vsub.f32 %v5436, %v5580
    %v5645 = vsub.f32 %v5437, %v5581
    %v5646 = vsub.f32 %v5438, %v5582
    %v5647 = vsub.f32 %v5439, %v5583
    %v5648 = vsub.f32 %v5440, %v5584
    %v5649 = vsub.f32 %v5441, %v5585
    %v5650 = vmul.f32 %v5618, %v5618
    %v5651 = vmul.f32 %v5619, %v5619
    %v5652 = vmul.f32 %v5620, %v5620
    %v5653 = vmul.f32 %v5621, %v5621
    %v5654 = vmul.f32 %v5622, %v5622
    %v5655 = vmul.f32 %v5623, %v5623
    %v5656 = vmul.f32 %v5624, %v5624
    %v5657 = vmul.f32 %v5625, %v5625
    %v5658 = vmul.f32 %v5626, %v5626
    %v5659 = vmul.f32 %v5627, %v5627
    %v5660 = vmul.f32 %v5628, %v5628
    %v5661 = vmul.f32 %v5629, %v5629
    %v5662 = vmul.f32 %v5630, %v5630
    %v5663 = vmul.f32 %v5631, %v5631
    %v5664 = vmul.f32 %v5632, %v5632
    %v5665 = vmul.f32 %v5633, %v5633
    %v5666 = vmul.f32 %v5634, %v5634
    %v5667 = vmul.f32 %v5635, %v5635
    %v5668 = vmul.f32 %v5636, %v5636
    %v5669 = vmul.f32 %v5637, %v5637
    %v5670 = vmul.f32 %v5638, %v5638
    %v5671 = vmul.f32 %v5639, %v5639
    %v5672 = vmul.f32 %v5640, %v5640
    %v5673 = vmul.f32 %v5641, %v5641
    %v5674 = vmul.f32 %v5642, %v5642
    %v5675 = vmul.f32 %v5643, %v5643
    %v5676 = vmul.f32 %v5644, %v5644
    %v5677 = vmul.f32 %v5645, %v5645
    %v5678 = vmul.f32 %v5646, %v5646
    %v5679 = vmul.f32 %v5647, %v5647
    %v5680 = vmul.f32 %v5648, %v5648
    %v5681 = vmul.f32 %v5649, %v5649
    %v5714 = vrot.slane %v5651, 7
    %v5715 = vsel %vm3657, %v5714, %v5650
    %v5716 = vrot.slane %v5652, 6
    %v5717 = vsel %vm3660, %v5716, %v5715
    %v5718 = vrot.slane %v5653, 5
    %v5719 = vsel %vm3663, %v5718, %v5717
    %v5720 = vrot.slane %v5654, 4
    %v5721 = vsel %vm3666, %v5720, %v5719
    %v5722 = vrot.slane %v5655, 3
    %v5723 = vsel %vm3669, %v5722, %v5721
    %v5724 = vrot.slane %v5656, 2
    %v5725 = vsel %vm3672, %v5724, %v5723
    %v5726 = vrot.slane %v5657, 1
    %v5727 = vsel %vm3675, %v5726, %v5725
    %v5728 = vrot.slane %v5659, 7
    %v5729 = vsel %vm3657, %v5728, %v5658
    %v5730 = vrot.slane %v5660, 6
    %v5731 = vsel %vm3660, %v5730, %v5729
    %v5732 = vrot.slane %v5661, 5
    %v5733 = vsel %vm3663, %v5732, %v5731
    %v5734 = vrot.slane %v5662, 4
    %v5735 = vsel %vm3666, %v5734, %v5733
    %v5736 = vrot.slane %v5663, 3
    %v5737 = vsel %vm3669, %v5736, %v5735
    %v5738 = vrot.slane %v5664, 2
    %v5739 = vsel %vm3672, %v5738, %v5737
    %v5740 = vrot.slane %v5665, 1
    %v5741 = vsel %vm3675, %v5740, %v5739
    %v5742 = vrot.slane %v5667, 7
    %v5743 = vsel %vm3657, %v5742, %v5666
    %v5744 = vrot.slane %v5668, 6
    %v5745 = vsel %vm3660, %v5744, %v5743
    %v5746 = vrot.slane %v5669, 5
    %v5747 = vsel %vm3663, %v5746, %v5745
    %v5748 = vrot.slane %v5670, 4
    %v5749 = vsel %vm3666, %v5748, %v5747
    %v5750 = vrot.slane %v5671, 3
    %v5751 = vsel %vm3669, %v5750, %v5749
    %v5752 = vrot.slane %v5672, 2
    %v5753 = vsel %vm3672, %v5752, %v5751
    %v5754 = vrot.slane %v5673, 1
    %v5755 = vsel %vm3675, %v5754, %v5753
    %v5756 = vrot.slane %v5675, 7
    %v5757 = vsel %vm3657, %v5756, %v5674
    %v5758 = vrot.slane %v5676, 6
    %v5759 = vsel %vm3660, %v5758, %v5757
    %v5760 = vrot.slane %v5677, 5
    %v5761 = vsel %vm3663, %v5760, %v5759
    %v5762 = vrot.slane %v5678, 4
    %v5763 = vsel %vm3666, %v5762, %v5761
    %v5764 = vrot.slane %v5679, 3
    %v5765 = vsel %vm3669, %v5764, %v5763
    %v5766 = vrot.slane %v5680, 2
    %v5767 = vsel %vm3672, %v5766, %v5765
    %v5768 = vrot.slane %v5681, 1
    %v5769 = vsel %vm3675, %v5768, %v5767
    %v5774 = vsel %vm433, %v5727, 0.0
    %5775 = vadd.xlane.f32.xlu0 %v5774
    %v5776 = vpop.xlane.xlu0 %5775
    %v5777 = vsel %vm433, %v5741, 0.0
    %5778 = vadd.xlane.f32.xlu0 %v5777
    %v5779 = vpop.xlane.xlu0 %5778
    %v5780 = vsel %vm433, %v5755, 0.0
    %5781 = vadd.xlane.f32.xlu0 %v5780
    %v5782 = vpop.xlane.xlu0 %5781
    %v5783 = vsel %vm433, %v5769, 0.0
    %5784 = vadd.xlane.f32.xlu0 %v5783
    %v5785 = vpop.xlane.xlu0 %5784
    %v5786 = vmul.f32 %v5776, %v2063
    %v5787 = vmul.f32 %v5779, %v2063
    %v5788 = vmul.f32 %v5782, %v2063
    %v5789 = vmul.f32 %v5785, %v2063
    %v5790 = vadd.f32 %v5786, 1e-05
    %v5791 = vadd.f32 %v5787, 1e-05
    %v5792 = vadd.f32 %v5788, 1e-05
    %v5793 = vadd.f32 %v5789, 1e-05
    %v5794 = vrsqrt.pop %v5790
    %v5795 = vrsqrt.pop %v5791
    %v5796 = vrsqrt.pop %v5792
    %v5797 = vrsqrt.pop %v5793
    %v5802 = vrot.slane %v5794, 1
    %v5803 = vrot.slane %v5794, 2
    %v5804 = vrot.slane %v5794, 3
    %v5805 = vrot.slane %v5794, 4
    %v5806 = vrot.slane %v5794, 5
    %v5807 = vrot.slane %v5794, 6
    %v5808 = vrot.slane %v5794, 7
    %v5809 = vrot.slane %v5795, 1
    %v5810 = vrot.slane %v5795, 2
    %v5811 = vrot.slane %v5795, 3
    %v5812 = vrot.slane %v5795, 4
    %v5813 = vrot.slane %v5795, 5
    %v5814 = vrot.slane %v5795, 6
    %v5815 = vrot.slane %v5795, 7
    %v5816 = vrot.slane %v5796, 1
    %v5817 = vrot.slane %v5796, 2
    %v5818 = vrot.slane %v5796, 3
    %v5819 = vrot.slane %v5796, 4
    %v5820 = vrot.slane %v5796, 5
    %v5821 = vrot.slane %v5796, 6
    %v5822 = vrot.slane %v5796, 7
    %v5823 = vrot.slane %v5797, 1
    %v5824 = vrot.slane %v5797, 2
    %v5825 = vrot.slane %v5797, 3
    %v5826 = vrot.slane %v5797, 4
    %v5827 = vrot.slane %v5797, 5
    %v5828 = vrot.slane %v5797, 6
    %v5829 = vrot.slane %v5797, 7
    %v5862 = vmul.f32 %v5618, %v5794
    %v5863 = vmul.f32 %v5619, %v5802
    %v5864 = vmul.f32 %v5620, %v5803
    %v5865 = vmul.f32 %v5621, %v5804
    %v5866 = vmul.f32 %v5622, %v5805
    %v5867 = vmul.f32 %v5623, %v5806
    %v5868 = vmul.f32 %v5624, %v5807
    %v5869 = vmul.f32 %v5625, %v5808
    %v5870 = vmul.f32 %v5626, %v5795
    %v5871 = vmul.f32 %v5627, %v5809
    %v5872 = vmul.f32 %v5628, %v5810
    %v5873 = vmul.f32 %v5629, %v5811
    %v5874 = vmul.f32 %v5630, %v5812
    %v5875 = vmul.f32 %v5631, %v5813
    %v5876 = vmul.f32 %v5632, %v5814
    %v5877 = vmul.f32 %v5633, %v5815
    %v5878 = vmul.f32 %v5634, %v5796
    %v5879 = vmul.f32 %v5635, %v5816
    %v5880 = vmul.f32 %v5636, %v5817
    %v5881 = vmul.f32 %v5637, %v5818
    %v5882 = vmul.f32 %v5638, %v5819
    %v5883 = vmul.f32 %v5639, %v5820
    %v5884 = vmul.f32 %v5640, %v5821
    %v5885 = vmul.f32 %v5641, %v5822
    %v5886 = vmul.f32 %v5642, %v5797
    %v5887 = vmul.f32 %v5643, %v5823
    %v5888 = vmul.f32 %v5644, %v5824
    %v5889 = vmul.f32 %v5645, %v5825
    %v5890 = vmul.f32 %v5646, %v5826
    %v5891 = vmul.f32 %v5647, %v5827
    %v5892 = vmul.f32 %v5648, %v5828
    %v5893 = vmul.f32 %v5649, %v5829
    %v5895 = vlaneseq
    %v5896 = vshrl.u32 %v5895, 7
    %v5897 = vsub.s32 0, %v5896
    %v5898 = vrot.slane %v5443, %v5897
    %v5900 = vmul.f32 %v5862, %v5898
    %v5901 = vmul.f32 %v5863, %v5898
    %v5902 = vmul.f32 %v5864, %v5898
    %v5903 = vmul.f32 %v5865, %v5898
    %v5904 = vmul.f32 %v5866, %v5898
    %v5905 = vmul.f32 %v5867, %v5898
    %v5906 = vmul.f32 %v5868, %v5898
    %v5907 = vmul.f32 %v5869, %v5898
    %v5908 = vmul.f32 %v5870, %v5898
    %v5909 = vmul.f32 %v5871, %v5898
    %v5910 = vmul.f32 %v5872, %v5898
    %v5911 = vmul.f32 %v5873, %v5898
    %v5912 = vmul.f32 %v5874, %v5898
    %v5913 = vmul.f32 %v5875, %v5898
    %v5914 = vmul.f32 %v5876, %v5898
    %v5915 = vmul.f32 %v5877, %v5898
    %v5916 = vmul.f32 %v5878, %v5898
    %v5917 = vmul.f32 %v5879, %v5898
    %v5918 = vmul.f32 %v5880, %v5898
    %v5919 = vmul.f32 %v5881, %v5898
    %v5920 = vmul.f32 %v5882, %v5898
    %v5921 = vmul.f32 %v5883, %v5898
    %v5922 = vmul.f32 %v5884, %v5898
    %v5923 = vmul.f32 %v5885, %v5898
    %v5924 = vmul.f32 %v5886, %v5898
    %v5925 = vmul.f32 %v5887, %v5898
    %v5926 = vmul.f32 %v5888, %v5898
    %v5927 = vmul.f32 %v5889, %v5898
    %v5928 = vmul.f32 %v5890, %v5898
    %v5929 = vmul.f32 %v5891, %v5898
    %v5930 = vmul.f32 %v5892, %v5898
    %v5931 = vmul.f32 %v5893, %v5898
    %v5933 = vlaneseq
    %v5934 = vshrl.u32 %v5933, 7
    %v5935 = vsub.s32 0, %v5934
    %v5936 = vrot.slane %v5445, %v5935
    %v5938 = vadd.f32 %v5900, %v5936
    %v5939 = vadd.f32 %v5901, %v5936
    %v5940 = vadd.f32 %v5902, %v5936
    %v5941 = vadd.f32 %v5903, %v5936
    %v5942 = vadd.f32 %v5904, %v5936
    %v5943 = vadd.f32 %v5905, %v5936
    %v5944 = vadd.f32 %v5906, %v5936
    %v5945 = vadd.f32 %v5907, %v5936
    %v5946 = vadd.f32 %v5908, %v5936
    %v5947 = vadd.f32 %v5909, %v5936
    %v5948 = vadd.f32 %v5910, %v5936
    %v5949 = vadd.f32 %v5911, %v5936
    %v5950 = vadd.f32 %v5912, %v5936
    %v5951 = vadd.f32 %v5913, %v5936
    %v5952 = vadd.f32 %v5914, %v5936
    %v5953 = vadd.f32 %v5915, %v5936
    %v5954 = vadd.f32 %v5916, %v5936
    %v5955 = vadd.f32 %v5917, %v5936
    %v5956 = vadd.f32 %v5918, %v5936
    %v5957 = vadd.f32 %v5919, %v5936
    %v5958 = vadd.f32 %v5920, %v5936
    %v5959 = vadd.f32 %v5921, %v5936
    %v5960 = vadd.f32 %v5922, %v5936
    %v5961 = vadd.f32 %v5923, %v5936
    %v5962 = vadd.f32 %v5924, %v5936
    %v5963 = vadd.f32 %v5925, %v5936
    %v5964 = vadd.f32 %v5926, %v5936
    %v5965 = vadd.f32 %v5927, %v5936
    %v5966 = vadd.f32 %v5928, %v5936
    %v5967 = vadd.f32 %v5929, %v5936
    %v5968 = vadd.f32 %v5930, %v5936
    %v5969 = vadd.f32 %v5931, %v5936
    %vm5970 = vcmask 253952
    %5971 = vst.msk [vmem:[#allocation13] sm:$0x1] %vm5970, %v5938
    %5972 = vst.msk [vmem:[#allocation13 + $0x1] sm:$0x1] %vm5970, %v5939
    %5973 = vst.msk [vmem:[#allocation13 + $0x2] sm:$0x1] %vm5970, %v5940
    %5974 = vst.msk [vmem:[#allocation13 + $0x3] sm:$0x1] %vm5970, %v5941
    %5975 = vst.msk [vmem:[#allocation13 + $0x4] sm:$0x1] %vm5970, %v5942
    %5976 = vst.msk [vmem:[#allocation13 + $0x5] sm:$0x1] %vm5970, %v5943
    %5977 = vst.msk [vmem:[#allocation13 + $0x6] sm:$0x1] %vm5970, %v5944
    %5978 = vst.msk [vmem:[#allocation13 + $0x7] sm:$0x1] %vm5970, %v5945
    %5979 = vst.msk [vmem:[#allocation13 + $0x8] sm:$0x1] %vm5970, %v5946
    %5980 = vst.msk [vmem:[#allocation13 + $0x9] sm:$0x1] %vm5970, %v5947
    %5981 = vst.msk [vmem:[#allocation13 + $0xa] sm:$0x1] %vm5970, %v5948
    %5982 = vst.msk [vmem:[#allocation13 + $0xb] sm:$0x1] %vm5970, %v5949
    %5983 = vst.msk [vmem:[#allocation13 + $0xc] sm:$0x1] %vm5970, %v5950
    %5984 = vst.msk [vmem:[#allocation13 + $0xd] sm:$0x1] %vm5970, %v5951
    %5985 = vst.msk [vmem:[#allocation13 + $0xe] sm:$0x1] %vm5970, %v5952
    %5986 = vst.msk [vmem:[#allocation13 + $0xf] sm:$0x1] %vm5970, %v5953
    %5987 = vst.msk [vmem:[#allocation13 + $0x10] sm:$0x1] %vm5970, %v5954
    %5988 = vst.msk [vmem:[#allocation13 + $0x11] sm:$0x1] %vm5970, %v5955
    %5989 = vst.msk [vmem:[#allocation13 + $0x12] sm:$0x1] %vm5970, %v5956
    %5990 = vst.msk [vmem:[#allocation13 + $0x13] sm:$0x1] %vm5970, %v5957
    %5991 = vst.msk [vmem:[#allocation13 + $0x14] sm:$0x1] %vm5970, %v5958
    %5992 = vst.msk [vmem:[#allocation13 + $0x15] sm:$0x1] %vm5970, %v5959
    %5993 = vst.msk [vmem:[#allocation13 + $0x16] sm:$0x1] %vm5970, %v5960
    %5994 = vst.msk [vmem:[#allocation13 + $0x17] sm:$0x1] %vm5970, %v5961
    %5995 = vst.msk [vmem:[#allocation13 + $0x18] sm:$0x1] %vm5970, %v5962
    %5996 = vst.msk [vmem:[#allocation13 + $0x19] sm:$0x1] %vm5970, %v5963
    %5997 = vst.msk [vmem:[#allocation13 + $0x1a] sm:$0x1] %vm5970, %v5964
    %5998 = vst.msk [vmem:[#allocation13 + $0x1b] sm:$0x1] %vm5970, %v5965
    %5999 = vst.msk [vmem:[#allocation13 + $0x1c] sm:$0x1] %vm5970, %v5966
    %6000 = vst.msk [vmem:[#allocation13 + $0x1d] sm:$0x1] %vm5970, %v5967
    %6001 = vst.msk [vmem:[#allocation13 + $0x1e] sm:$0x1] %vm5970, %v5968
    %6002 = vst.msk [vmem:[#allocation13 + $0x1f] sm:$0x1] %vm5970, %v5969
    // Predicated region
    $region94: #{tpu_custom_call.1} parent=1 // pred_check
      _
    $region95: #{tpu_custom_call.1} parent=1 // pred_check_branch
      %6004 = sbr.rel (0) target = $region97
    $region96: #{tpu_custom_call.1} parent=1 // pred_region
      %s6006 = ssub.s32 512, 512
      %6007 = vsyncadd [#allocation4], %s6006
      %s6008 = sshll.u32 [#allocation13], 4
      %s6009 = int_to_ptr.vmem [resolvable:$true] %s6008
      %6014 = dma.vmem_to_hbm [thread:$0]  %s6009, 512, %s17, [#allocation4], 16, 16, 1
    $region97: #{tpu_custom_call.1} parent=1 // pred_fallthru
      _
    // Predicated region
    $region98: #{tpu_custom_call.1} parent=1 // pred_check
      _
    $region99: #{tpu_custom_call.1} parent=1 // pred_check_branch
      %6016 = sbr.rel (0) target = $region101
    $region100: #{tpu_custom_call.1} parent=1 // pred_region
      %6017 = dma.done [#allocation4], 512
    $region101: #{tpu_custom_call.1} parent=1 // pred_fallthru
      _
    %6018 = vsyncpa [#allocation3], 1
    %6019 = vsyncpa [#allocation6], 1
    %6020 = vsyncpa [#allocation9], 1
    %6021 = vsyncpa [#allocation12], 1
    %6022 = vsyncpa [#allocation4], 1

</llo_original>
